<compile_context>
chip_gen: v7x
topology: tpu7x:2x2x1
jax: 0.10.0
libtpu: 0.0.40
codegen_flags: <defaults>
</compile_context>

<pallas_src>
import functools
import math

import jax
import jax.numpy as jnp
import numpy as np
from jax.experimental import pallas as pl
from jax.experimental.pallas import tpu as pltpu

LANE = 128
SUB = 8


def _round_up(x, m):
    return ((x + m - 1) // m) * m


# ----------------------------------------------------------------------------
# Fused Pallas kernel: (optional NeRF pos-emb) + full MLP for one row tile.
# ref order: x, [E, P, off], then per layer (w, b[, gamma, beta]), then out.
# ----------------------------------------------------------------------------
def _implicit_field_kernel(*refs, has_posemb, ln_relu_flags, d_real, eps=1e-5):
    idx = 0
    x = refs[idx][...].astype(jnp.float32)                      # (tm, d_in_p)
    idx += 1

    if has_posemb:
        e_ref = refs[idx]; idx += 1                             # (d_in_p, d0) f32
        p_ref = refs[idx]; idx += 1                             # (d_in_p, d0) f32
        off_ref = refs[idx]; idx += 1                           # (1, d0)  pi/2 at cos cols
        # Passthrough placement (x @ E, identity columns) fused with the
        # NeRF embedding:  sin(t + pi/2) == cos(t);  P/off are 0 on the
        # passthrough and padded columns, so sin(0) = 0 there.
        phase = jnp.dot(x, p_ref[...], preferred_element_type=jnp.float32)
        h = (jnp.dot(x, e_ref[...], preferred_element_type=jnp.float32)
             + jnp.sin(phase + off_ref[...]))
    else:
        h = x

    for li, use_ln_relu in enumerate(ln_relu_flags):
        w = refs[idx][...]; idx += 1                            # bf16 (Din_pad, Dout_pad)
        b = refs[idx][...]; idx += 1                            # f32  (1, Dout_pad)
        # bf16 x bf16 operands, f32 accumulation on the MXU.
        y = jnp.dot(h.astype(jnp.bfloat16), w,
                    preferred_element_type=jnp.float32) + b
        if use_ln_relu:
            g = refs[idx][...]; idx += 1                        # (1, Dout_pad) 0-padded
            beta = refs[idx][...]; idx += 1                     # (1, Dout_pad) 0-padded
            inv_d = 1.0 / float(d_real[li])
            # One-pass statistics in f32: padded columns of y are exactly 0,
            # so full-width sums equal the sums over the real features.
            s1 = jnp.sum(y, axis=-1, keepdims=True)
            s2 = jnp.sum(y * y, axis=-1, keepdims=True)
            mean = s1 * inv_d
            var = jnp.maximum(s2 * inv_d - mean * mean, 0.0)
            y = (y - mean) * jax.lax.rsqrt(var + eps)
            y = jnp.maximum(y * g + beta, 0.0)                  # padded cols -> 0 again
        h = y

    out_ref = refs[idx]
    out_ref[...] = h.astype(out_ref.dtype)


# ----------------------------------------------------------------------------
# Parameter init (matches the PyTorch module) — unpadded f32, used by the ref.
# ----------------------------------------------------------------------------
def init_implicit_field(key, in_dim, out_dim, hidden_dim, num_layers,
                        outmost_linear=False, pos_proj=0):
    mlp_in = in_dim + in_dim * 2 * pos_proj if pos_proj > 0 else in_dim
    dims = [mlp_in] + [hidden_dim] * (num_layers + 1) + [out_dim]
    layers = []
    for li in range(len(dims) - 1):
        din, dout = dims[li], dims[li + 1]
        key, kw, kb = jax.random.split(key, 3)
        # kaiming_normal_(a=0, relu, fan_in): std = sqrt(2 / fan_in)
        w = jax.random.normal(kw, (din, dout), jnp.float32) * math.sqrt(2.0 / din)
        # default nn.Linear bias init: U(-1/sqrt(fan_in), 1/sqrt(fan_in))
        bound = 1.0 / math.sqrt(din)
        b = jax.random.uniform(kb, (dout,), jnp.float32, -bound, bound)
        is_last = li == len(dims) - 2
        ln_relu = not (is_last and outmost_linear)
        layers.append(dict(w=w, b=b,
                           gamma=jnp.ones((dout,), jnp.float32),
                           beta=jnp.zeros((dout,), jnp.float32),
                           ln_relu=ln_relu))
    return dict(layers=layers, in_dim=in_dim, out_dim=out_dim,
                pos_proj=pos_proj, mlp_in=mlp_in)


# ----------------------------------------------------------------------------
# Pack parameters into lane-padded kernel operands (done once).
# Weights -> bf16; biases / LN params / posemb matrices stay f32.
# ----------------------------------------------------------------------------
def pack_implicit_field(params):
    in_dim, pos_proj, mlp_in = params["in_dim"], params["pos_proj"], params["mlp_in"]
    d_in_p = _round_up(in_dim, SUB)            # input lane width streamed from HBM
    d0 = _round_up(mlp_in, LANE)               # width of the (posemb) MLP input
    first_in_pad = d0 if pos_proj > 0 else d_in_p

    packed_layers = []
    for li, layer in enumerate(params["layers"]):
        w = np.asarray(layer["w"], np.float32)
        b = np.asarray(layer["b"], np.float32)
        din, dout = w.shape
        din_p = first_in_pad if li == 0 else _round_up(din, LANE)
        dout_p = _round_up(dout, LANE)
        wp = np.zeros((din_p, dout_p), np.float32); wp[:din, :dout] = w
        bp = np.zeros((1, dout_p), np.float32);     bp[0, :dout] = b
        entry = dict(w=jnp.asarray(wp, dtype=jnp.bfloat16),   # bf16 MXU operand
                     b=jnp.asarray(bp),                        # f32 add
                     ln_relu=layer["ln_relu"], d_out_real=dout)
        if layer["ln_relu"]:
            gp = np.zeros((1, dout_p), np.float32)
            betap = np.zeros((1, dout_p), np.float32)
            gp[0, :dout] = np.asarray(layer["gamma"], np.float32)
            betap[0, :dout] = np.asarray(layer["beta"], np.float32)
            entry["gamma"] = jnp.asarray(gp)
            entry["beta"] = jnp.asarray(betap)
        packed_layers.append(entry)

    packed = dict(layers=packed_layers, in_dim=in_dim, out_dim=params["out_dim"],
                  pos_proj=pos_proj, d_in_p=d_in_p, d0=d0)

    if pos_proj > 0:
        # Feature ordering matches the pure-JAX reference (per input dim i:
        # sin(x_i*2^0*pi)..sin(x_i*2^{L-1}*pi), then the cos's).
        # TODO(synk): if loading pretrained fairnr weights, re-verify this
        # sin/cos column permutation against the checkpoint's NeRFPosEmbLinear.
        L = pos_proj
        E = np.zeros((d_in_p, d0), np.float32)      # identity placement of raw x
        P = np.zeros((d_in_p, d0), np.float32)      # frequency matrix
        off = np.zeros((1, d0), np.float32)         # pi/2 on cos columns
        for i in range(in_dim):
            E[i, i] = 1.0
            for l in range(L):
                f = math.pi * (2.0 ** l)
                c_sin = in_dim + i * 2 * L + l
                c_cos = in_dim + i * 2 * L + L + l
                P[i, c_sin] = f
                P[i, c_cos] = f
                off[0, c_cos] = math.pi / 2.0
        packed["posemb_E"] = jnp.asarray(E)
        packed["posemb_P"] = jnp.asarray(P)
        packed["posemb_off"] = jnp.asarray(off)
    return packed


# ----------------------------------------------------------------------------
# Forward: one fused pallas_call over row tiles.
# ----------------------------------------------------------------------------
def implicit_field_forward(packed, x, *, tm=256, interpret=False):
    in_dim = packed["in_dim"]
    pos_proj = packed["pos_proj"]
    d_in_p = packed["d_in_p"]
    d_out_pad = packed["layers"][-1]["w"].shape[1]

    leading = x.shape[:-1]
    n = int(np.prod(leading)) if leading else 1
    xf = x.reshape(n, in_dim).astype(jnp.float32)

    # Row tiling: tm multiple of 8, capped at 256 (vreg/spill pressure), and
    # capped so the grid has >= 2 steps when possible (v7x 2-TC megacore).
    n8 = _round_up(n, SUB)
    tm = max(SUB, min(tm, 256))
    tm = min(tm, n8)
    if n8 // tm < 2 and n8 >= 2 * SUB:
        tm = _round_up(-(-n8 // 2), SUB)
    n_pad = _round_up(n8, tm)

    # Only row padding + tiny 8-lane input padding (no 128-lane zero fill).
    x_in = jnp.pad(xf, ((0, n_pad - n), (0, d_in_p - in_dim)))

    inputs = [x_in]
    in_specs = [pl.BlockSpec((tm, d_in_p), lambda i: (i, 0))]

    flops = 0
    trans = 0
    bytes_acc = x_in.size * 4 + n_pad * d_out_pad * 4

    if pos_proj > 0:
        d0 = packed["d0"]
        inputs += [packed["posemb_E"], packed["posemb_P"], packed["posemb_off"]]
        in_specs += [pl.BlockSpec((d_in_p, d0), lambda i: (0, 0)),
                     pl.BlockSpec((d_in_p, d0), lambda i: (0, 0)),
                     pl.BlockSpec((1, d0), lambda i: (0, 0))]
        flops += 2 * 2 * n_pad * d_in_p * d0
        trans += n_pad * d0
        bytes_acc += 2 * d_in_p * d0 * 4 + d0 * 4

    ln_relu_flags, d_real = [], []
    for layer in packed["layers"]:
        din_p, dout_p = layer["w"].shape
        inputs += [layer["w"], layer["b"]]
        in_specs += [pl.BlockSpec((din_p, dout_p), lambda i: (0, 0)),
                     pl.BlockSpec((1, dout_p), lambda i: (0, 0))]
        ln_relu_flags.append(layer["ln_relu"])
        d_real.append(layer["d_out_real"])
        flops += 2 * n_pad * din_p * dout_p
        bytes_acc += din_p * dout_p * 2 + dout_p * 4
        if layer["ln_relu"]:
            inputs += [layer["gamma"], layer["beta"]]
            in_specs += [pl.BlockSpec((1, dout_p), lambda i: (0, 0)),
                         pl.BlockSpec((1, dout_p), lambda i: (0, 0))]
            bytes_acc += 2 * dout_p * 4

    kernel = functools.partial(
        _implicit_field_kernel,
        has_posemb=pos_proj > 0,
        ln_relu_flags=tuple(ln_relu_flags),
        d_real=tuple(d_real),
    )

    out = pl.pallas_call(
        kernel,
        out_shape=jax.ShapeDtypeStruct((n_pad, d_out_pad), jnp.float32),
        grid=(n_pad // tm,),
        in_specs=in_specs,
        out_specs=pl.BlockSpec((tm, d_out_pad), lambda i: (i, 0)),
        compiler_params=pltpu.CompilerParams(
            dimension_semantics=("parallel",),
            vmem_limit_bytes=48 * 1024 * 1024),
        cost_estimate=pl.CostEstimate(flops=int(flops),
                                      transcendentals=int(trans),
                                      bytes_accessed=int(bytes_acc)),
        interpret=interpret,
    )(*inputs)

    out = out[:n, :packed["out_dim"]]
    return out.reshape(*leading, packed["out_dim"])


# ----------------------------------------------------------------------------
# Pure-JAX references (mirror the PyTorch module; optional bf16-matmul mode
# that matches the kernel's mixed-precision numerics).
# ----------------------------------------------------------------------------
def _nerf_pos_emb_ref(x, num_freqs):
    emb = jnp.exp(jnp.arange(num_freqs, dtype=jnp.float32) * math.log(2.0)) * math.pi
    xe = x[..., None] * emb
    out = jnp.concatenate([jnp.sin(xe), jnp.cos(xe)], axis=-1)
    return out.reshape(*x.shape[:-1], x.shape[-1] * 2 * num_freqs)


def implicit_field_ref(params, x, *, bf16_matmul=False):
    if params["pos_proj"] > 0:
        x = jnp.concatenate([x, _nerf_pos_emb_ref(x, params["pos_proj"])], axis=-1)
    h = x.astype(jnp.float32)
    for layer in params["layers"]:
        if bf16_matmul:
            y = jnp.dot(h.astype(jnp.bfloat16), layer["w"].astype(jnp.bfloat16),
                        preferred_element_type=jnp.float32) + layer["b"]
        else:
            y = h @ layer["w"] + layer["b"]
        if layer["ln_relu"]:
            mean = jnp.mean(y, axis=-1, keepdims=True)
            var = jnp.mean((y - mean) ** 2, axis=-1, keepdims=True)
            y = (y - mean) * jax.lax.rsqrt(var + 1e-5)
            y = jnp.maximum(y * layer["gamma"] + layer["beta"], 0.0)
        h = y
    return h


if __name__ == "__main__":
    # Small config consistent with the module: 3-D query points -> 4-D output.
    in_dim, out_dim, hidden_dim, num_layers = 3, 4, 32, 2
    outmost_linear = True
    pos_proj = 2            # mlp input dim = 3 + 3*2*2 = 15

    key = jax.random.PRNGKey(0)
    kparam, kx = jax.random.split(key)
    params = init_implicit_field(kparam, in_dim, out_dim, hidden_dim, num_layers,
                                 outmost_linear=outmost_linear, pos_proj=pos_proj)
    packed = pack_implicit_field(params)

    # Query points: (batch=2, points=64, in_dim=3)  -> flattened N = 128 rows.
    x = jax.random.normal(kx, (2, 64, in_dim), jnp.float32)

    out = implicit_field_forward(packed, x, tm=256)
    out = jax.block_until_ready(out)
    assert out.shape == (2, 64, out_dim), out.shape

    # 1) Tight check vs a reference using the same bf16 matmul numerics.
    ref_bf16 = implicit_field_ref(params, x, bf16_matmul=True)
    np.testing.assert_allclose(np.asarray(out), np.asarray(ref_bf16),
                               rtol=2e-2, atol=2e-2)
    # 2) Looser check vs the exact f32 PyTorch-equivalent reference.
    ref_f32 = implicit_field_ref(params, x, bf16_matmul=False)
    np.testing.assert_allclose(np.asarray(out), np.asarray(ref_f32),
                               rtol=1e-1, atol=1e-1)

    print("KERNEL_OK")
</pallas_src>

<mosaic_0001>
module attributes {stable_mosaic.version = 11 : i64} {
  func.func @_implicit_field_kernel(%arg0: i32, %arg1: memref<64x8xf32, #tpu.memory_space<vmem>>, %arg2: memref<8x128xf32, #tpu.memory_space<vmem>>, %arg3: memref<8x128xf32, #tpu.memory_space<vmem>>, %arg4: memref<1x128xf32, #tpu.memory_space<vmem>>, %arg5: memref<128x128xbf16, #tpu.memory_space<vmem>>, %arg6: memref<1x128xf32, #tpu.memory_space<vmem>>, %arg7: memref<1x128xf32, #tpu.memory_space<vmem>>, %arg8: memref<1x128xf32, #tpu.memory_space<vmem>>, %arg9: memref<128x128xbf16, #tpu.memory_space<vmem>>, %arg10: memref<1x128xf32, #tpu.memory_space<vmem>>, %arg11: memref<1x128xf32, #tpu.memory_space<vmem>>, %arg12: memref<1x128xf32, #tpu.memory_space<vmem>>, %arg13: memref<128x128xbf16, #tpu.memory_space<vmem>>, %arg14: memref<1x128xf32, #tpu.memory_space<vmem>>, %arg15: memref<1x128xf32, #tpu.memory_space<vmem>>, %arg16: memref<1x128xf32, #tpu.memory_space<vmem>>, %arg17: memref<128x128xbf16, #tpu.memory_space<vmem>>, %arg18: memref<1x128xf32, #tpu.memory_space<vmem>>, %arg19: memref<64x128xf32, #tpu.memory_space<vmem>>) attributes {dimension_semantics = [#tpu.dimension_semantics<parallel>], iteration_bounds = array<i64: 2>, scalar_prefetch = 0 : i64, scratch_operands = 0 : i64, tpu.core_type = #tpu.core_type<tc>, window_params = [{transform_indices = @transform_0, window_bounds = array<i64: 64, 8>}, {pipeline_mode = #tpu.pipeline_mode<synchronous>, transform_indices = @transform_1, window_bounds = array<i64: 8, 128>}, {pipeline_mode = #tpu.pipeline_mode<synchronous>, transform_indices = @transform_2, window_bounds = array<i64: 8, 128>}, {pipeline_mode = #tpu.pipeline_mode<synchronous>, transform_indices = @transform_3, window_bounds = array<i64: 1, 128>}, {pipeline_mode = #tpu.pipeline_mode<synchronous>, transform_indices = @transform_4, window_bounds = array<i64: 128, 128>}, {pipeline_mode = #tpu.pipeline_mode<synchronous>, transform_indices = @transform_5, window_bounds = array<i64: 1, 128>}, {pipeline_mode = #tpu.pipeline_mode<synchronous>, transform_indices = @transform_6, window_bounds = array<i64: 1, 128>}, {pipeline_mode = #tpu.pipeline_mode<synchronous>, transform_indices = @transform_7, window_bounds = array<i64: 1, 128>}, {pipeline_mode = #tpu.pipeline_mode<synchronous>, transform_indices = @transform_8, window_bounds = array<i64: 128, 128>}, {pipeline_mode = #tpu.pipeline_mode<synchronous>, transform_indices = @transform_9, window_bounds = array<i64: 1, 128>}, {pipeline_mode = #tpu.pipeline_mode<synchronous>, transform_indices = @transform_10, window_bounds = array<i64: 1, 128>}, {pipeline_mode = #tpu.pipeline_mode<synchronous>, transform_indices = @transform_11, window_bounds = array<i64: 1, 128>}, {pipeline_mode = #tpu.pipeline_mode<synchronous>, transform_indices = @transform_12, window_bounds = array<i64: 128, 128>}, {pipeline_mode = #tpu.pipeline_mode<synchronous>, transform_indices = @transform_13, window_bounds = array<i64: 1, 128>}, {pipeline_mode = #tpu.pipeline_mode<synchronous>, transform_indices = @transform_14, window_bounds = array<i64: 1, 128>}, {pipeline_mode = #tpu.pipeline_mode<synchronous>, transform_indices = @transform_15, window_bounds = array<i64: 1, 128>}, {pipeline_mode = #tpu.pipeline_mode<synchronous>, transform_indices = @transform_16, window_bounds = array<i64: 128, 128>}, {pipeline_mode = #tpu.pipeline_mode<synchronous>, transform_indices = @transform_17, window_bounds = array<i64: 1, 128>}, {transform_indices = @transform_18, window_bounds = array<i64: 64, 128>}]} {
    %c0 = arith.constant 0 : index
    %c0_0 = arith.constant 0 : index
    %0 = vector.load %arg1[%c0, %c0_0] : memref<64x8xf32, #tpu.memory_space<vmem>>, vector<64x8xf32>
    %c0_1 = arith.constant 0 : index
    %c0_2 = arith.constant 0 : index
    %1 = vector.load %arg3[%c0_1, %c0_2] : memref<8x128xf32, #tpu.memory_space<vmem>>, vector<8x128xf32>
    %cst = arith.constant dense<0.000000e+00> : vector<64x128xf32>
    %2 = tpu.matmul %0, %1, %cst {dimension_numbers = #tpu.dot_dimension_numbers<[1], [0], [0], [1], [0, 0, 1, 1], [], []>} : vector<64x8xf32>, vector<8x128xf32>, vector<64x128xf32> -> vector<64x128xf32>
    %c0_3 = arith.constant 0 : index
    %c0_4 = arith.constant 0 : index
    %3 = vector.load %arg2[%c0_3, %c0_4] : memref<8x128xf32, #tpu.memory_space<vmem>>, vector<8x128xf32>
    %cst_5 = arith.constant dense<0.000000e+00> : vector<64x128xf32>
    %4 = tpu.matmul %0, %3, %cst_5 {dimension_numbers = #tpu.dot_dimension_numbers<[1], [0], [0], [1], [0, 0, 1, 1], [], []>} : vector<64x8xf32>, vector<8x128xf32>, vector<64x128xf32> -> vector<64x128xf32>
    %c0_6 = arith.constant 0 : index
    %c0_7 = arith.constant 0 : index
    %5 = vector.load %arg4[%c0_6, %c0_7] : memref<1x128xf32, #tpu.memory_space<vmem>>, vector<1x128xf32>
    %6 = vector.broadcast %5 : vector<1x128xf32> to vector<64x128xf32>
    %7 = arith.addf %2, %6 : vector<64x128xf32>
    %8 = math.sin %7 : vector<64x128xf32>
    %9 = arith.addf %4, %8 : vector<64x128xf32>
    %c0_8 = arith.constant 0 : index
    %c0_9 = arith.constant 0 : index
    %10 = vector.load %arg5[%c0_8, %c0_9] : memref<128x128xbf16, #tpu.memory_space<vmem>>, vector<128x128xbf16>
    %c0_10 = arith.constant 0 : index
    %c0_11 = arith.constant 0 : index
    %11 = vector.load %arg6[%c0_10, %c0_11] : memref<1x128xf32, #tpu.memory_space<vmem>>, vector<1x128xf32>
    %12 = arith.truncf %9 : vector<64x128xf32> to vector<64x128xbf16>
    %cst_12 = arith.constant dense<0.000000e+00> : vector<64x128xf32>
    %13 = tpu.matmul %12, %10, %cst_12 {dimension_numbers = #tpu.dot_dimension_numbers<[1], [0], [0], [1], [0, 0, 1, 1], [], []>} : vector<64x128xbf16>, vector<128x128xbf16>, vector<64x128xf32> -> vector<64x128xf32>
    %14 = vector.broadcast %11 : vector<1x128xf32> to vector<64x128xf32>
    %15 = arith.addf %13, %14 : vector<64x128xf32>
    %c0_13 = arith.constant 0 : index
    %c0_14 = arith.constant 0 : index
    %16 = vector.load %arg7[%c0_13, %c0_14] : memref<1x128xf32, #tpu.memory_space<vmem>>, vector<1x128xf32>
    %c0_15 = arith.constant 0 : index
    %c0_16 = arith.constant 0 : index
    %17 = vector.load %arg8[%c0_15, %c0_16] : memref<1x128xf32, #tpu.memory_space<vmem>>, vector<1x128xf32>
    %cst_17 = arith.constant dense<0.000000e+00> : vector<64xf32>
    %18 = vector.multi_reduction <add>, %15, %cst_17 [1] : vector<64x128xf32> to vector<64xf32>
    %19 = vector.shape_cast %18 : vector<64xf32> to vector<64x1xf32>
    %20 = arith.mulf %15, %15 : vector<64x128xf32>
    %cst_18 = arith.constant dense<0.000000e+00> : vector<64xf32>
    %21 = vector.multi_reduction <add>, %20, %cst_18 [1] : vector<64x128xf32> to vector<64xf32>
    %22 = vector.shape_cast %21 : vector<64xf32> to vector<64x1xf32>
    %cst_19 = arith.constant 3.125000e-02 : f32
    %23 = vector.broadcast %cst_19 : f32 to vector<64x1xf32>
    %24 = arith.mulf %19, %23 : vector<64x1xf32>
    %cst_20 = arith.constant 3.125000e-02 : f32
    %25 = vector.broadcast %cst_20 : f32 to vector<64x1xf32>
    %26 = arith.mulf %22, %25 : vector<64x1xf32>
    %27 = arith.mulf %24, %24 : vector<64x1xf32>
    %28 = arith.subf %26, %27 : vector<64x1xf32>
    %cst_21 = arith.constant 0.000000e+00 : f32
    %29 = vector.broadcast %cst_21 : f32 to vector<64x1xf32>
    %30 = arith.maximumf %28, %29 : vector<64x1xf32>
    %31 = vector.broadcast %24 : vector<64x1xf32> to vector<64x128xf32>
    %32 = arith.subf %15, %31 : vector<64x128xf32>
    %cst_22 = arith.constant 9.99999974E-6 : f32
    %33 = vector.broadcast %cst_22 : f32 to vector<64x1xf32>
    %34 = arith.addf %30, %33 : vector<64x1xf32>
    %35 = math.rsqrt %34 : vector<64x1xf32>
    %36 = vector.broadcast %35 : vector<64x1xf32> to vector<64x128xf32>
    %37 = arith.mulf %32, %36 : vector<64x128xf32>
    %38 = vector.broadcast %16 : vector<1x128xf32> to vector<64x128xf32>
    %39 = arith.mulf %37, %38 : vector<64x128xf32>
    %40 = vector.broadcast %17 : vector<1x128xf32> to vector<64x128xf32>
    %41 = arith.addf %39, %40 : vector<64x128xf32>
    %cst_23 = arith.constant 0.000000e+00 : f32
    %42 = vector.broadcast %cst_23 : f32 to vector<64x128xf32>
    %43 = arith.maximumf %41, %42 : vector<64x128xf32>
    %c0_24 = arith.constant 0 : index
    %c0_25 = arith.constant 0 : index
    %44 = vector.load %arg9[%c0_24, %c0_25] : memref<128x128xbf16, #tpu.memory_space<vmem>>, vector<128x128xbf16>
    %c0_26 = arith.constant 0 : index
    %c0_27 = arith.constant 0 : index
    %45 = vector.load %arg10[%c0_26, %c0_27] : memref<1x128xf32, #tpu.memory_space<vmem>>, vector<1x128xf32>
    %46 = arith.truncf %43 : vector<64x128xf32> to vector<64x128xbf16>
    %cst_28 = arith.constant dense<0.000000e+00> : vector<64x128xf32>
    %47 = tpu.matmul %46, %44, %cst_28 {dimension_numbers = #tpu.dot_dimension_numbers<[1], [0], [0], [1], [0, 0, 1, 1], [], []>} : vector<64x128xbf16>, vector<128x128xbf16>, vector<64x128xf32> -> vector<64x128xf32>
    %48 = vector.broadcast %45 : vector<1x128xf32> to vector<64x128xf32>
    %49 = arith.addf %47, %48 : vector<64x128xf32>
    %c0_29 = arith.constant 0 : index
    %c0_30 = arith.constant 0 : index
    %50 = vector.load %arg11[%c0_29, %c0_30] : memref<1x128xf32, #tpu.memory_space<vmem>>, vector<1x128xf32>
    %c0_31 = arith.constant 0 : index
    %c0_32 = arith.constant 0 : index
    %51 = vector.load %arg12[%c0_31, %c0_32] : memref<1x128xf32, #tpu.memory_space<vmem>>, vector<1x128xf32>
    %cst_33 = arith.constant dense<0.000000e+00> : vector<64xf32>
    %52 = vector.multi_reduction <add>, %49, %cst_33 [1] : vector<64x128xf32> to vector<64xf32>
    %53 = vector.shape_cast %52 : vector<64xf32> to vector<64x1xf32>
    %54 = arith.mulf %49, %49 : vector<64x128xf32>
    %cst_34 = arith.constant dense<0.000000e+00> : vector<64xf32>
    %55 = vector.multi_reduction <add>, %54, %cst_34 [1] : vector<64x128xf32> to vector<64xf32>
    %56 = vector.shape_cast %55 : vector<64xf32> to vector<64x1xf32>
    %cst_35 = arith.constant 3.125000e-02 : f32
    %57 = vector.broadcast %cst_35 : f32 to vector<64x1xf32>
    %58 = arith.mulf %53, %57 : vector<64x1xf32>
    %cst_36 = arith.constant 3.125000e-02 : f32
    %59 = vector.broadcast %cst_36 : f32 to vector<64x1xf32>
    %60 = arith.mulf %56, %59 : vector<64x1xf32>
    %61 = arith.mulf %58, %58 : vector<64x1xf32>
    %62 = arith.subf %60, %61 : vector<64x1xf32>
    %cst_37 = arith.constant 0.000000e+00 : f32
    %63 = vector.broadcast %cst_37 : f32 to vector<64x1xf32>
    %64 = arith.maximumf %62, %63 : vector<64x1xf32>
    %65 = vector.broadcast %58 : vector<64x1xf32> to vector<64x128xf32>
    %66 = arith.subf %49, %65 : vector<64x128xf32>
    %cst_38 = arith.constant 9.99999974E-6 : f32
    %67 = vector.broadcast %cst_38 : f32 to vector<64x1xf32>
    %68 = arith.addf %64, %67 : vector<64x1xf32>
    %69 = math.rsqrt %68 : vector<64x1xf32>
    %70 = vector.broadcast %69 : vector<64x1xf32> to vector<64x128xf32>
    %71 = arith.mulf %66, %70 : vector<64x128xf32>
    %72 = vector.broadcast %50 : vector<1x128xf32> to vector<64x128xf32>
    %73 = arith.mulf %71, %72 : vector<64x128xf32>
    %74 = vector.broadcast %51 : vector<1x128xf32> to vector<64x128xf32>
    %75 = arith.addf %73, %74 : vector<64x128xf32>
    %cst_39 = arith.constant 0.000000e+00 : f32
    %76 = vector.broadcast %cst_39 : f32 to vector<64x128xf32>
    %77 = arith.maximumf %75, %76 : vector<64x128xf32>
    %c0_40 = arith.constant 0 : index
    %c0_41 = arith.constant 0 : index
    %78 = vector.load %arg13[%c0_40, %c0_41] : memref<128x128xbf16, #tpu.memory_space<vmem>>, vector<128x128xbf16>
    %c0_42 = arith.constant 0 : index
    %c0_43 = arith.constant 0 : index
    %79 = vector.load %arg14[%c0_42, %c0_43] : memref<1x128xf32, #tpu.memory_space<vmem>>, vector<1x128xf32>
    %80 = arith.truncf %77 : vector<64x128xf32> to vector<64x128xbf16>
    %cst_44 = arith.constant dense<0.000000e+00> : vector<64x128xf32>
    %81 = tpu.matmul %80, %78, %cst_44 {dimension_numbers = #tpu.dot_dimension_numbers<[1], [0], [0], [1], [0, 0, 1, 1], [], []>} : vector<64x128xbf16>, vector<128x128xbf16>, vector<64x128xf32> -> vector<64x128xf32>
    %82 = vector.broadcast %79 : vector<1x128xf32> to vector<64x128xf32>
    %83 = arith.addf %81, %82 : vector<64x128xf32>
    %c0_45 = arith.constant 0 : index
    %c0_46 = arith.constant 0 : index
    %84 = vector.load %arg15[%c0_45, %c0_46] : memref<1x128xf32, #tpu.memory_space<vmem>>, vector<1x128xf32>
    %c0_47 = arith.constant 0 : index
    %c0_48 = arith.constant 0 : index
    %85 = vector.load %arg16[%c0_47, %c0_48] : memref<1x128xf32, #tpu.memory_space<vmem>>, vector<1x128xf32>
    %cst_49 = arith.constant dense<0.000000e+00> : vector<64xf32>
    %86 = vector.multi_reduction <add>, %83, %cst_49 [1] : vector<64x128xf32> to vector<64xf32>
    %87 = vector.shape_cast %86 : vector<64xf32> to vector<64x1xf32>
    %88 = arith.mulf %83, %83 : vector<64x128xf32>
    %cst_50 = arith.constant dense<0.000000e+00> : vector<64xf32>
    %89 = vector.multi_reduction <add>, %88, %cst_50 [1] : vector<64x128xf32> to vector<64xf32>
    %90 = vector.shape_cast %89 : vector<64xf32> to vector<64x1xf32>
    %cst_51 = arith.constant 3.125000e-02 : f32
    %91 = vector.broadcast %cst_51 : f32 to vector<64x1xf32>
    %92 = arith.mulf %87, %91 : vector<64x1xf32>
    %cst_52 = arith.constant 3.125000e-02 : f32
    %93 = vector.broadcast %cst_52 : f32 to vector<64x1xf32>
    %94 = arith.mulf %90, %93 : vector<64x1xf32>
    %95 = arith.mulf %92, %92 : vector<64x1xf32>
    %96 = arith.subf %94, %95 : vector<64x1xf32>
    %cst_53 = arith.constant 0.000000e+00 : f32
    %97 = vector.broadcast %cst_53 : f32 to vector<64x1xf32>
    %98 = arith.maximumf %96, %97 : vector<64x1xf32>
    %99 = vector.broadcast %92 : vector<64x1xf32> to vector<64x128xf32>
    %100 = arith.subf %83, %99 : vector<64x128xf32>
    %cst_54 = arith.constant 9.99999974E-6 : f32
    %101 = vector.broadcast %cst_54 : f32 to vector<64x1xf32>
    %102 = arith.addf %98, %101 : vector<64x1xf32>
    %103 = math.rsqrt %102 : vector<64x1xf32>
    %104 = vector.broadcast %103 : vector<64x1xf32> to vector<64x128xf32>
    %105 = arith.mulf %100, %104 : vector<64x128xf32>
    %106 = vector.broadcast %84 : vector<1x128xf32> to vector<64x128xf32>
    %107 = arith.mulf %105, %106 : vector<64x128xf32>
    %108 = vector.broadcast %85 : vector<1x128xf32> to vector<64x128xf32>
    %109 = arith.addf %107, %108 : vector<64x128xf32>
    %cst_55 = arith.constant 0.000000e+00 : f32
    %110 = vector.broadcast %cst_55 : f32 to vector<64x128xf32>
    %111 = arith.maximumf %109, %110 : vector<64x128xf32>
    %c0_56 = arith.constant 0 : index
    %c0_57 = arith.constant 0 : index
    %112 = vector.load %arg17[%c0_56, %c0_57] : memref<128x128xbf16, #tpu.memory_space<vmem>>, vector<128x128xbf16>
    %c0_58 = arith.constant 0 : index
    %c0_59 = arith.constant 0 : index
    %113 = vector.load %arg18[%c0_58, %c0_59] : memref<1x128xf32, #tpu.memory_space<vmem>>, vector<1x128xf32>
    %114 = arith.truncf %111 : vector<64x128xf32> to vector<64x128xbf16>
    %cst_60 = arith.constant dense<0.000000e+00> : vector<64x128xf32>
    %115 = tpu.matmul %114, %112, %cst_60 {dimension_numbers = #tpu.dot_dimension_numbers<[1], [0], [0], [1], [0, 0, 1, 1], [], []>} : vector<64x128xbf16>, vector<128x128xbf16>, vector<64x128xf32> -> vector<64x128xf32>
    %116 = vector.broadcast %113 : vector<1x128xf32> to vector<64x128xf32>
    %117 = arith.addf %115, %116 : vector<64x128xf32>
    %c0_61 = arith.constant 0 : index
    %c0_62 = arith.constant 0 : index
    %118 = vector.load %arg19[%c0_61, %c0_62] : memref<64x128xf32, #tpu.memory_space<vmem>>, vector<64x128xf32>
    tpu.vector_store %arg19[%c0_61, %c0_62], %117 {strides = array<i32>} : memref<64x128xf32, #tpu.memory_space<vmem>>, vector<64x128xf32>,
    return
  }
  func.func @transform_0(%arg0: i32) -> (i32, i32) {
    %c0_i32 = arith.constant 0 : i32
    %c0_i32_0 = arith.constant 0 : i32
    return %arg0, %c0_i32 : i32, i32
  }
  func.func @transform_1(%arg0: i32) -> (i32, i32) {
    %c0_i32 = arith.constant 0 : i32
    %c0_i32_0 = arith.constant 0 : i32
    %c0_i32_1 = arith.constant 0 : i32
    return %c0_i32, %c0_i32_0 : i32, i32
  }
  func.func @transform_2(%arg0: i32) -> (i32, i32) {
    %c0_i32 = arith.constant 0 : i32
    %c0_i32_0 = arith.constant 0 : i32
    %c0_i32_1 = arith.constant 0 : i32
    return %c0_i32, %c0_i32_0 : i32, i32
  }
  func.func @transform_3(%arg0: i32) -> (i32, i32) {
    %c0_i32 = arith.constant 0 : i32
    %c0_i32_0 = arith.constant 0 : i32
    %c0_i32_1 = arith.constant 0 : i32
    return %c0_i32, %c0_i32_0 : i32, i32
  }
  func.func @transform_4(%arg0: i32) -> (i32, i32) {
    %c0_i32 = arith.constant 0 : i32
    %c0_i32_0 = arith.constant 0 : i32
    %c0_i32_1 = arith.constant 0 : i32
    return %c0_i32, %c0_i32_0 : i32, i32
  }
  func.func @transform_5(%arg0: i32) -> (i32, i32) {
    %c0_i32 = arith.constant 0 : i32
    %c0_i32_0 = arith.constant 0 : i32
    %c0_i32_1 = arith.constant 0 : i32
    return %c0_i32, %c0_i32_0 : i32, i32
  }
  func.func @transform_6(%arg0: i32) -> (i32, i32) {
    %c0_i32 = arith.constant 0 : i32
    %c0_i32_0 = arith.constant 0 : i32
    %c0_i32_1 = arith.constant 0 : i32
    return %c0_i32, %c0_i32_0 : i32, i32
  }
  func.func @transform_7(%arg0: i32) -> (i32, i32) {
    %c0_i32 = arith.constant 0 : i32
    %c0_i32_0 = arith.constant 0 : i32
    %c0_i32_1 = arith.constant 0 : i32
    return %c0_i32, %c0_i32_0 : i32, i32
  }
  func.func @transform_8(%arg0: i32) -> (i32, i32) {
    %c0_i32 = arith.constant 0 : i32
    %c0_i32_0 = arith.constant 0 : i32
    %c0_i32_1 = arith.constant 0 : i32
    return %c0_i32, %c0_i32_0 : i32, i32
  }
  func.func @transform_9(%arg0: i32) -> (i32, i32) {
    %c0_i32 = arith.constant 0 : i32
    %c0_i32_0 = arith.constant 0 : i32
    %c0_i32_1 = arith.constant 0 : i32
    return %c0_i32, %c0_i32_0 : i32, i32
  }
  func.func @transform_10(%arg0: i32) -> (i32, i32) {
    %c0_i32 = arith.constant 0 : i32
    %c0_i32_0 = arith.constant 0 : i32
    %c0_i32_1 = arith.constant 0 : i32
    return %c0_i32, %c0_i32_0 : i32, i32
  }
  func.func @transform_11(%arg0: i32) -> (i32, i32) {
    %c0_i32 = arith.constant 0 : i32
    %c0_i32_0 = arith.constant 0 : i32
    %c0_i32_1 = arith.constant 0 : i32
    return %c0_i32, %c0_i32_0 : i32, i32
  }
  func.func @transform_12(%arg0: i32) -> (i32, i32) {
    %c0_i32 = arith.constant 0 : i32
    %c0_i32_0 = arith.constant 0 : i32
    %c0_i32_1 = arith.constant 0 : i32
    return %c0_i32, %c0_i32_0 : i32, i32
  }
  func.func @transform_13(%arg0: i32) -> (i32, i32) {
    %c0_i32 = arith.constant 0 : i32
    %c0_i32_0 = arith.constant 0 : i32
    %c0_i32_1 = arith.constant 0 : i32
    return %c0_i32, %c0_i32_0 : i32, i32
  }
  func.func @transform_14(%arg0: i32) -> (i32, i32) {
    %c0_i32 = arith.constant 0 : i32
    %c0_i32_0 = arith.constant 0 : i32
    %c0_i32_1 = arith.constant 0 : i32
    return %c0_i32, %c0_i32_0 : i32, i32
  }
  func.func @transform_15(%arg0: i32) -> (i32, i32) {
    %c0_i32 = arith.constant 0 : i32
    %c0_i32_0 = arith.constant 0 : i32
    %c0_i32_1 = arith.constant 0 : i32
    return %c0_i32, %c0_i32_0 : i32, i32
  }
  func.func @transform_16(%arg0: i32) -> (i32, i32) {
    %c0_i32 = arith.constant 0 : i32
    %c0_i32_0 = arith.constant 0 : i32
    %c0_i32_1 = arith.constant 0 : i32
    return %c0_i32, %c0_i32_0 : i32, i32
  }
  func.func @transform_17(%arg0: i32) -> (i32, i32) {
    %c0_i32 = arith.constant 0 : i32
    %c0_i32_0 = arith.constant 0 : i32
    %c0_i32_1 = arith.constant 0 : i32
    return %c0_i32, %c0_i32_0 : i32, i32
  }
  func.func @transform_18(%arg0: i32) -> (i32, i32) {
    %c0_i32 = arith.constant 0 : i32
    %c0_i32_0 = arith.constant 0 : i32
    return %arg0, %c0_i32 : i32, i32
  }
}

</mosaic_0001>

<llo_original>
// kernel: tpu_custom_call.1
$region0: #{tpu_custom_call.1}
  #allocation0 [shape = 'u32[]', space=smem, size = 0x4, offset = 0x4, fixed_abs, tag = 'smem constant byte address 0x4 - core index']
  #allocation1 [shape = 'u32[144,128]{1,0:T(1,128)}', space=vmem, size = 0x12000, scoped, tag = 'internal scratch']
  %s0 = inlined_call_operand.vmem [shape: f32[128,8], index: 0, kind: input, shape index: {}]
  %s1 = inlined_call_operand.hbm [shape: f32[8,128], index: 1, kind: input, shape index: {}]
  %s2 = inlined_call_operand.hbm [shape: f32[8,128], index: 2, kind: input, shape index: {}]
  %s3 = inlined_call_operand.hbm [shape: f32[1,128], index: 3, kind: input, shape index: {}]
  %s4 = inlined_call_operand.vmem [shape: bf16[128,128], index: 4, kind: input, shape index: {}]
  %s5 = inlined_call_operand.hbm [shape: f32[1,128], index: 5, kind: input, shape index: {}]
  %s6 = inlined_call_operand.hbm [shape: f32[1,128], index: 6, kind: input, shape index: {}]
  %s7 = inlined_call_operand.hbm [shape: f32[1,128], index: 7, kind: input, shape index: {}]
  %s8 = inlined_call_operand.vmem [shape: bf16[128,128], index: 8, kind: input, shape index: {}]
  %s9 = inlined_call_operand.hbm [shape: f32[1,128], index: 9, kind: input, shape index: {}]
  %s10 = inlined_call_operand.hbm [shape: f32[1,128], index: 10, kind: input, shape index: {}]
  %s11 = inlined_call_operand.hbm [shape: f32[1,128], index: 11, kind: input, shape index: {}]
  %s12 = inlined_call_operand.hbm [shape: bf16[128,128], index: 12, kind: input, shape index: {}]
  %s13 = inlined_call_operand.hbm [shape: f32[1,128], index: 13, kind: input, shape index: {}]
  %s14 = inlined_call_operand.hbm [shape: f32[1,128], index: 14, kind: input, shape index: {}]
  %s15 = inlined_call_operand.hbm [shape: f32[1,128], index: 15, kind: input, shape index: {}]
  %s16 = inlined_call_operand.vmem [shape: bf16[128,128], index: 16, kind: input, shape index: {}]
  %s17 = inlined_call_operand.vmem [shape: f32[1,128], index: 17, kind: input, shape index: {}]
  %s18 = inlined_call_operand.hbm [shape: f32[128,128], index: 18, kind: output, shape index: {}]
  %s19 = sld [smem:[#allocation0]]
  $region157: #{tpu_custom_call.1} parent=0
    _
  %s21 = ssub.s32 1, %s19
  %s22 = scalar_select 0, %s21, %s19
  $region1: #{tpu_custom_call.1} parent=0
    #allocation2 [shape = 'u8[4096]{0}', space=vmem, size = 0x1000, scoped, tag = 'input window, operand 1, single buffered']
    #allocation3 [shape = 's32[2]{0}', space=sflag, size = 0x8, scoped, tag = 'scoped memory for tpu_custom_call.1']
    #allocation4 [shape = 's32[2]{0}', space=sflag, size = 0x8, scoped, tag = 'scoped memory for tpu_custom_call.1']
    #allocation5 [shape = 'u8[4096]{0}', space=vmem, size = 0x1000, scoped, tag = 'input window, operand 2, single buffered']
    #allocation6 [shape = 's32[1]{0}', space=sflag, size = 0x4, scoped, tag = 'scoped memory for tpu_custom_call.1']
    #allocation7 [shape = 'u8[512]{0}', space=vmem, size = 0x400, scoped, tag = 'input window, operand 3, single buffered']
    #allocation8 [shape = 'u8[512]{0}', space=vmem, size = 0x400, scoped, tag = 'input window, operand 5, single buffered']
    #allocation9 [shape = 's32[1]{0}', space=sflag, size = 0x4, scoped, tag = 'scoped memory for tpu_custom_call.1']
    #allocation10 [shape = 'u8[512]{0}', space=vmem, size = 0x400, scoped, tag = 'input window, operand 6, single buffered']
    #allocation11 [shape = 'u8[512]{0}', space=vmem, size = 0x400, scoped, tag = 'input window, operand 7, single buffered']
    #allocation12 [shape = 's32[1]{0}', space=sflag, size = 0x4, scoped, tag = 'scoped memory for tpu_custom_call.1']
    #allocation13 [shape = 'u8[512]{0}', space=vmem, size = 0x400, scoped, tag = 'input window, operand 9, single buffered']
    #allocation14 [shape = 'u8[512]{0}', space=vmem, size = 0x400, scoped, tag = 'input window, operand 10, single buffered']
    #allocation15 [shape = 's32[1]{0}', space=sflag, size = 0x4, scoped, tag = 'scoped memory for tpu_custom_call.1']
    #allocation16 [shape = 'u8[512]{0}', space=vmem, size = 0x400, scoped, tag = 'input window, operand 11, single buffered']
    #allocation17 [shape = 'u8[32768]{0}', space=vmem, size = 0x8000, scoped, tag = 'input window, operand 12, single buffered']
    #allocation18 [shape = 's32[1]{0}', space=sflag, size = 0x4, scoped, tag = 'scoped memory for tpu_custom_call.1']
    #allocation19 [shape = 'u8[512]{0}', space=vmem, size = 0x400, scoped, tag = 'input window, operand 13, single buffered']
    #allocation20 [shape = 'u8[512]{0}', space=vmem, size = 0x400, scoped, tag = 'input window, operand 14, single buffered']
    #allocation21 [shape = 's32[1]{0}', space=sflag, size = 0x4, scoped, tag = 'scoped memory for tpu_custom_call.1']
    #allocation22 [shape = 'u8[512]{0}', space=vmem, size = 0x400, scoped, tag = 'input window, operand 15, single buffered']
    #allocation23 [shape = 'u8[65536]{0}', space=vmem, size = 0x10000, scoped, tag = 'output window, operand 0']
    %23 = vsyncpa [#allocation3], 0
    %24 = vsyncpa [#allocation6], 0
    %25 = vsyncpa [#allocation9], 0
    %26 = vsyncpa [#allocation12], 0
    %27 = vsyncpa [#allocation15], 0
    %28 = vsyncpa [#allocation18], 0
    %29 = vsyncpa [#allocation21], 0
    %30 = vsyncpa [#allocation4], 0
    %s31 = scalar_lea.sflag [#allocation4], 1
    %32 = vsyncpa %s31, 0
    loop: start=0, step=1, limit=4
    $region2: #{tpu_custom_call.1} parent=1 // loop_pre_header
      _
    $region3: #{tpu_custom_call.1} parent=1 // loop_header
      %s34 = sphi 0, %s38
      %p35 = scmp.ge.s32.totalorder %s34, 4
      %s44 = sphi 0, %s46
      %s47 = sphi 0, %s44
      %s48 = sphi 0, %s47
      %s64 = sphi 0, %s48
      %s68 = sphi 0, %s68
      %s70 = sphi 0, %s68
      %s71 = sphi 0, %s70
      %s85 = sphi 0, %s71
      %s89 = sphi 0, %s89
      %s91 = sphi 0, %s89
      %s92 = sphi 0, %s91
      %s106 = sphi 0, %s92
      %s110 = sphi 0, %s110
      %s112 = sphi 0, %s110
      %s113 = sphi 0, %s112
      %s127 = sphi 0, %s113
      %s131 = sphi 0, %s131
      %s133 = sphi 0, %s131
      %s134 = sphi 0, %s133
      %s148 = sphi 0, %s134
      %s152 = sphi 0, %s152
      %s154 = sphi 0, %s152
      %s155 = sphi 0, %s154
      %s169 = sphi 0, %s155
      %s173 = sphi 0, %s173
      %s175 = sphi 0, %s173
      %s176 = sphi 0, %s175
      %s190 = sphi 0, %s176
      %s194 = sphi 0, %s194
      %s196 = sphi 0, %s194
      %s197 = sphi 0, %s196
      %s211 = sphi 0, %s197
      %s215 = sphi 0, %s215
      %s217 = sphi 0, %s215
      %s218 = sphi 0, %s217
      %s232 = sphi 0, %s218
      %s236 = sphi 0, %s236
      %s238 = sphi 0, %s236
      %s239 = sphi 0, %s238
      %s253 = sphi 0, %s239
      %s257 = sphi 0, %s257
      %s259 = sphi 0, %s257
      %s260 = sphi 0, %s259
      %s274 = sphi 0, %s260
      %s278 = sphi 0, %s278
      %s280 = sphi 0, %s278
      %s281 = sphi 0, %s280
      %s295 = sphi 0, %s281
      %s299 = sphi 0, %s299
      %s301 = sphi 0, %s299
      %s302 = sphi 0, %s301
      %s316 = sphi 0, %s302
      %s320 = sphi 0, %s320
      %s322 = sphi 0, %s320
      %s323 = sphi 0, %s322
      %s337 = sphi 0, %s323
      %s341 = sphi 0, %s341
      %s343 = sphi 0, %s341
      %s344 = sphi 0, %s343
      %s358 = sphi 0, %s344
      %s362 = sphi 0, %s362
      %s364 = sphi 0, %s362
      %s365 = sphi 0, %s364
      %s379 = sphi 0, %s365
      %s383 = sphi 0, %s383
      %s385 = sphi 0, %s383
      %s386 = sphi 0, %s385
      %s400 = sphi 0, %s386
      %s404 = sphi 0, %s404
      %s406 = sphi 0, %s404
      %s407 = sphi 0, %s406
      %s421 = sphi 0, %s407
      %s427 = sphi 0, %s429
      %s430 = sphi 0, %s427
      %s431 = sphi 0, %s430
      %s447 = sphi 0, %s431
    $region4: #{tpu_custom_call.1} parent=1 // loop_header_branch
      %37 = sbr.rel (%p35) target = $region8
    $region5: #{tpu_custom_call.1} parent=1 // loop_body
      %s39 = ssub.s32 %s34, 1
      %s40 = ssub.s32 %s34, 2
      %s41 = sadd.s32 %s34, 1
      %s42 = ssub.s32 %s34, %s41
      %p43 = scmp.eq.s32.totalorder %s42, 0
      %s45 = sadd.s32 %s44, 1
      %s46 = scalar_select %p43, %s44, %s45
      %p49 = pneg %p43
      %p50 = scmp.eq.s32.totalorder %s34, 1
      %p51 = por %p49, %p50
      %p52 = scmp.ne.s32.totalorder %s44, %s47
      %p53 = scmp.eq.s32.totalorder %s34, 0
      %p54 = por %p52, %p53
      %p55 = scmp.ne.s32.totalorder %s44, %s47
      %p56 = scmp.eq.s32.totalorder %s39, 1
      %p57 = por %p55, %p56
      %p58 = scmp.ne.s32.totalorder %s47, %s48
      %p59 = scmp.eq.s32.totalorder %s39, 0
      %p60 = por %p58, %p59
      %p61 = scmp.ne.s32.totalorder %s47, %s48
      %p62 = scmp.eq.s32.totalorder %s40, 1
      %p63 = por %p61, %p62
      %p65 = scmp.ne.s32.totalorder %s48, %s64
      %p66 = scmp.eq.s32.totalorder %s40, 0
      %p67 = por %p65, %p66
      %s69 = sadd.s32 %s68, 1
      %p72 = scmp.eq.s32.totalorder %s34, 1
      %p73 = scmp.ne.s32.totalorder %s68, %s70
      %p74 = scmp.eq.s32.totalorder %s34, 0
      %p75 = por %p73, %p74
      %p76 = scmp.ne.s32.totalorder %s68, %s70
      %p77 = scmp.eq.s32.totalorder %s39, 1
      %p78 = por %p76, %p77
      %p79 = scmp.ne.s32.totalorder %s70, %s71
      %p80 = scmp.eq.s32.totalorder %s39, 0
      %p81 = por %p79, %p80
      %p82 = scmp.ne.s32.totalorder %s70, %s71
      %p83 = scmp.eq.s32.totalorder %s40, 1
      %p84 = por %p82, %p83
      %p86 = scmp.ne.s32.totalorder %s71, %s85
      %p87 = scmp.eq.s32.totalorder %s40, 0
      %p88 = por %p86, %p87
      %s90 = sadd.s32 %s89, 1
      %p93 = scmp.eq.s32.totalorder %s34, 1
      %p94 = scmp.ne.s32.totalorder %s89, %s91
      %p95 = scmp.eq.s32.totalorder %s34, 0
      %p96 = por %p94, %p95
      %p97 = scmp.ne.s32.totalorder %s89, %s91
      %p98 = scmp.eq.s32.totalorder %s39, 1
      %p99 = por %p97, %p98
      %p100 = scmp.ne.s32.totalorder %s91, %s92
      %p101 = scmp.eq.s32.totalorder %s39, 0
      %p102 = por %p100, %p101
      %p103 = scmp.ne.s32.totalorder %s91, %s92
      %p104 = scmp.eq.s32.totalorder %s40, 1
      %p105 = por %p103, %p104
      %p107 = scmp.ne.s32.totalorder %s92, %s106
      %p108 = scmp.eq.s32.totalorder %s40, 0
      %p109 = por %p107, %p108
      %s111 = sadd.s32 %s110, 1
      %p114 = scmp.eq.s32.totalorder %s34, 1
      %p115 = scmp.ne.s32.totalorder %s110, %s112
      %p116 = scmp.eq.s32.totalorder %s34, 0
      %p117 = por %p115, %p116
      %p118 = scmp.ne.s32.totalorder %s110, %s112
      %p119 = scmp.eq.s32.totalorder %s39, 1
      %p120 = por %p118, %p119
      %p121 = scmp.ne.s32.totalorder %s112, %s113
      %p122 = scmp.eq.s32.totalorder %s39, 0
      %p123 = por %p121, %p122
      %p124 = scmp.ne.s32.totalorder %s112, %s113
      %p125 = scmp.eq.s32.totalorder %s40, 1
      %p126 = por %p124, %p125
      %p128 = scmp.ne.s32.totalorder %s113, %s127
      %p129 = scmp.eq.s32.totalorder %s40, 0
      %p130 = por %p128, %p129
      %s132 = sadd.s32 %s131, 1
      %p135 = scmp.eq.s32.totalorder %s34, 1
      %p136 = scmp.ne.s32.totalorder %s131, %s133
      %p137 = scmp.eq.s32.totalorder %s34, 0
      %p138 = por %p136, %p137
      %p139 = scmp.ne.s32.totalorder %s131, %s133
      %p140 = scmp.eq.s32.totalorder %s39, 1
      %p141 = por %p139, %p140
      %p142 = scmp.ne.s32.totalorder %s133, %s134
      %p143 = scmp.eq.s32.totalorder %s39, 0
      %p144 = por %p142, %p143
      %p145 = scmp.ne.s32.totalorder %s133, %s134
      %p146 = scmp.eq.s32.totalorder %s40, 1
      %p147 = por %p145, %p146
      %p149 = scmp.ne.s32.totalorder %s134, %s148
      %p150 = scmp.eq.s32.totalorder %s40, 0
      %p151 = por %p149, %p150
      %s153 = sadd.s32 %s152, 1
      %p156 = scmp.eq.s32.totalorder %s34, 1
      %p157 = scmp.ne.s32.totalorder %s152, %s154
      %p158 = scmp.eq.s32.totalorder %s34, 0
      %p159 = por %p157, %p158
      %p160 = scmp.ne.s32.totalorder %s152, %s154
      %p161 = scmp.eq.s32.totalorder %s39, 1
      %p162 = por %p160, %p161
      %p163 = scmp.ne.s32.totalorder %s154, %s155
      %p164 = scmp.eq.s32.totalorder %s39, 0
      %p165 = por %p163, %p164
      %p166 = scmp.ne.s32.totalorder %s154, %s155
      %p167 = scmp.eq.s32.totalorder %s40, 1
      %p168 = por %p166, %p167
      %p170 = scmp.ne.s32.totalorder %s155, %s169
      %p171 = scmp.eq.s32.totalorder %s40, 0
      %p172 = por %p170, %p171
      %s174 = sadd.s32 %s173, 1
      %p177 = scmp.eq.s32.totalorder %s34, 1
      %p178 = scmp.ne.s32.totalorder %s173, %s175
      %p179 = scmp.eq.s32.totalorder %s34, 0
      %p180 = por %p178, %p179
      %p181 = scmp.ne.s32.totalorder %s173, %s175
      %p182 = scmp.eq.s32.totalorder %s39, 1
      %p183 = por %p181, %p182
      %p184 = scmp.ne.s32.totalorder %s175, %s176
      %p185 = scmp.eq.s32.totalorder %s39, 0
      %p186 = por %p184, %p185
      %p187 = scmp.ne.s32.totalorder %s175, %s176
      %p188 = scmp.eq.s32.totalorder %s40, 1
      %p189 = por %p187, %p188
      %p191 = scmp.ne.s32.totalorder %s176, %s190
      %p192 = scmp.eq.s32.totalorder %s40, 0
      %p193 = por %p191, %p192
      %s195 = sadd.s32 %s194, 1
      %p198 = scmp.eq.s32.totalorder %s34, 1
      %p199 = scmp.ne.s32.totalorder %s194, %s196
      %p200 = scmp.eq.s32.totalorder %s34, 0
      %p201 = por %p199, %p200
      %p202 = scmp.ne.s32.totalorder %s194, %s196
      %p203 = scmp.eq.s32.totalorder %s39, 1
      %p204 = por %p202, %p203
      %p205 = scmp.ne.s32.totalorder %s196, %s197
      %p206 = scmp.eq.s32.totalorder %s39, 0
      %p207 = por %p205, %p206
      %p208 = scmp.ne.s32.totalorder %s196, %s197
      %p209 = scmp.eq.s32.totalorder %s40, 1
      %p210 = por %p208, %p209
      %p212 = scmp.ne.s32.totalorder %s197, %s211
      %p213 = scmp.eq.s32.totalorder %s40, 0
      %p214 = por %p212, %p213
      %s216 = sadd.s32 %s215, 1
      %p219 = scmp.eq.s32.totalorder %s34, 1
      %p220 = scmp.ne.s32.totalorder %s215, %s217
      %p221 = scmp.eq.s32.totalorder %s34, 0
      %p222 = por %p220, %p221
      %p223 = scmp.ne.s32.totalorder %s215, %s217
      %p224 = scmp.eq.s32.totalorder %s39, 1
      %p225 = por %p223, %p224
      %p226 = scmp.ne.s32.totalorder %s217, %s218
      %p227 = scmp.eq.s32.totalorder %s39, 0
      %p228 = por %p226, %p227
      %p229 = scmp.ne.s32.totalorder %s217, %s218
      %p230 = scmp.eq.s32.totalorder %s40, 1
      %p231 = por %p229, %p230
      %p233 = scmp.ne.s32.totalorder %s218, %s232
      %p234 = scmp.eq.s32.totalorder %s40, 0
      %p235 = por %p233, %p234
      %s237 = sadd.s32 %s236, 1
      %p240 = scmp.eq.s32.totalorder %s34, 1
      %p241 = scmp.ne.s32.totalorder %s236, %s238
      %p242 = scmp.eq.s32.totalorder %s34, 0
      %p243 = por %p241, %p242
      %p244 = scmp.ne.s32.totalorder %s236, %s238
      %p245 = scmp.eq.s32.totalorder %s39, 1
      %p246 = por %p244, %p245
      %p247 = scmp.ne.s32.totalorder %s238, %s239
      %p248 = scmp.eq.s32.totalorder %s39, 0
      %p249 = por %p247, %p248
      %p250 = scmp.ne.s32.totalorder %s238, %s239
      %p251 = scmp.eq.s32.totalorder %s40, 1
      %p252 = por %p250, %p251
      %p254 = scmp.ne.s32.totalorder %s239, %s253
      %p255 = scmp.eq.s32.totalorder %s40, 0
      %p256 = por %p254, %p255
      %s258 = sadd.s32 %s257, 1
      %p261 = scmp.eq.s32.totalorder %s34, 1
      %p262 = scmp.ne.s32.totalorder %s257, %s259
      %p263 = scmp.eq.s32.totalorder %s34, 0
      %p264 = por %p262, %p263
      %p265 = scmp.ne.s32.totalorder %s257, %s259
      %p266 = scmp.eq.s32.totalorder %s39, 1
      %p267 = por %p265, %p266
      %p268 = scmp.ne.s32.totalorder %s259, %s260
      %p269 = scmp.eq.s32.totalorder %s39, 0
      %p270 = por %p268, %p269
      %p271 = scmp.ne.s32.totalorder %s259, %s260
      %p272 = scmp.eq.s32.totalorder %s40, 1
      %p273 = por %p271, %p272
      %p275 = scmp.ne.s32.totalorder %s260, %s274
      %p276 = scmp.eq.s32.totalorder %s40, 0
      %p277 = por %p275, %p276
      %s279 = sadd.s32 %s278, 1
      %p282 = scmp.eq.s32.totalorder %s34, 1
      %p283 = scmp.ne.s32.totalorder %s278, %s280
      %p284 = scmp.eq.s32.totalorder %s34, 0
      %p285 = por %p283, %p284
      %p286 = scmp.ne.s32.totalorder %s278, %s280
      %p287 = scmp.eq.s32.totalorder %s39, 1
      %p288 = por %p286, %p287
      %p289 = scmp.ne.s32.totalorder %s280, %s281
      %p290 = scmp.eq.s32.totalorder %s39, 0
      %p291 = por %p289, %p290
      %p292 = scmp.ne.s32.totalorder %s280, %s281
      %p293 = scmp.eq.s32.totalorder %s40, 1
      %p294 = por %p292, %p293
      %p296 = scmp.ne.s32.totalorder %s281, %s295
      %p297 = scmp.eq.s32.totalorder %s40, 0
      %p298 = por %p296, %p297
      %s300 = sadd.s32 %s299, 1
      %p303 = scmp.eq.s32.totalorder %s34, 1
      %p304 = scmp.ne.s32.totalorder %s299, %s301
      %p305 = scmp.eq.s32.totalorder %s34, 0
      %p306 = por %p304, %p305
      %p307 = scmp.ne.s32.totalorder %s299, %s301
      %p308 = scmp.eq.s32.totalorder %s39, 1
      %p309 = por %p307, %p308
      %p310 = scmp.ne.s32.totalorder %s301, %s302
      %p311 = scmp.eq.s32.totalorder %s39, 0
      %p312 = por %p310, %p311
      %p313 = scmp.ne.s32.totalorder %s301, %s302
      %p314 = scmp.eq.s32.totalorder %s40, 1
      %p315 = por %p313, %p314
      %p317 = scmp.ne.s32.totalorder %s302, %s316
      %p318 = scmp.eq.s32.totalorder %s40, 0
      %p319 = por %p317, %p318
      %s321 = sadd.s32 %s320, 1
      %p324 = scmp.eq.s32.totalorder %s34, 1
      %p325 = scmp.ne.s32.totalorder %s320, %s322
      %p326 = scmp.eq.s32.totalorder %s34, 0
      %p327 = por %p325, %p326
      %p328 = scmp.ne.s32.totalorder %s320, %s322
      %p329 = scmp.eq.s32.totalorder %s39, 1
      %p330 = por %p328, %p329
      %p331 = scmp.ne.s32.totalorder %s322, %s323
      %p332 = scmp.eq.s32.totalorder %s39, 0
      %p333 = por %p331, %p332
      %p334 = scmp.ne.s32.totalorder %s322, %s323
      %p335 = scmp.eq.s32.totalorder %s40, 1
      %p336 = por %p334, %p335
      %p338 = scmp.ne.s32.totalorder %s323, %s337
      %p339 = scmp.eq.s32.totalorder %s40, 0
      %p340 = por %p338, %p339
      %s342 = sadd.s32 %s341, 1
      %p345 = scmp.eq.s32.totalorder %s34, 1
      %p346 = scmp.ne.s32.totalorder %s341, %s343
      %p347 = scmp.eq.s32.totalorder %s34, 0
      %p348 = por %p346, %p347
      %p349 = scmp.ne.s32.totalorder %s341, %s343
      %p350 = scmp.eq.s32.totalorder %s39, 1
      %p351 = por %p349, %p350
      %p352 = scmp.ne.s32.totalorder %s343, %s344
      %p353 = scmp.eq.s32.totalorder %s39, 0
      %p354 = por %p352, %p353
      %p355 = scmp.ne.s32.totalorder %s343, %s344
      %p356 = scmp.eq.s32.totalorder %s40, 1
      %p357 = por %p355, %p356
      %p359 = scmp.ne.s32.totalorder %s344, %s358
      %p360 = scmp.eq.s32.totalorder %s40, 0
      %p361 = por %p359, %p360
      %s363 = sadd.s32 %s362, 1
      %p366 = scmp.eq.s32.totalorder %s34, 1
      %p367 = scmp.ne.s32.totalorder %s362, %s364
      %p368 = scmp.eq.s32.totalorder %s34, 0
      %p369 = por %p367, %p368
      %p370 = scmp.ne.s32.totalorder %s362, %s364
      %p371 = scmp.eq.s32.totalorder %s39, 1
      %p372 = por %p370, %p371
      %p373 = scmp.ne.s32.totalorder %s364, %s365
      %p374 = scmp.eq.s32.totalorder %s39, 0
      %p375 = por %p373, %p374
      %p376 = scmp.ne.s32.totalorder %s364, %s365
      %p377 = scmp.eq.s32.totalorder %s40, 1
      %p378 = por %p376, %p377
      %p380 = scmp.ne.s32.totalorder %s365, %s379
      %p381 = scmp.eq.s32.totalorder %s40, 0
      %p382 = por %p380, %p381
      %s384 = sadd.s32 %s383, 1
      %p387 = scmp.eq.s32.totalorder %s34, 1
      %p388 = scmp.ne.s32.totalorder %s383, %s385
      %p389 = scmp.eq.s32.totalorder %s34, 0
      %p390 = por %p388, %p389
      %p391 = scmp.ne.s32.totalorder %s383, %s385
      %p392 = scmp.eq.s32.totalorder %s39, 1
      %p393 = por %p391, %p392
      %p394 = scmp.ne.s32.totalorder %s385, %s386
      %p395 = scmp.eq.s32.totalorder %s39, 0
      %p396 = por %p394, %p395
      %p397 = scmp.ne.s32.totalorder %s385, %s386
      %p398 = scmp.eq.s32.totalorder %s40, 1
      %p399 = por %p397, %p398
      %p401 = scmp.ne.s32.totalorder %s386, %s400
      %p402 = scmp.eq.s32.totalorder %s40, 0
      %p403 = por %p401, %p402
      %s405 = sadd.s32 %s404, 1
      %p408 = scmp.eq.s32.totalorder %s34, 1
      %p409 = scmp.ne.s32.totalorder %s404, %s406
      %p410 = scmp.eq.s32.totalorder %s34, 0
      %p411 = por %p409, %p410
      %p412 = scmp.ne.s32.totalorder %s404, %s406
      %p413 = scmp.eq.s32.totalorder %s39, 1
      %p414 = por %p412, %p413
      %p415 = scmp.ne.s32.totalorder %s406, %s407
      %p416 = scmp.eq.s32.totalorder %s39, 0
      %p417 = por %p415, %p416
      %p418 = scmp.ne.s32.totalorder %s406, %s407
      %p419 = scmp.eq.s32.totalorder %s40, 1
      %p420 = por %p418, %p419
      %p422 = scmp.ne.s32.totalorder %s407, %s421
      %p423 = scmp.eq.s32.totalorder %s40, 0
      %p424 = por %p422, %p423
      %s425 = ssub.s32 %s34, %s41
      %p426 = scmp.eq.s32.totalorder %s425, 0
      %s428 = sadd.s32 %s427, 1
      %s429 = scalar_select %p426, %s427, %s428
      %p432 = pneg %p426
      %p433 = scmp.eq.s32.totalorder %s34, 1
      %p434 = por %p432, %p433
      %p435 = scmp.ne.s32.totalorder %s427, %s430
      %p436 = scmp.eq.s32.totalorder %s34, 0
      %p437 = por %p435, %p436
      %p438 = scmp.ne.s32.totalorder %s427, %s430
      %p439 = scmp.eq.s32.totalorder %s39, 1
      %p440 = por %p438, %p439
      %p441 = scmp.ne.s32.totalorder %s430, %s431
      %p442 = scmp.eq.s32.totalorder %s39, 0
      %p443 = por %p441, %p442
      %p444 = scmp.ne.s32.totalorder %s430, %s431
      %p445 = scmp.eq.s32.totalorder %s40, 1
      %p446 = por %p444, %p445
      %p448 = scmp.ne.s32.totalorder %s431, %s447
      %p449 = scmp.eq.s32.totalorder %s40, 0
      %p450 = por %p448, %p449
      %p451 = scmp.le.s32.totalorder 1, %s34
      %p452 = scmp.lt.s32.totalorder %s34, 3
      %p453 = pnand %p451, %p452
      %p454 = pneg %p453
      // Predicated region
      $region9: #{tpu_custom_call.1} parent=5 // pred_check
        _
      $region10: #{tpu_custom_call.1} parent=5 // pred_check_branch
        %456 = sbr.rel (%p453) target = $region12
      $region11: #{tpu_custom_call.1} parent=5 // pred_region
        %s457 = ssub.s32 %s34, 1
        // Predicated region
        $region13: #{tpu_custom_call.1} parent=11 // pred_check
          %p458 = pneg %p81
        $region14: #{tpu_custom_call.1} parent=11 // pred_check_branch
          %460 = sbr.rel (%p458) target = $region16
        $region15: #{tpu_custom_call.1} parent=11 // pred_region
          %s462 = ssub.s32 128, 128
          %463 = vsyncadd [#allocation3], %s462
          %s465 = sshll.u32 [#allocation2], 4
          %s466 = int_to_ptr.vmem [resolvable:$true] %s465
          %468 = dma.hbm_to_vmem [thread:$0]  %s1, 128, %s466, [#allocation3]
        $region16: #{tpu_custom_call.1} parent=11 // pred_fallthru
          _
        // Predicated region
        $region17: #{tpu_custom_call.1} parent=11 // pred_check
          %p469 = pneg %p102
        $region18: #{tpu_custom_call.1} parent=11 // pred_check_branch
          %471 = sbr.rel (%p469) target = $region20
        $region19: #{tpu_custom_call.1} parent=11 // pred_region
          %s473 = ssub.s32 128, 128
          %474 = vsyncadd [#allocation6], %s473
          %s476 = sshll.u32 [#allocation5], 4
          %s477 = int_to_ptr.vmem [resolvable:$true] %s476
          %479 = dma.hbm_to_vmem [thread:$0]  %s2, 128, %s477, [#allocation6]
        $region20: #{tpu_custom_call.1} parent=11 // pred_fallthru
          _
        // Predicated region
        $region21: #{tpu_custom_call.1} parent=11 // pred_check
          %p480 = pneg %p123
        $region22: #{tpu_custom_call.1} parent=11 // pred_check_branch
          %482 = sbr.rel (%p480) target = $region24
        $region23: #{tpu_custom_call.1} parent=11 // pred_region
          %s484 = ssub.s32 16, 16
          %485 = vsyncadd [#allocation6], %s484
          %s487 = sshll.u32 [#allocation7], 4
          %s488 = int_to_ptr.vmem [resolvable:$true] %s487
          %490 = dma.hbm_to_vmem [thread:$0]  %s3, 16, %s488, [#allocation6]
        $region24: #{tpu_custom_call.1} parent=11 // pred_fallthru
          _
        // Predicated region
        $region25: #{tpu_custom_call.1} parent=11 // pred_check
          %p491 = pneg %p144
        $region26: #{tpu_custom_call.1} parent=11 // pred_check_branch
          %493 = sbr.rel (%p491) target = $region28
        $region27: #{tpu_custom_call.1} parent=11 // pred_region
          _
        $region28: #{tpu_custom_call.1} parent=11 // pred_fallthru
          _
        // Predicated region
        $region29: #{tpu_custom_call.1} parent=11 // pred_check
          %p494 = pneg %p165
        $region30: #{tpu_custom_call.1} parent=11 // pred_check_branch
          %496 = sbr.rel (%p494) target = $region32
        $region31: #{tpu_custom_call.1} parent=11 // pred_region
          %s498 = ssub.s32 16, 16
          %499 = vsyncadd [#allocation9], %s498
          %s501 = sshll.u32 [#allocation8], 4
          %s502 = int_to_ptr.vmem [resolvable:$true] %s501
          %504 = dma.hbm_to_vmem [thread:$0]  %s5, 16, %s502, [#allocation9]
        $region32: #{tpu_custom_call.1} parent=11 // pred_fallthru
          _
        // Predicated region
        $region33: #{tpu_custom_call.1} parent=11 // pred_check
          %p505 = pneg %p186
        $region34: #{tpu_custom_call.1} parent=11 // pred_check_branch
          %507 = sbr.rel (%p505) target = $region36
        $region35: #{tpu_custom_call.1} parent=11 // pred_region
          %s509 = ssub.s32 16, 16
          %510 = vsyncadd [#allocation9], %s509
          %s512 = sshll.u32 [#allocation10], 4
          %s513 = int_to_ptr.vmem [resolvable:$true] %s512
          %515 = dma.hbm_to_vmem [thread:$0]  %s6, 16, %s513, [#allocation9]
        $region36: #{tpu_custom_call.1} parent=11 // pred_fallthru
          _
        // Predicated region
        $region37: #{tpu_custom_call.1} parent=11 // pred_check
          %p516 = pneg %p207
        $region38: #{tpu_custom_call.1} parent=11 // pred_check_branch
          %518 = sbr.rel (%p516) target = $region40
        $region39: #{tpu_custom_call.1} parent=11 // pred_region
          %s520 = ssub.s32 16, 16
          %521 = vsyncadd [#allocation12], %s520
          %s523 = sshll.u32 [#allocation11], 4
          %s524 = int_to_ptr.vmem [resolvable:$true] %s523
          %526 = dma.hbm_to_vmem [thread:$0]  %s7, 16, %s524, [#allocation12]
        $region40: #{tpu_custom_call.1} parent=11 // pred_fallthru
          _
        // Predicated region
        $region41: #{tpu_custom_call.1} parent=11 // pred_check
          %p527 = pneg %p228
        $region42: #{tpu_custom_call.1} parent=11 // pred_check_branch
          %529 = sbr.rel (%p527) target = $region44
        $region43: #{tpu_custom_call.1} parent=11 // pred_region
          _
        $region44: #{tpu_custom_call.1} parent=11 // pred_fallthru
          _
        // Predicated region
        $region45: #{tpu_custom_call.1} parent=11 // pred_check
          %p530 = pneg %p249
        $region46: #{tpu_custom_call.1} parent=11 // pred_check_branch
          %532 = sbr.rel (%p530) target = $region48
        $region47: #{tpu_custom_call.1} parent=11 // pred_region
          %s534 = ssub.s32 16, 16
          %535 = vsyncadd [#allocation12], %s534
          %s537 = sshll.u32 [#allocation13], 4
          %s538 = int_to_ptr.vmem [resolvable:$true] %s537
          %540 = dma.hbm_to_vmem [thread:$0]  %s9, 16, %s538, [#allocation12]
        $region48: #{tpu_custom_call.1} parent=11 // pred_fallthru
          _
        // Predicated region
        $region49: #{tpu_custom_call.1} parent=11 // pred_check
          %p541 = pneg %p270
        $region50: #{tpu_custom_call.1} parent=11 // pred_check_branch
          %543 = sbr.rel (%p541) target = $region52
        $region51: #{tpu_custom_call.1} parent=11 // pred_region
          %s545 = ssub.s32 16, 16
          %546 = vsyncadd [#allocation15], %s545
          %s548 = sshll.u32 [#allocation14], 4
          %s549 = int_to_ptr.vmem [resolvable:$true] %s548
          %551 = dma.hbm_to_vmem [thread:$0]  %s10, 16, %s549, [#allocation15]
        $region52: #{tpu_custom_call.1} parent=11 // pred_fallthru
          _
        // Predicated region
        $region53: #{tpu_custom_call.1} parent=11 // pred_check
          %p552 = pneg %p291
        $region54: #{tpu_custom_call.1} parent=11 // pred_check_branch
          %554 = sbr.rel (%p552) target = $region56
        $region55: #{tpu_custom_call.1} parent=11 // pred_region
          %s556 = ssub.s32 16, 16
          %557 = vsyncadd [#allocation15], %s556
          %s559 = sshll.u32 [#allocation16], 4
          %s560 = int_to_ptr.vmem [resolvable:$true] %s559
          %562 = dma.hbm_to_vmem [thread:$0]  %s11, 16, %s560, [#allocation15]
        $region56: #{tpu_custom_call.1} parent=11 // pred_fallthru
          _
        // Predicated region
        $region57: #{tpu_custom_call.1} parent=11 // pred_check
          %p563 = pneg %p312
        $region58: #{tpu_custom_call.1} parent=11 // pred_check_branch
          %565 = sbr.rel (%p563) target = $region60
        $region59: #{tpu_custom_call.1} parent=11 // pred_region
          %s567 = ssub.s32 1024, 1024
          %568 = vsyncadd [#allocation18], %s567
          %s569 = sshll.u32 [#allocation17], 4
          %s570 = int_to_ptr.vmem [resolvable:$true] %s569
          %575 = dma.hbm_to_vmem [thread:$0]  %s12, 1024, %s570, [#allocation18], 64, 64, 4
        $region60: #{tpu_custom_call.1} parent=11 // pred_fallthru
          _
        // Predicated region
        $region61: #{tpu_custom_call.1} parent=11 // pred_check
          %p576 = pneg %p333
        $region62: #{tpu_custom_call.1} parent=11 // pred_check_branch
          %578 = sbr.rel (%p576) target = $region64
        $region63: #{tpu_custom_call.1} parent=11 // pred_region
          %s580 = ssub.s32 16, 16
          %581 = vsyncadd [#allocation18], %s580
          %s583 = sshll.u32 [#allocation19], 4
          %s584 = int_to_ptr.vmem [resolvable:$true] %s583
          %586 = dma.hbm_to_vmem [thread:$0]  %s13, 16, %s584, [#allocation18]
        $region64: #{tpu_custom_call.1} parent=11 // pred_fallthru
          _
        // Predicated region
        $region65: #{tpu_custom_call.1} parent=11 // pred_check
          %p587 = pneg %p354
        $region66: #{tpu_custom_call.1} parent=11 // pred_check_branch
          %589 = sbr.rel (%p587) target = $region68
        $region67: #{tpu_custom_call.1} parent=11 // pred_region
          %s591 = ssub.s32 16, 16
          %592 = vsyncadd [#allocation21], %s591
          %s594 = sshll.u32 [#allocation20], 4
          %s595 = int_to_ptr.vmem [resolvable:$true] %s594
          %597 = dma.hbm_to_vmem [thread:$0]  %s14, 16, %s595, [#allocation21]
        $region68: #{tpu_custom_call.1} parent=11 // pred_fallthru
          _
        // Predicated region
        $region69: #{tpu_custom_call.1} parent=11 // pred_check
          %p598 = pneg %p375
        $region70: #{tpu_custom_call.1} parent=11 // pred_check_branch
          %600 = sbr.rel (%p598) target = $region72
        $region71: #{tpu_custom_call.1} parent=11 // pred_region
          %s602 = ssub.s32 16, 16
          %603 = vsyncadd [#allocation21], %s602
          %s605 = sshll.u32 [#allocation22], 4
          %s606 = int_to_ptr.vmem [resolvable:$true] %s605
          %608 = dma.hbm_to_vmem [thread:$0]  %s15, 16, %s606, [#allocation21]
        $region72: #{tpu_custom_call.1} parent=11 // pred_fallthru
          _
        // Predicated region
        $region73: #{tpu_custom_call.1} parent=11 // pred_check
          %p609 = pneg %p396
        $region74: #{tpu_custom_call.1} parent=11 // pred_check_branch
          %611 = sbr.rel (%p609) target = $region76
        $region75: #{tpu_custom_call.1} parent=11 // pred_region
          _
        $region76: #{tpu_custom_call.1} parent=11 // pred_fallthru
          _
        // Predicated region
        $region77: #{tpu_custom_call.1} parent=11 // pred_check
          %p612 = pneg %p417
        $region78: #{tpu_custom_call.1} parent=11 // pred_check_branch
          %614 = sbr.rel (%p612) target = $region80
        $region79: #{tpu_custom_call.1} parent=11 // pred_region
          _
        $region80: #{tpu_custom_call.1} parent=11 // pred_fallthru
          _
      $region12: #{tpu_custom_call.1} parent=5 // pred_fallthru
        _
      %p615 = scmp.lt.s32.totalorder %s34, 2
      // Predicated region
      $region81: #{tpu_custom_call.1} parent=5 // pred_check
        %p616 = pneg %p615
      $region82: #{tpu_custom_call.1} parent=5 // pred_check_branch
        %618 = sbr.rel (%p616) target = $region84
      $region83: #{tpu_custom_call.1} parent=5 // pred_region
        // Predicated region
        $region85: #{tpu_custom_call.1} parent=83 // pred_check
          %p619 = pneg %p54
        $region86: #{tpu_custom_call.1} parent=83 // pred_check_branch
          %621 = sbr.rel (%p619) target = $region88
        $region87: #{tpu_custom_call.1} parent=83 // pred_region
          %s622 = smul.u32 8, %s34
          %p623 = scmp.lt.s32.totalorder %s622, 15
          %s624 = scalar_select %p623, %s622, 15
          %s625 = smul.addr %s624, 8
          %s626 = scalar_lea.vmem %s0, %s625
          %s627 = smul.u32 8, %s34
        $region88: #{tpu_custom_call.1} parent=83 // pred_fallthru
          _
      $region84: #{tpu_custom_call.1} parent=5 // pred_fallthru
        _
      %p628 = scmp.le.s32.totalorder 1, %s34
      %p629 = scmp.lt.s32.totalorder %s34, 3
      %p630 = pnand %p628, %p629
      %p631 = pneg %p630
      // Predicated region
      $region89: #{tpu_custom_call.1} parent=5 // pred_check
        _
      $region90: #{tpu_custom_call.1} parent=5 // pred_check_branch
        %633 = sbr.rel (%p630) target = $region92
      $region91: #{tpu_custom_call.1} parent=5 // pred_region
        %s634 = ssub.s32 %s34, 1
        // Predicated region
        $region93: #{tpu_custom_call.1} parent=91 // pred_check
          %p635 = pneg %p81
        $region94: #{tpu_custom_call.1} parent=91 // pred_check_branch
          %637 = sbr.rel (%p635) target = $region96
        $region95: #{tpu_custom_call.1} parent=91 // pred_region
          %638 = dma.done [#allocation3], 128
        $region96: #{tpu_custom_call.1} parent=91 // pred_fallthru
          _
        // Predicated region
        $region97: #{tpu_custom_call.1} parent=91 // pred_check
          %p639 = pneg %p102
        $region98: #{tpu_custom_call.1} parent=91 // pred_check_branch
          %641 = sbr.rel (%p639) target = $region100
        $region99: #{tpu_custom_call.1} parent=91 // pred_region
          %642 = dma.done [#allocation6], 128
        $region100: #{tpu_custom_call.1} parent=91 // pred_fallthru
          _
        // Predicated region
        $region101: #{tpu_custom_call.1} parent=91 // pred_check
          %p643 = pneg %p123
        $region102: #{tpu_custom_call.1} parent=91 // pred_check_branch
          %645 = sbr.rel (%p643) target = $region104
        $region103: #{tpu_custom_call.1} parent=91 // pred_region
          %646 = dma.done [#allocation6], 16
        $region104: #{tpu_custom_call.1} parent=91 // pred_fallthru
          _
        // Predicated region
        $region105: #{tpu_custom_call.1} parent=91 // pred_check
          %p647 = pneg %p165
        $region106: #{tpu_custom_call.1} parent=91 // pred_check_branch
          %649 = sbr.rel (%p647) target = $region108
        $region107: #{tpu_custom_call.1} parent=91 // pred_region
          %650 = dma.done [#allocation9], 16
        $region108: #{tpu_custom_call.1} parent=91 // pred_fallthru
          _
        // Predicated region
        $region109: #{tpu_custom_call.1} parent=91 // pred_check
          %p651 = pneg %p186
        $region110: #{tpu_custom_call.1} parent=91 // pred_check_branch
          %653 = sbr.rel (%p651) target = $region112
        $region111: #{tpu_custom_call.1} parent=91 // pred_region
          %654 = dma.done [#allocation9], 16
        $region112: #{tpu_custom_call.1} parent=91 // pred_fallthru
          _
        // Predicated region
        $region113: #{tpu_custom_call.1} parent=91 // pred_check
          %p655 = pneg %p207
        $region114: #{tpu_custom_call.1} parent=91 // pred_check_branch
          %657 = sbr.rel (%p655) target = $region116
        $region115: #{tpu_custom_call.1} parent=91 // pred_region
          %658 = dma.done [#allocation12], 16
        $region116: #{tpu_custom_call.1} parent=91 // pred_fallthru
          _
        // Predicated region
        $region117: #{tpu_custom_call.1} parent=91 // pred_check
          %p659 = pneg %p249
        $region118: #{tpu_custom_call.1} parent=91 // pred_check_branch
          %661 = sbr.rel (%p659) target = $region120
        $region119: #{tpu_custom_call.1} parent=91 // pred_region
          %662 = dma.done [#allocation12], 16
        $region120: #{tpu_custom_call.1} parent=91 // pred_fallthru
          _
        // Predicated region
        $region121: #{tpu_custom_call.1} parent=91 // pred_check
          %p663 = pneg %p270
        $region122: #{tpu_custom_call.1} parent=91 // pred_check_branch
          %665 = sbr.rel (%p663) target = $region124
        $region123: #{tpu_custom_call.1} parent=91 // pred_region
          %666 = dma.done [#allocation15], 16
        $region124: #{tpu_custom_call.1} parent=91 // pred_fallthru
          _
        // Predicated region
        $region125: #{tpu_custom_call.1} parent=91 // pred_check
          %p667 = pneg %p291
        $region126: #{tpu_custom_call.1} parent=91 // pred_check_branch
          %669 = sbr.rel (%p667) target = $region128
        $region127: #{tpu_custom_call.1} parent=91 // pred_region
          %670 = dma.done [#allocation15], 16
        $region128: #{tpu_custom_call.1} parent=91 // pred_fallthru
          _
        // Predicated region
        $region129: #{tpu_custom_call.1} parent=91 // pred_check
          %p671 = pneg %p312
        $region130: #{tpu_custom_call.1} parent=91 // pred_check_branch
          %673 = sbr.rel (%p671) target = $region132
        $region131: #{tpu_custom_call.1} parent=91 // pred_region
          %674 = dma.done [#allocation18], 1024
        $region132: #{tpu_custom_call.1} parent=91 // pred_fallthru
          _
        // Predicated region
        $region133: #{tpu_custom_call.1} parent=91 // pred_check
          %p675 = pneg %p333
        $region134: #{tpu_custom_call.1} parent=91 // pred_check_branch
          %677 = sbr.rel (%p675) target = $region136
        $region135: #{tpu_custom_call.1} parent=91 // pred_region
          %678 = dma.done [#allocation18], 16
        $region136: #{tpu_custom_call.1} parent=91 // pred_fallthru
          _
        // Predicated region
        $region137: #{tpu_custom_call.1} parent=91 // pred_check
          %p679 = pneg %p354
        $region138: #{tpu_custom_call.1} parent=91 // pred_check_branch
          %681 = sbr.rel (%p679) target = $region140
        $region139: #{tpu_custom_call.1} parent=91 // pred_region
          %682 = dma.done [#allocation21], 16
        $region140: #{tpu_custom_call.1} parent=91 // pred_fallthru
          _
        // Predicated region
        $region141: #{tpu_custom_call.1} parent=91 // pred_check
          %p683 = pneg %p375
        $region142: #{tpu_custom_call.1} parent=91 // pred_check_branch
          %685 = sbr.rel (%p683) target = $region144
        $region143: #{tpu_custom_call.1} parent=91 // pred_region
          %686 = dma.done [#allocation21], 16
        $region144: #{tpu_custom_call.1} parent=91 // pred_fallthru
          _
        %s687 = smul.u32 8, %s39
        %p688 = scmp.lt.s32.totalorder %s687, 15
        %s689 = scalar_select %p688, %s687, 15
        %s690 = smul.addr %s689, 8
        %s691 = scalar_lea.vmem %s0, %s690
        %p692 = pneg %p60
        %p693 = pneg %p57
        %p694 = pneg %p81
        %p695 = pneg %p78
        %p696 = pneg %p102
        %p697 = pneg %p99
        %p698 = pneg %p123
        %p699 = pneg %p120
        %p700 = pneg %p144
        %p701 = pneg %p141
        %p702 = pneg %p165
        %p703 = pneg %p162
        %p704 = pneg %p186
        %p705 = pneg %p183
        %p706 = pneg %p207
        %p707 = pneg %p204
        %p708 = pneg %p228
        %p709 = pneg %p225
        %p710 = pneg %p249
        %p711 = pneg %p246
        %p712 = pneg %p270
        %p713 = pneg %p267
        %p714 = pneg %p291
        %p715 = pneg %p288
        %p716 = pneg %p312
        %p717 = pneg %p309
        %p718 = pneg %p333
        %p719 = pneg %p330
        %p720 = pneg %p354
        %p721 = pneg %p351
        %p722 = pneg %p375
        %p723 = pneg %p372
        %p724 = pneg %p396
        %p725 = pneg %p393
        %p726 = pneg %p417
        %p727 = pneg %p414
        %p728 = pneg %p443
        %p729 = pneg %p440
        %s730 = sand.u32 %s430, 1
        %s731 = scalar_lea.sflag [#allocation4], %s730
        %s732 = sand.u32 %s430, 1
        %s733 = smul.addr %s732, 64
        %s734 = scalar_lea.vmem [#allocation23], %s733
        %s735 = smul.u32 8, %s39
        %p736 = scmp.lt.s32.totalorder %s735, 15
        %s737 = scalar_select %p736, %s735, 15
        %s738 = smul.addr %s737, 8
        %s739 = scalar_lea.vmem %s0, %s738
        %s740 = smul.u32 8, %s39
        %s741 = smul.u32 8, %s39
        %v743 = vld [vmem:[%s739] sm:$0xff]
        %v744 = vld [vmem:[%s739 + $0x8] sm:$0xff]
        %v745 = vld [vmem:[%s739 + $0x10] sm:$0xff]
        %v746 = vld [vmem:[%s739 + $0x18] sm:$0xff]
        %v747 = vld [vmem:[%s739 + $0x20] sm:$0xff]
        %v748 = vld [vmem:[%s739 + $0x28] sm:$0xff]
        %v749 = vld [vmem:[%s739 + $0x30] sm:$0xff]
        %v750 = vld [vmem:[%s739 + $0x38] sm:$0xff]
        %v751 = vld [vmem:[#allocation5] sm:$0xff]
        %v752 = vld [vmem:[#allocation2] sm:$0xff]
        %v753 = vld [vmem:[#allocation7] sm:$0x1]
        %v755 = vlaneseq
        %v756 = vshrl.u32 %v755, 7
        %v757 = vsub.s32 0, %v756
        %v758 = vrot.slane %v753, %v757
        %vm760 = vcmask 64512
        %v762 = vsel %vm760, %v743, 0
        %v765 = vsel %vm760, %v744, 0
        %v768 = vsel %vm760, %v745, 0
        %v771 = vsel %vm760, %v746, 0
        %v774 = vsel %vm760, %v747, 0
        %v777 = vsel %vm760, %v748, 0
        %v780 = vsel %vm760, %v749, 0
        %v783 = vsel %vm760, %v750, 0
        %785 = vmatprep.subr.mxu0 0.0
        %786 = vmatpush1.msra.mxu0 %v751
        %787 = vmatprep.subr.mxu0 0.0
        %788 = vmatpush1.msra.mxu0 0.0
        %789 = vmatprep.subr.mxu0 0.0
        %790 = vmatpush1.msra.mxu0 0.0
        %791 = vmatprep.subr.mxu0 0.0
        %792 = vmatpush1.msra.mxu0 0.0
        %793 = vmatprep.subr.mxu0 0.0
        %794 = vmatpush1.msra.mxu0 0.0
        %795 = vmatprep.subr.mxu0 0.0
        %796 = vmatpush1.msra.mxu0 0.0
        %797 = vmatprep.subr.mxu0 0.0
        %798 = vmatpush1.msra.mxu0 0.0
        %799 = vmatprep.subr.mxu0 0.0
        %800 = vmatpush1.msra.mxu0 0.0
        %801 = vmatprep.subr.mxu0 0.0
        %802 = vmatpush1.msra.mxu0 0.0
        %803 = vmatprep.subr.mxu0 0.0
        %804 = vmatpush1.msra.mxu0 0.0
        %805 = vmatprep.subr.mxu0 0.0
        %806 = vmatpush1.msra.mxu0 0.0
        %807 = vmatprep.subr.mxu0 0.0
        %808 = vmatpush1.msra.mxu0 0.0
        %809 = vmatprep.subr.mxu0 0.0
        %810 = vmatpush1.msra.mxu0 0.0
        %811 = vmatprep.subr.mxu0 0.0
        %812 = vmatpush1.msra.mxu0 0.0
        %813 = vmatprep.subr.mxu0 0.0
        %814 = vmatpush1.msra.mxu0 0.0
        %815 = vmatprep.subr.mxu0 0.0
        %816 = vmatpush1.msra.mxu0 0.0
        %817 = vmatprep.subr.mxu0 0.0
        %818 = vmatpush1.msra.mxu0 0.0
        %819 = vmatprep.subr.mxu0 0.0
        %820 = vmatpush1.msra.mxu0 0.0
        %821 = vmatprep.subr.mxu0 0.0
        %822 = vmatpush1.msra.mxu0 0.0
        %823 = vmatprep.subr.mxu0 0.0
        %824 = vmatpush1.msra.mxu0 0.0
        %825 = vmatprep.subr.mxu0 0.0
        %826 = vmatpush1.msra.mxu0 0.0
        %827 = vmatprep.subr.mxu0 0.0
        %828 = vmatpush1.msra.mxu0 0.0
        %829 = vmatprep.subr.mxu0 0.0
        %830 = vmatpush1.msra.mxu0 0.0
        %831 = vmatprep.subr.mxu0 0.0
        %832 = vmatpush1.msra.mxu0 0.0
        %833 = vmatprep.subr.mxu0 0.0
        %834 = vmatpush1.msra.mxu0 0.0
        %835 = vmatprep.subr.mxu0 0.0
        %836 = vmatpush1.msra.mxu0 0.0
        %837 = vmatprep.subr.mxu0 0.0
        %838 = vmatpush1.msra.mxu0 0.0
        %839 = vmatprep.subr.mxu0 0.0
        %840 = vmatpush1.msra.mxu0 0.0
        %841 = vmatprep.subr.mxu0 0.0
        %842 = vmatpush1.msra.mxu0 0.0
        %843 = vmatprep.subr.mxu0 0.0
        %844 = vmatpush1.msra.mxu0 0.0
        %845 = vmatprep.subr.mxu0 0.0
        %846 = vmatpush1.msra.mxu0 0.0
        %847 = vmatprep.subr.mxu0 0.0
        %848 = vmatpush1.msra.mxu0 0.0
        %849 = vmatprep.mubr.f32.mxu0 0.0
        %850 = vmatmul.mubr.f32.gmra.mrb[0].mxu0 %v762
        %v851 = vpop.f32.mrb[0].mxu0
        %v852 = vadd.f32 %v758, %v851
        %v853 = vpop.f32.mrb[0].mxu0
        %854 = vmatprep.mubr.f32.mxu0 0.0
        %855 = vmatmul.mubr.f32.gmra.mrb[0].mxu0 %v765
        %v856 = vpop.f32.mrb[0].mxu0
        %v857 = vadd.f32 %v758, %v856
        %v858 = vpop.f32.mrb[0].mxu0
        %859 = vmatprep.mubr.f32.mxu0 0.0
        %860 = vmatmul.mubr.f32.gmra.mrb[0].mxu0 %v768
        %v861 = vpop.f32.mrb[0].mxu0
        %v862 = vadd.f32 %v758, %v861
        %v863 = vpop.f32.mrb[0].mxu0
        %864 = vmatprep.mubr.f32.mxu0 0.0
        %865 = vmatmul.mubr.f32.gmra.mrb[0].mxu0 %v771
        %v866 = vpop.f32.mrb[0].mxu0
        %v867 = vadd.f32 %v758, %v866
        %v868 = vpop.f32.mrb[0].mxu0
        %869 = vmatprep.mubr.f32.mxu0 0.0
        %870 = vmatmul.mubr.f32.gmra.mrb[0].mxu0 %v774
        %v871 = vpop.f32.mrb[0].mxu0
        %v872 = vadd.f32 %v758, %v871
        %v873 = vpop.f32.mrb[0].mxu0
        %874 = vmatprep.mubr.f32.mxu0 0.0
        %875 = vmatmul.mubr.f32.gmra.mrb[0].mxu0 %v777
        %v876 = vpop.f32.mrb[0].mxu0
        %v877 = vadd.f32 %v758, %v876
        %v878 = vpop.f32.mrb[0].mxu0
        %879 = vmatprep.mubr.f32.mxu0 0.0
        %880 = vmatmul.mubr.f32.gmra.mrb[0].mxu0 %v780
        %v881 = vpop.f32.mrb[0].mxu0
        %v882 = vadd.f32 %v758, %v881
        %v883 = vpop.f32.mrb[0].mxu0
        %884 = vmatprep.mubr.f32.mxu0 0.0
        %885 = vmatmul.mubr.f32.gmra.mrb[0].mxu0 %v783
        %v886 = vpop.f32.mrb[0].mxu0
        %v887 = vadd.f32 %v758, %v886
        %v888 = vpop.f32.mrb[0].mxu0
        %889 = vdwg.mxu0
        %v890 = vand.u32 2147483647, %v852
        %vm891 = vcmp.le.f32.partialorder %v890, 0.7853982
        %vm892 = vcmp.lt.s32.totalorder %v852, 0
        %v893 = vand.u32 %v852, 2139095040
        %v894 = vshrl.u32 %v893, 23
        %v895 = vsub.s32 %v894, 127
        %v896 = vand.u32 2147483647, %v852
        %v897 = vand.u32 %v896, 8388607
        %v898 = vor.u32 %v897, 8388608
        %v899 = vsub.s32 0, %v898
        %v900 = vadd.s32 %v895, 1
        %vm901 = vcmp.gt.s32.totalorder %v900, 0
        %v902 = vsel %vm901, %v900, 0
        %v903 = vshrl.u32 %v902, 5
        %v904 = vand.u32 %v902, 31
        %v905 = vsub.s32 32, %v904
        %v906 = vshrl.u32 683565275, %v905
        %v907 = vshll.u32 683565275, %v904
        %v908 = vshrl.u32 2475754826, %v905
        %v909 = vor.u32 %v907, %v908
        %v910 = vshll.u32 2475754826, %v904
        %v911 = vshrl.u32 2131351028, %v905
        %v912 = vor.u32 %v910, %v911
        %v913 = vshll.u32 2131351028, %v904
        %v914 = vshrl.u32 2102212464, %v905
        %v915 = vor.u32 %v913, %v914
        %v916 = vshll.u32 2102212464, %v904
        %v917 = vshrl.u32 920167782, %v905
        %v918 = vor.u32 %v916, %v917
        %v919 = vshll.u32 920167782, %v904
        %v920 = vshrl.u32 1326507024, %v905
        %v921 = vor.u32 %v919, %v920
        %vm922 = vcmp.lt.s32.totalorder %v903, 1
        %vm923 = vcmp.lt.s32.totalorder %v903, 2
        %vm924 = vcmp.lt.s32.totalorder %v903, 3
        %vm925 = vcmp.lt.s32.totalorder %v903, 4
        %v926 = vsel %vm922, %v906, %v909
        %v927 = vsel %vm925, %v915, 2102212464
        %v928 = vsel %vm924, %v912, %v927
        %v929 = vsel %vm923, %v926, %v928
        %v930 = vsel %vm922, %v909, %v912
        %v931 = vsel %vm925, %v918, 920167782
        %v932 = vsel %vm924, %v915, %v931
        %v933 = vsel %vm923, %v930, %v932
        %v934 = vsel %vm922, %v912, %v915
        %v935 = vsel %vm925, %v921, 1326507024
        %v936 = vsel %vm924, %v918, %v935
        %v937 = vsel %vm923, %v934, %v936
        %v938 = vshll.u32 %v898, 8
        %v939 = vmul.u32.u64.compose %v938, %v937
        %v940 = vextract.low.u32 %v939
        %v941 = vextract.high.u32 %v939
        %v942 = vmul.u32.u64.compose %v938, %v933
        %v943 = vextract.low.u32 %v942
        %v944 = vextract.high.u32 %v942
        %v945 = vmul.u32 %v938, %v929
        %v946 = vadd.s32 %v941, %v943
        %vm947 = vc.u32 %v941, %v943
        %v948 = vadd.s32 %v944, 1
        %v949 = vsel %vm947, %v948, %v944
        %v950 = vadd.s32 %v945, %v949
        %v951 = vadd.s32 %v950, 536870912
        %v952 = vshrl.u32 %v951, 30
        %v953 = vshll.u32 %v952, 30
        %v954 = vsub.s32 %v950, %v953
        %vm955 = vcmp.lt.s32.totalorder %v954, 0
        %v956 = vsub.s32 0, %v954
        %v957 = vsel %vm955, %v956, %v954
        %v958 = vclz %v957
        %v959 = vsub.s32 %v958, 2
        %vm960 = vcmp.gt.s32.totalorder 0, %v959
        %v961 = vsel %vm960, 0, %v959
        %v962 = vsub.s32 32, %v961
        %v963 = vshll.u32 %v954, %v961
        %v964 = vshrl.u32 %v946, %v962
        %v965 = vor.u32 %v963, %v964
        %v966 = vsub.s32 4294967266, %v961
        %v967 = vadd.s32 %v966, 127
        %v968 = vshll.u32 %v967, 23
        %v969 = vor.u32 4788187, %v968
        %v970 = vand.u32 2147483647, %v969
        %v972 = vcvt.s32.f32 %v965
        %v973 = vmul.f32 %v972, %v970
        %v974 = vxor.u32 %v973, 2147483648
        %v975 = vsel %vm892, %v974, %v973
        %v976 = vsub.s32 4, %v952
        %v977 = vsel %vm892, %v976, %v952
        %v978 = vsel %vm891, %v852, %v975
        %v979 = vsel %vm891, 0, %v977
        %v980 = vcosq.f32.pop %v978
        %v981 = vsinq.f32.pop %v978
        %vm982 = vweird.f32 %v852
        %v983 = vadd.s32 %v979, 3
        %v984 = vand.u32 %v983, 3
        %vm985 = vcmp.lt.s32.totalorder %v984, 2
        %vm986 = vcmp.eq.s32.totalorder %v984, 0
        %v987 = vxor.u32 %v981, 2147483648
        %v988 = vsel %vm986, %v980, %v987
        %vm989 = vcmp.eq.s32.totalorder %v984, 2
        %v990 = vxor.u32 %v980, 2147483648
        %v991 = vsel %vm989, %v990, %v981
        %v992 = vsel %vm985, %v988, %v991
        %v993 = vsel %vm982, nan, %v992
        %v994 = vand.u32 2147483647, %v857
        %vm995 = vcmp.le.f32.partialorder %v994, 0.7853982
        %vm996 = vcmp.lt.s32.totalorder %v857, 0
        %v997 = vand.u32 %v857, 2139095040
        %v998 = vshrl.u32 %v997, 23
        %v999 = vsub.s32 %v998, 127
        %v1000 = vand.u32 2147483647, %v857
        %v1001 = vand.u32 %v1000, 8388607
        %v1002 = vor.u32 %v1001, 8388608
        %v1003 = vsub.s32 0, %v1002
        %v1004 = vadd.s32 %v999, 1
        %vm1005 = vcmp.gt.s32.totalorder %v1004, 0
        %v1006 = vsel %vm1005, %v1004, 0
        %v1007 = vshrl.u32 %v1006, 5
        %v1008 = vand.u32 %v1006, 31
        %v1009 = vsub.s32 32, %v1008
        %v1010 = vshrl.u32 683565275, %v1009
        %v1011 = vshll.u32 683565275, %v1008
        %v1012 = vshrl.u32 2475754826, %v1009
        %v1013 = vor.u32 %v1011, %v1012
        %v1014 = vshll.u32 2475754826, %v1008
        %v1015 = vshrl.u32 2131351028, %v1009
        %v1016 = vor.u32 %v1014, %v1015
        %v1017 = vshll.u32 2131351028, %v1008
        %v1018 = vshrl.u32 2102212464, %v1009
        %v1019 = vor.u32 %v1017, %v1018
        %v1020 = vshll.u32 2102212464, %v1008
        %v1021 = vshrl.u32 920167782, %v1009
        %v1022 = vor.u32 %v1020, %v1021
        %v1023 = vshll.u32 920167782, %v1008
        %v1024 = vshrl.u32 1326507024, %v1009
        %v1025 = vor.u32 %v1023, %v1024
        %vm1026 = vcmp.lt.s32.totalorder %v1007, 1
        %vm1027 = vcmp.lt.s32.totalorder %v1007, 2
        %vm1028 = vcmp.lt.s32.totalorder %v1007, 3
        %vm1029 = vcmp.lt.s32.totalorder %v1007, 4
        %v1030 = vsel %vm1026, %v1010, %v1013
        %v1031 = vsel %vm1029, %v1019, 2102212464
        %v1032 = vsel %vm1028, %v1016, %v1031
        %v1033 = vsel %vm1027, %v1030, %v1032
        %v1034 = vsel %vm1026, %v1013, %v1016
        %v1035 = vsel %vm1029, %v1022, 920167782
        %v1036 = vsel %vm1028, %v1019, %v1035
        %v1037 = vsel %vm1027, %v1034, %v1036
        %v1038 = vsel %vm1026, %v1016, %v1019
        %v1039 = vsel %vm1029, %v1025, 1326507024
        %v1040 = vsel %vm1028, %v1022, %v1039
        %v1041 = vsel %vm1027, %v1038, %v1040
        %v1042 = vshll.u32 %v1002, 8
        %v1043 = vmul.u32.u64.compose %v1042, %v1041
        %v1044 = vextract.low.u32 %v1043
        %v1045 = vextract.high.u32 %v1043
        %v1046 = vmul.u32.u64.compose %v1042, %v1037
        %v1047 = vextract.low.u32 %v1046
        %v1048 = vextract.high.u32 %v1046
        %v1049 = vmul.u32 %v1042, %v1033
        %v1050 = vadd.s32 %v1045, %v1047
        %vm1051 = vc.u32 %v1045, %v1047
        %v1052 = vadd.s32 %v1048, 1
        %v1053 = vsel %vm1051, %v1052, %v1048
        %v1054 = vadd.s32 %v1049, %v1053
        %v1055 = vadd.s32 %v1054, 536870912
        %v1056 = vshrl.u32 %v1055, 30
        %v1057 = vshll.u32 %v1056, 30
        %v1058 = vsub.s32 %v1054, %v1057
        %vm1059 = vcmp.lt.s32.totalorder %v1058, 0
        %v1060 = vsub.s32 0, %v1058
        %v1061 = vsel %vm1059, %v1060, %v1058
        %v1062 = vclz %v1061
        %v1063 = vsub.s32 %v1062, 2
        %vm1064 = vcmp.gt.s32.totalorder 0, %v1063
        %v1065 = vsel %vm1064, 0, %v1063
        %v1066 = vsub.s32 32, %v1065
        %v1067 = vshll.u32 %v1058, %v1065
        %v1068 = vshrl.u32 %v1050, %v1066
        %v1069 = vor.u32 %v1067, %v1068
        %v1070 = vsub.s32 4294967266, %v1065
        %v1071 = vadd.s32 %v1070, 127
        %v1072 = vshll.u32 %v1071, 23
        %v1073 = vor.u32 4788187, %v1072
        %v1074 = vand.u32 2147483647, %v1073
        %v1076 = vcvt.s32.f32 %v1069
        %v1077 = vmul.f32 %v1076, %v1074
        %v1078 = vxor.u32 %v1077, 2147483648
        %v1079 = vsel %vm996, %v1078, %v1077
        %v1080 = vsub.s32 4, %v1056
        %v1081 = vsel %vm996, %v1080, %v1056
        %v1082 = vsel %vm995, %v857, %v1079
        %v1083 = vsel %vm995, 0, %v1081
        %v1084 = vcosq.f32.pop %v1082
        %v1085 = vsinq.f32.pop %v1082
        %vm1086 = vweird.f32 %v857
        %v1087 = vadd.s32 %v1083, 3
        %v1088 = vand.u32 %v1087, 3
        %vm1089 = vcmp.lt.s32.totalorder %v1088, 2
        %vm1090 = vcmp.eq.s32.totalorder %v1088, 0
        %v1091 = vxor.u32 %v1085, 2147483648
        %v1092 = vsel %vm1090, %v1084, %v1091
        %vm1093 = vcmp.eq.s32.totalorder %v1088, 2
        %v1094 = vxor.u32 %v1084, 2147483648
        %v1095 = vsel %vm1093, %v1094, %v1085
        %v1096 = vsel %vm1089, %v1092, %v1095
        %v1097 = vsel %vm1086, nan, %v1096
        %v1098 = vand.u32 2147483647, %v862
        %vm1099 = vcmp.le.f32.partialorder %v1098, 0.7853982
        %vm1100 = vcmp.lt.s32.totalorder %v862, 0
        %v1101 = vand.u32 %v862, 2139095040
        %v1102 = vshrl.u32 %v1101, 23
        %v1103 = vsub.s32 %v1102, 127
        %v1104 = vand.u32 2147483647, %v862
        %v1105 = vand.u32 %v1104, 8388607
        %v1106 = vor.u32 %v1105, 8388608
        %v1107 = vsub.s32 0, %v1106
        %v1108 = vadd.s32 %v1103, 1
        %vm1109 = vcmp.gt.s32.totalorder %v1108, 0
        %v1110 = vsel %vm1109, %v1108, 0
        %v1111 = vshrl.u32 %v1110, 5
        %v1112 = vand.u32 %v1110, 31
        %v1113 = vsub.s32 32, %v1112
        %v1114 = vshrl.u32 683565275, %v1113
        %v1115 = vshll.u32 683565275, %v1112
        %v1116 = vshrl.u32 2475754826, %v1113
        %v1117 = vor.u32 %v1115, %v1116
        %v1118 = vshll.u32 2475754826, %v1112
        %v1119 = vshrl.u32 2131351028, %v1113
        %v1120 = vor.u32 %v1118, %v1119
        %v1121 = vshll.u32 2131351028, %v1112
        %v1122 = vshrl.u32 2102212464, %v1113
        %v1123 = vor.u32 %v1121, %v1122
        %v1124 = vshll.u32 2102212464, %v1112
        %v1125 = vshrl.u32 920167782, %v1113
        %v1126 = vor.u32 %v1124, %v1125
        %v1127 = vshll.u32 920167782, %v1112
        %v1128 = vshrl.u32 1326507024, %v1113
        %v1129 = vor.u32 %v1127, %v1128
        %vm1130 = vcmp.lt.s32.totalorder %v1111, 1
        %vm1131 = vcmp.lt.s32.totalorder %v1111, 2
        %vm1132 = vcmp.lt.s32.totalorder %v1111, 3
        %vm1133 = vcmp.lt.s32.totalorder %v1111, 4
        %v1134 = vsel %vm1130, %v1114, %v1117
        %v1135 = vsel %vm1133, %v1123, 2102212464
        %v1136 = vsel %vm1132, %v1120, %v1135
        %v1137 = vsel %vm1131, %v1134, %v1136
        %v1138 = vsel %vm1130, %v1117, %v1120
        %v1139 = vsel %vm1133, %v1126, 920167782
        %v1140 = vsel %vm1132, %v1123, %v1139
        %v1141 = vsel %vm1131, %v1138, %v1140
        %v1142 = vsel %vm1130, %v1120, %v1123
        %v1143 = vsel %vm1133, %v1129, 1326507024
        %v1144 = vsel %vm1132, %v1126, %v1143
        %v1145 = vsel %vm1131, %v1142, %v1144
        %v1146 = vshll.u32 %v1106, 8
        %v1147 = vmul.u32.u64.compose %v1146, %v1145
        %v1148 = vextract.low.u32 %v1147
        %v1149 = vextract.high.u32 %v1147
        %v1150 = vmul.u32.u64.compose %v1146, %v1141
        %v1151 = vextract.low.u32 %v1150
        %v1152 = vextract.high.u32 %v1150
        %v1153 = vmul.u32 %v1146, %v1137
        %v1154 = vadd.s32 %v1149, %v1151
        %vm1155 = vc.u32 %v1149, %v1151
        %v1156 = vadd.s32 %v1152, 1
        %v1157 = vsel %vm1155, %v1156, %v1152
        %v1158 = vadd.s32 %v1153, %v1157
        %v1159 = vadd.s32 %v1158, 536870912
        %v1160 = vshrl.u32 %v1159, 30
        %v1161 = vshll.u32 %v1160, 30
        %v1162 = vsub.s32 %v1158, %v1161
        %vm1163 = vcmp.lt.s32.totalorder %v1162, 0
        %v1164 = vsub.s32 0, %v1162
        %v1165 = vsel %vm1163, %v1164, %v1162
        %v1166 = vclz %v1165
        %v1167 = vsub.s32 %v1166, 2
        %vm1168 = vcmp.gt.s32.totalorder 0, %v1167
        %v1169 = vsel %vm1168, 0, %v1167
        %v1170 = vsub.s32 32, %v1169
        %v1171 = vshll.u32 %v1162, %v1169
        %v1172 = vshrl.u32 %v1154, %v1170
        %v1173 = vor.u32 %v1171, %v1172
        %v1174 = vsub.s32 4294967266, %v1169
        %v1175 = vadd.s32 %v1174, 127
        %v1176 = vshll.u32 %v1175, 23
        %v1177 = vor.u32 4788187, %v1176
        %v1178 = vand.u32 2147483647, %v1177
        %v1180 = vcvt.s32.f32 %v1173
        %v1181 = vmul.f32 %v1180, %v1178
        %v1182 = vxor.u32 %v1181, 2147483648
        %v1183 = vsel %vm1100, %v1182, %v1181
        %v1184 = vsub.s32 4, %v1160
        %v1185 = vsel %vm1100, %v1184, %v1160
        %v1186 = vsel %vm1099, %v862, %v1183
        %v1187 = vsel %vm1099, 0, %v1185
        %v1188 = vcosq.f32.pop %v1186
        %v1189 = vsinq.f32.pop %v1186
        %vm1190 = vweird.f32 %v862
        %v1191 = vadd.s32 %v1187, 3
        %v1192 = vand.u32 %v1191, 3
        %vm1193 = vcmp.lt.s32.totalorder %v1192, 2
        %vm1194 = vcmp.eq.s32.totalorder %v1192, 0
        %v1195 = vxor.u32 %v1189, 2147483648
        %v1196 = vsel %vm1194, %v1188, %v1195
        %vm1197 = vcmp.eq.s32.totalorder %v1192, 2
        %v1198 = vxor.u32 %v1188, 2147483648
        %v1199 = vsel %vm1197, %v1198, %v1189
        %v1200 = vsel %vm1193, %v1196, %v1199
        %v1201 = vsel %vm1190, nan, %v1200
        %v1202 = vand.u32 2147483647, %v867
        %vm1203 = vcmp.le.f32.partialorder %v1202, 0.7853982
        %vm1204 = vcmp.lt.s32.totalorder %v867, 0
        %v1205 = vand.u32 %v867, 2139095040
        %v1206 = vshrl.u32 %v1205, 23
        %v1207 = vsub.s32 %v1206, 127
        %v1208 = vand.u32 2147483647, %v867
        %v1209 = vand.u32 %v1208, 8388607
        %v1210 = vor.u32 %v1209, 8388608
        %v1211 = vsub.s32 0, %v1210
        %v1212 = vadd.s32 %v1207, 1
        %vm1213 = vcmp.gt.s32.totalorder %v1212, 0
        %v1214 = vsel %vm1213, %v1212, 0
        %v1215 = vshrl.u32 %v1214, 5
        %v1216 = vand.u32 %v1214, 31
        %v1217 = vsub.s32 32, %v1216
        %v1218 = vshrl.u32 683565275, %v1217
        %v1219 = vshll.u32 683565275, %v1216
        %v1220 = vshrl.u32 2475754826, %v1217
        %v1221 = vor.u32 %v1219, %v1220
        %v1222 = vshll.u32 2475754826, %v1216
        %v1223 = vshrl.u32 2131351028, %v1217
        %v1224 = vor.u32 %v1222, %v1223
        %v1225 = vshll.u32 2131351028, %v1216
        %v1226 = vshrl.u32 2102212464, %v1217
        %v1227 = vor.u32 %v1225, %v1226
        %v1228 = vshll.u32 2102212464, %v1216
        %v1229 = vshrl.u32 920167782, %v1217
        %v1230 = vor.u32 %v1228, %v1229
        %v1231 = vshll.u32 920167782, %v1216
        %v1232 = vshrl.u32 1326507024, %v1217
        %v1233 = vor.u32 %v1231, %v1232
        %vm1234 = vcmp.lt.s32.totalorder %v1215, 1
        %vm1235 = vcmp.lt.s32.totalorder %v1215, 2
        %vm1236 = vcmp.lt.s32.totalorder %v1215, 3
        %vm1237 = vcmp.lt.s32.totalorder %v1215, 4
        %v1238 = vsel %vm1234, %v1218, %v1221
        %v1239 = vsel %vm1237, %v1227, 2102212464
        %v1240 = vsel %vm1236, %v1224, %v1239
        %v1241 = vsel %vm1235, %v1238, %v1240
        %v1242 = vsel %vm1234, %v1221, %v1224
        %v1243 = vsel %vm1237, %v1230, 920167782
        %v1244 = vsel %vm1236, %v1227, %v1243
        %v1245 = vsel %vm1235, %v1242, %v1244
        %v1246 = vsel %vm1234, %v1224, %v1227
        %v1247 = vsel %vm1237, %v1233, 1326507024
        %v1248 = vsel %vm1236, %v1230, %v1247
        %v1249 = vsel %vm1235, %v1246, %v1248
        %v1250 = vshll.u32 %v1210, 8
        %v1251 = vmul.u32.u64.compose %v1250, %v1249
        %v1252 = vextract.low.u32 %v1251
        %v1253 = vextract.high.u32 %v1251
        %v1254 = vmul.u32.u64.compose %v1250, %v1245
        %v1255 = vextract.low.u32 %v1254
        %v1256 = vextract.high.u32 %v1254
        %v1257 = vmul.u32 %v1250, %v1241
        %v1258 = vadd.s32 %v1253, %v1255
        %vm1259 = vc.u32 %v1253, %v1255
        %v1260 = vadd.s32 %v1256, 1
        %v1261 = vsel %vm1259, %v1260, %v1256
        %v1262 = vadd.s32 %v1257, %v1261
        %v1263 = vadd.s32 %v1262, 536870912
        %v1264 = vshrl.u32 %v1263, 30
        %v1265 = vshll.u32 %v1264, 30
        %v1266 = vsub.s32 %v1262, %v1265
        %vm1267 = vcmp.lt.s32.totalorder %v1266, 0
        %v1268 = vsub.s32 0, %v1266
        %v1269 = vsel %vm1267, %v1268, %v1266
        %v1270 = vclz %v1269
        %v1271 = vsub.s32 %v1270, 2
        %vm1272 = vcmp.gt.s32.totalorder 0, %v1271
        %v1273 = vsel %vm1272, 0, %v1271
        %v1274 = vsub.s32 32, %v1273
        %v1275 = vshll.u32 %v1266, %v1273
        %v1276 = vshrl.u32 %v1258, %v1274
        %v1277 = vor.u32 %v1275, %v1276
        %v1278 = vsub.s32 4294967266, %v1273
        %v1279 = vadd.s32 %v1278, 127
        %v1280 = vshll.u32 %v1279, 23
        %v1281 = vor.u32 4788187, %v1280
        %v1282 = vand.u32 2147483647, %v1281
        %v1284 = vcvt.s32.f32 %v1277
        %v1285 = vmul.f32 %v1284, %v1282
        %v1286 = vxor.u32 %v1285, 2147483648
        %v1287 = vsel %vm1204, %v1286, %v1285
        %v1288 = vsub.s32 4, %v1264
        %v1289 = vsel %vm1204, %v1288, %v1264
        %v1290 = vsel %vm1203, %v867, %v1287
        %v1291 = vsel %vm1203, 0, %v1289
        %v1292 = vcosq.f32.pop %v1290
        %v1293 = vsinq.f32.pop %v1290
        %vm1294 = vweird.f32 %v867
        %v1295 = vadd.s32 %v1291, 3
        %v1296 = vand.u32 %v1295, 3
        %vm1297 = vcmp.lt.s32.totalorder %v1296, 2
        %vm1298 = vcmp.eq.s32.totalorder %v1296, 0
        %v1299 = vxor.u32 %v1293, 2147483648
        %v1300 = vsel %vm1298, %v1292, %v1299
        %vm1301 = vcmp.eq.s32.totalorder %v1296, 2
        %v1302 = vxor.u32 %v1292, 2147483648
        %v1303 = vsel %vm1301, %v1302, %v1293
        %v1304 = vsel %vm1297, %v1300, %v1303
        %v1305 = vsel %vm1294, nan, %v1304
        %v1306 = vand.u32 2147483647, %v872
        %vm1307 = vcmp.le.f32.partialorder %v1306, 0.7853982
        %vm1308 = vcmp.lt.s32.totalorder %v872, 0
        %v1309 = vand.u32 %v872, 2139095040
        %v1310 = vshrl.u32 %v1309, 23
        %v1311 = vsub.s32 %v1310, 127
        %v1312 = vand.u32 2147483647, %v872
        %v1313 = vand.u32 %v1312, 8388607
        %v1314 = vor.u32 %v1313, 8388608
        %v1315 = vsub.s32 0, %v1314
        %v1316 = vadd.s32 %v1311, 1
        %vm1317 = vcmp.gt.s32.totalorder %v1316, 0
        %v1318 = vsel %vm1317, %v1316, 0
        %v1319 = vshrl.u32 %v1318, 5
        %v1320 = vand.u32 %v1318, 31
        %v1321 = vsub.s32 32, %v1320
        %v1322 = vshrl.u32 683565275, %v1321
        %v1323 = vshll.u32 683565275, %v1320
        %v1324 = vshrl.u32 2475754826, %v1321
        %v1325 = vor.u32 %v1323, %v1324
        %v1326 = vshll.u32 2475754826, %v1320
        %v1327 = vshrl.u32 2131351028, %v1321
        %v1328 = vor.u32 %v1326, %v1327
        %v1329 = vshll.u32 2131351028, %v1320
        %v1330 = vshrl.u32 2102212464, %v1321
        %v1331 = vor.u32 %v1329, %v1330
        %v1332 = vshll.u32 2102212464, %v1320
        %v1333 = vshrl.u32 920167782, %v1321
        %v1334 = vor.u32 %v1332, %v1333
        %v1335 = vshll.u32 920167782, %v1320
        %v1336 = vshrl.u32 1326507024, %v1321
        %v1337 = vor.u32 %v1335, %v1336
        %vm1338 = vcmp.lt.s32.totalorder %v1319, 1
        %vm1339 = vcmp.lt.s32.totalorder %v1319, 2
        %vm1340 = vcmp.lt.s32.totalorder %v1319, 3
        %vm1341 = vcmp.lt.s32.totalorder %v1319, 4
        %v1342 = vsel %vm1338, %v1322, %v1325
        %v1343 = vsel %vm1341, %v1331, 2102212464
        %v1344 = vsel %vm1340, %v1328, %v1343
        %v1345 = vsel %vm1339, %v1342, %v1344
        %v1346 = vsel %vm1338, %v1325, %v1328
        %v1347 = vsel %vm1341, %v1334, 920167782
        %v1348 = vsel %vm1340, %v1331, %v1347
        %v1349 = vsel %vm1339, %v1346, %v1348
        %v1350 = vsel %vm1338, %v1328, %v1331
        %v1351 = vsel %vm1341, %v1337, 1326507024
        %v1352 = vsel %vm1340, %v1334, %v1351
        %v1353 = vsel %vm1339, %v1350, %v1352
        %v1354 = vshll.u32 %v1314, 8
        %v1355 = vmul.u32.u64.compose %v1354, %v1353
        %v1356 = vextract.low.u32 %v1355
        %v1357 = vextract.high.u32 %v1355
        %v1358 = vmul.u32.u64.compose %v1354, %v1349
        %v1359 = vextract.low.u32 %v1358
        %v1360 = vextract.high.u32 %v1358
        %v1361 = vmul.u32 %v1354, %v1345
        %v1362 = vadd.s32 %v1357, %v1359
        %vm1363 = vc.u32 %v1357, %v1359
        %v1364 = vadd.s32 %v1360, 1
        %v1365 = vsel %vm1363, %v1364, %v1360
        %v1366 = vadd.s32 %v1361, %v1365
        %v1367 = vadd.s32 %v1366, 536870912
        %v1368 = vshrl.u32 %v1367, 30
        %v1369 = vshll.u32 %v1368, 30
        %v1370 = vsub.s32 %v1366, %v1369
        %vm1371 = vcmp.lt.s32.totalorder %v1370, 0
        %v1372 = vsub.s32 0, %v1370
        %v1373 = vsel %vm1371, %v1372, %v1370
        %v1374 = vclz %v1373
        %v1375 = vsub.s32 %v1374, 2
        %vm1376 = vcmp.gt.s32.totalorder 0, %v1375
        %v1377 = vsel %vm1376, 0, %v1375
        %v1378 = vsub.s32 32, %v1377
        %v1379 = vshll.u32 %v1370, %v1377
        %v1380 = vshrl.u32 %v1362, %v1378
        %v1381 = vor.u32 %v1379, %v1380
        %v1382 = vsub.s32 4294967266, %v1377
        %v1383 = vadd.s32 %v1382, 127
        %v1384 = vshll.u32 %v1383, 23
        %v1385 = vor.u32 4788187, %v1384
        %v1386 = vand.u32 2147483647, %v1385
        %v1388 = vcvt.s32.f32 %v1381
        %v1389 = vmul.f32 %v1388, %v1386
        %v1390 = vxor.u32 %v1389, 2147483648
        %v1391 = vsel %vm1308, %v1390, %v1389
        %v1392 = vsub.s32 4, %v1368
        %v1393 = vsel %vm1308, %v1392, %v1368
        %v1394 = vsel %vm1307, %v872, %v1391
        %v1395 = vsel %vm1307, 0, %v1393
        %v1396 = vcosq.f32.pop %v1394
        %v1397 = vsinq.f32.pop %v1394
        %vm1398 = vweird.f32 %v872
        %v1399 = vadd.s32 %v1395, 3
        %v1400 = vand.u32 %v1399, 3
        %vm1401 = vcmp.lt.s32.totalorder %v1400, 2
        %vm1402 = vcmp.eq.s32.totalorder %v1400, 0
        %v1403 = vxor.u32 %v1397, 2147483648
        %v1404 = vsel %vm1402, %v1396, %v1403
        %vm1405 = vcmp.eq.s32.totalorder %v1400, 2
        %v1406 = vxor.u32 %v1396, 2147483648
        %v1407 = vsel %vm1405, %v1406, %v1397
        %v1408 = vsel %vm1401, %v1404, %v1407
        %v1409 = vsel %vm1398, nan, %v1408
        %v1410 = vand.u32 2147483647, %v877
        %vm1411 = vcmp.le.f32.partialorder %v1410, 0.7853982
        %vm1412 = vcmp.lt.s32.totalorder %v877, 0
        %v1413 = vand.u32 %v877, 2139095040
        %v1414 = vshrl.u32 %v1413, 23
        %v1415 = vsub.s32 %v1414, 127
        %v1416 = vand.u32 2147483647, %v877
        %v1417 = vand.u32 %v1416, 8388607
        %v1418 = vor.u32 %v1417, 8388608
        %v1419 = vsub.s32 0, %v1418
        %v1420 = vadd.s32 %v1415, 1
        %vm1421 = vcmp.gt.s32.totalorder %v1420, 0
        %v1422 = vsel %vm1421, %v1420, 0
        %v1423 = vshrl.u32 %v1422, 5
        %v1424 = vand.u32 %v1422, 31
        %v1425 = vsub.s32 32, %v1424
        %v1426 = vshrl.u32 683565275, %v1425
        %v1427 = vshll.u32 683565275, %v1424
        %v1428 = vshrl.u32 2475754826, %v1425
        %v1429 = vor.u32 %v1427, %v1428
        %v1430 = vshll.u32 2475754826, %v1424
        %v1431 = vshrl.u32 2131351028, %v1425
        %v1432 = vor.u32 %v1430, %v1431
        %v1433 = vshll.u32 2131351028, %v1424
        %v1434 = vshrl.u32 2102212464, %v1425
        %v1435 = vor.u32 %v1433, %v1434
        %v1436 = vshll.u32 2102212464, %v1424
        %v1437 = vshrl.u32 920167782, %v1425
        %v1438 = vor.u32 %v1436, %v1437
        %v1439 = vshll.u32 920167782, %v1424
        %v1440 = vshrl.u32 1326507024, %v1425
        %v1441 = vor.u32 %v1439, %v1440
        %vm1442 = vcmp.lt.s32.totalorder %v1423, 1
        %vm1443 = vcmp.lt.s32.totalorder %v1423, 2
        %vm1444 = vcmp.lt.s32.totalorder %v1423, 3
        %vm1445 = vcmp.lt.s32.totalorder %v1423, 4
        %v1446 = vsel %vm1442, %v1426, %v1429
        %v1447 = vsel %vm1445, %v1435, 2102212464
        %v1448 = vsel %vm1444, %v1432, %v1447
        %v1449 = vsel %vm1443, %v1446, %v1448
        %v1450 = vsel %vm1442, %v1429, %v1432
        %v1451 = vsel %vm1445, %v1438, 920167782
        %v1452 = vsel %vm1444, %v1435, %v1451
        %v1453 = vsel %vm1443, %v1450, %v1452
        %v1454 = vsel %vm1442, %v1432, %v1435
        %v1455 = vsel %vm1445, %v1441, 1326507024
        %v1456 = vsel %vm1444, %v1438, %v1455
        %v1457 = vsel %vm1443, %v1454, %v1456
        %v1458 = vshll.u32 %v1418, 8
        %v1459 = vmul.u32.u64.compose %v1458, %v1457
        %v1460 = vextract.low.u32 %v1459
        %v1461 = vextract.high.u32 %v1459
        %v1462 = vmul.u32.u64.compose %v1458, %v1453
        %v1463 = vextract.low.u32 %v1462
        %v1464 = vextract.high.u32 %v1462
        %v1465 = vmul.u32 %v1458, %v1449
        %v1466 = vadd.s32 %v1461, %v1463
        %vm1467 = vc.u32 %v1461, %v1463
        %v1468 = vadd.s32 %v1464, 1
        %v1469 = vsel %vm1467, %v1468, %v1464
        %v1470 = vadd.s32 %v1465, %v1469
        %v1471 = vadd.s32 %v1470, 536870912
        %v1472 = vshrl.u32 %v1471, 30
        %v1473 = vshll.u32 %v1472, 30
        %v1474 = vsub.s32 %v1470, %v1473
        %vm1475 = vcmp.lt.s32.totalorder %v1474, 0
        %v1476 = vsub.s32 0, %v1474
        %v1477 = vsel %vm1475, %v1476, %v1474
        %v1478 = vclz %v1477
        %v1479 = vsub.s32 %v1478, 2
        %vm1480 = vcmp.gt.s32.totalorder 0, %v1479
        %v1481 = vsel %vm1480, 0, %v1479
        %v1482 = vsub.s32 32, %v1481
        %v1483 = vshll.u32 %v1474, %v1481
        %v1484 = vshrl.u32 %v1466, %v1482
        %v1485 = vor.u32 %v1483, %v1484
        %v1486 = vsub.s32 4294967266, %v1481
        %v1487 = vadd.s32 %v1486, 127
        %v1488 = vshll.u32 %v1487, 23
        %v1489 = vor.u32 4788187, %v1488
        %v1490 = vand.u32 2147483647, %v1489
        %v1492 = vcvt.s32.f32 %v1485
        %v1493 = vmul.f32 %v1492, %v1490
        %v1494 = vxor.u32 %v1493, 2147483648
        %v1495 = vsel %vm1412, %v1494, %v1493
        %v1496 = vsub.s32 4, %v1472
        %v1497 = vsel %vm1412, %v1496, %v1472
        %v1498 = vsel %vm1411, %v877, %v1495
        %v1499 = vsel %vm1411, 0, %v1497
        %v1500 = vcosq.f32.pop %v1498
        %v1501 = vsinq.f32.pop %v1498
        %vm1502 = vweird.f32 %v877
        %v1503 = vadd.s32 %v1499, 3
        %v1504 = vand.u32 %v1503, 3
        %vm1505 = vcmp.lt.s32.totalorder %v1504, 2
        %vm1506 = vcmp.eq.s32.totalorder %v1504, 0
        %v1507 = vxor.u32 %v1501, 2147483648
        %v1508 = vsel %vm1506, %v1500, %v1507
        %vm1509 = vcmp.eq.s32.totalorder %v1504, 2
        %v1510 = vxor.u32 %v1500, 2147483648
        %v1511 = vsel %vm1509, %v1510, %v1501
        %v1512 = vsel %vm1505, %v1508, %v1511
        %v1513 = vsel %vm1502, nan, %v1512
        %v1514 = vand.u32 2147483647, %v882
        %vm1515 = vcmp.le.f32.partialorder %v1514, 0.7853982
        %vm1516 = vcmp.lt.s32.totalorder %v882, 0
        %v1517 = vand.u32 %v882, 2139095040
        %v1518 = vshrl.u32 %v1517, 23
        %v1519 = vsub.s32 %v1518, 127
        %v1520 = vand.u32 2147483647, %v882
        %v1521 = vand.u32 %v1520, 8388607
        %v1522 = vor.u32 %v1521, 8388608
        %v1523 = vsub.s32 0, %v1522
        %v1524 = vadd.s32 %v1519, 1
        %vm1525 = vcmp.gt.s32.totalorder %v1524, 0
        %v1526 = vsel %vm1525, %v1524, 0
        %v1527 = vshrl.u32 %v1526, 5
        %v1528 = vand.u32 %v1526, 31
        %v1529 = vsub.s32 32, %v1528
        %v1530 = vshrl.u32 683565275, %v1529
        %v1531 = vshll.u32 683565275, %v1528
        %v1532 = vshrl.u32 2475754826, %v1529
        %v1533 = vor.u32 %v1531, %v1532
        %v1534 = vshll.u32 2475754826, %v1528
        %v1535 = vshrl.u32 2131351028, %v1529
        %v1536 = vor.u32 %v1534, %v1535
        %v1537 = vshll.u32 2131351028, %v1528
        %v1538 = vshrl.u32 2102212464, %v1529
        %v1539 = vor.u32 %v1537, %v1538
        %v1540 = vshll.u32 2102212464, %v1528
        %v1541 = vshrl.u32 920167782, %v1529
        %v1542 = vor.u32 %v1540, %v1541
        %v1543 = vshll.u32 920167782, %v1528
        %v1544 = vshrl.u32 1326507024, %v1529
        %v1545 = vor.u32 %v1543, %v1544
        %vm1546 = vcmp.lt.s32.totalorder %v1527, 1
        %vm1547 = vcmp.lt.s32.totalorder %v1527, 2
        %vm1548 = vcmp.lt.s32.totalorder %v1527, 3
        %vm1549 = vcmp.lt.s32.totalorder %v1527, 4
        %v1550 = vsel %vm1546, %v1530, %v1533
        %v1551 = vsel %vm1549, %v1539, 2102212464
        %v1552 = vsel %vm1548, %v1536, %v1551
        %v1553 = vsel %vm1547, %v1550, %v1552
        %v1554 = vsel %vm1546, %v1533, %v1536
        %v1555 = vsel %vm1549, %v1542, 920167782
        %v1556 = vsel %vm1548, %v1539, %v1555
        %v1557 = vsel %vm1547, %v1554, %v1556
        %v1558 = vsel %vm1546, %v1536, %v1539
        %v1559 = vsel %vm1549, %v1545, 1326507024
        %v1560 = vsel %vm1548, %v1542, %v1559
        %v1561 = vsel %vm1547, %v1558, %v1560
        %v1562 = vshll.u32 %v1522, 8
        %v1563 = vmul.u32.u64.compose %v1562, %v1561
        %v1564 = vextract.low.u32 %v1563
        %v1565 = vextract.high.u32 %v1563
        %v1566 = vmul.u32.u64.compose %v1562, %v1557
        %v1567 = vextract.low.u32 %v1566
        %v1568 = vextract.high.u32 %v1566
        %v1569 = vmul.u32 %v1562, %v1553
        %v1570 = vadd.s32 %v1565, %v1567
        %vm1571 = vc.u32 %v1565, %v1567
        %v1572 = vadd.s32 %v1568, 1
        %v1573 = vsel %vm1571, %v1572, %v1568
        %v1574 = vadd.s32 %v1569, %v1573
        %v1575 = vadd.s32 %v1574, 536870912
        %v1576 = vshrl.u32 %v1575, 30
        %v1577 = vshll.u32 %v1576, 30
        %v1578 = vsub.s32 %v1574, %v1577
        %vm1579 = vcmp.lt.s32.totalorder %v1578, 0
        %v1580 = vsub.s32 0, %v1578
        %v1581 = vsel %vm1579, %v1580, %v1578
        %v1582 = vclz %v1581
        %v1583 = vsub.s32 %v1582, 2
        %vm1584 = vcmp.gt.s32.totalorder 0, %v1583
        %v1585 = vsel %vm1584, 0, %v1583
        %v1586 = vsub.s32 32, %v1585
        %v1587 = vshll.u32 %v1578, %v1585
        %v1588 = vshrl.u32 %v1570, %v1586
        %v1589 = vor.u32 %v1587, %v1588
        %v1590 = vsub.s32 4294967266, %v1585
        %v1591 = vadd.s32 %v1590, 127
        %v1592 = vshll.u32 %v1591, 23
        %v1593 = vor.u32 4788187, %v1592
        %v1594 = vand.u32 2147483647, %v1593
        %v1596 = vcvt.s32.f32 %v1589
        %v1597 = vmul.f32 %v1596, %v1594
        %v1598 = vxor.u32 %v1597, 2147483648
        %v1599 = vsel %vm1516, %v1598, %v1597
        %v1600 = vsub.s32 4, %v1576
        %v1601 = vsel %vm1516, %v1600, %v1576
        %v1602 = vsel %vm1515, %v882, %v1599
        %v1603 = vsel %vm1515, 0, %v1601
        %v1604 = vcosq.f32.pop %v1602
        %v1605 = vsinq.f32.pop %v1602
        %vm1606 = vweird.f32 %v882
        %v1607 = vadd.s32 %v1603, 3
        %v1608 = vand.u32 %v1607, 3
        %vm1609 = vcmp.lt.s32.totalorder %v1608, 2
        %vm1610 = vcmp.eq.s32.totalorder %v1608, 0
        %v1611 = vxor.u32 %v1605, 2147483648
        %v1612 = vsel %vm1610, %v1604, %v1611
        %vm1613 = vcmp.eq.s32.totalorder %v1608, 2
        %v1614 = vxor.u32 %v1604, 2147483648
        %v1615 = vsel %vm1613, %v1614, %v1605
        %v1616 = vsel %vm1609, %v1612, %v1615
        %v1617 = vsel %vm1606, nan, %v1616
        %v1618 = vand.u32 2147483647, %v887
        %vm1619 = vcmp.le.f32.partialorder %v1618, 0.7853982
        %vm1620 = vcmp.lt.s32.totalorder %v887, 0
        %v1621 = vand.u32 %v887, 2139095040
        %v1622 = vshrl.u32 %v1621, 23
        %v1623 = vsub.s32 %v1622, 127
        %v1624 = vand.u32 2147483647, %v887
        %v1625 = vand.u32 %v1624, 8388607
        %v1626 = vor.u32 %v1625, 8388608
        %v1627 = vsub.s32 0, %v1626
        %v1628 = vadd.s32 %v1623, 1
        %vm1629 = vcmp.gt.s32.totalorder %v1628, 0
        %v1630 = vsel %vm1629, %v1628, 0
        %v1631 = vshrl.u32 %v1630, 5
        %v1632 = vand.u32 %v1630, 31
        %v1633 = vsub.s32 32, %v1632
        %v1634 = vshrl.u32 683565275, %v1633
        %v1635 = vshll.u32 683565275, %v1632
        %v1636 = vshrl.u32 2475754826, %v1633
        %v1637 = vor.u32 %v1635, %v1636
        %v1638 = vshll.u32 2475754826, %v1632
        %v1639 = vshrl.u32 2131351028, %v1633
        %v1640 = vor.u32 %v1638, %v1639
        %v1641 = vshll.u32 2131351028, %v1632
        %v1642 = vshrl.u32 2102212464, %v1633
        %v1643 = vor.u32 %v1641, %v1642
        %v1644 = vshll.u32 2102212464, %v1632
        %v1645 = vshrl.u32 920167782, %v1633
        %v1646 = vor.u32 %v1644, %v1645
        %v1647 = vshll.u32 920167782, %v1632
        %v1648 = vshrl.u32 1326507024, %v1633
        %v1649 = vor.u32 %v1647, %v1648
        %vm1650 = vcmp.lt.s32.totalorder %v1631, 1
        %vm1651 = vcmp.lt.s32.totalorder %v1631, 2
        %vm1652 = vcmp.lt.s32.totalorder %v1631, 3
        %vm1653 = vcmp.lt.s32.totalorder %v1631, 4
        %v1654 = vsel %vm1650, %v1634, %v1637
        %v1655 = vsel %vm1653, %v1643, 2102212464
        %v1656 = vsel %vm1652, %v1640, %v1655
        %v1657 = vsel %vm1651, %v1654, %v1656
        %v1658 = vsel %vm1650, %v1637, %v1640
        %v1659 = vsel %vm1653, %v1646, 920167782
        %v1660 = vsel %vm1652, %v1643, %v1659
        %v1661 = vsel %vm1651, %v1658, %v1660
        %v1662 = vsel %vm1650, %v1640, %v1643
        %v1663 = vsel %vm1653, %v1649, 1326507024
        %v1664 = vsel %vm1652, %v1646, %v1663
        %v1665 = vsel %vm1651, %v1662, %v1664
        %v1666 = vshll.u32 %v1626, 8
        %v1667 = vmul.u32.u64.compose %v1666, %v1665
        %v1668 = vextract.low.u32 %v1667
        %v1669 = vextract.high.u32 %v1667
        %v1670 = vmul.u32.u64.compose %v1666, %v1661
        %v1671 = vextract.low.u32 %v1670
        %v1672 = vextract.high.u32 %v1670
        %v1673 = vmul.u32 %v1666, %v1657
        %v1674 = vadd.s32 %v1669, %v1671
        %vm1675 = vc.u32 %v1669, %v1671
        %v1676 = vadd.s32 %v1672, 1
        %v1677 = vsel %vm1675, %v1676, %v1672
        %v1678 = vadd.s32 %v1673, %v1677
        %v1679 = vadd.s32 %v1678, 536870912
        %v1680 = vshrl.u32 %v1679, 30
        %v1681 = vshll.u32 %v1680, 30
        %v1682 = vsub.s32 %v1678, %v1681
        %vm1683 = vcmp.lt.s32.totalorder %v1682, 0
        %v1684 = vsub.s32 0, %v1682
        %v1685 = vsel %vm1683, %v1684, %v1682
        %v1686 = vclz %v1685
        %v1687 = vsub.s32 %v1686, 2
        %vm1688 = vcmp.gt.s32.totalorder 0, %v1687
        %v1689 = vsel %vm1688, 0, %v1687
        %v1690 = vsub.s32 32, %v1689
        %v1691 = vshll.u32 %v1682, %v1689
        %v1692 = vshrl.u32 %v1674, %v1690
        %v1693 = vor.u32 %v1691, %v1692
        %v1694 = vsub.s32 4294967266, %v1689
        %v1695 = vadd.s32 %v1694, 127
        %v1696 = vshll.u32 %v1695, 23
        %v1697 = vor.u32 4788187, %v1696
        %v1698 = vand.u32 2147483647, %v1697
        %v1700 = vcvt.s32.f32 %v1693
        %v1701 = vmul.f32 %v1700, %v1698
        %v1702 = vxor.u32 %v1701, 2147483648
        %v1703 = vsel %vm1620, %v1702, %v1701
        %v1704 = vsub.s32 4, %v1680
        %v1705 = vsel %vm1620, %v1704, %v1680
        %v1706 = vsel %vm1619, %v887, %v1703
        %v1707 = vsel %vm1619, 0, %v1705
        %v1708 = vcosq.f32.pop %v1706
        %v1709 = vsinq.f32.pop %v1706
        %vm1710 = vweird.f32 %v887
        %v1711 = vadd.s32 %v1707, 3
        %v1712 = vand.u32 %v1711, 3
        %vm1713 = vcmp.lt.s32.totalorder %v1712, 2
        %vm1714 = vcmp.eq.s32.totalorder %v1712, 0
        %v1715 = vxor.u32 %v1709, 2147483648
        %v1716 = vsel %vm1714, %v1708, %v1715
        %vm1717 = vcmp.eq.s32.totalorder %v1712, 2
        %v1718 = vxor.u32 %v1708, 2147483648
        %v1719 = vsel %vm1717, %v1718, %v1709
        %v1720 = vsel %vm1713, %v1716, %v1719
        %v1721 = vsel %vm1710, nan, %v1720
        %1722 = vmatprep.subr.mxu0 0.0
        %1723 = vmatpush1.msra.mxu0 %v752
        %1724 = vmatprep.subr.mxu0 0.0
        %1725 = vmatpush1.msra.mxu0 0.0
        %1726 = vmatprep.subr.mxu0 0.0
        %1727 = vmatpush1.msra.mxu0 0.0
        %1728 = vmatprep.subr.mxu0 0.0
        %1729 = vmatpush1.msra.mxu0 0.0
        %1730 = vmatprep.subr.mxu0 0.0
        %1731 = vmatpush1.msra.mxu0 0.0
        %1732 = vmatprep.subr.mxu0 0.0
        %1733 = vmatpush1.msra.mxu0 0.0
        %1734 = vmatprep.subr.mxu0 0.0
        %1735 = vmatpush1.msra.mxu0 0.0
        %1736 = vmatprep.subr.mxu0 0.0
        %1737 = vmatpush1.msra.mxu0 0.0
        %1738 = vmatprep.subr.mxu0 0.0
        %1739 = vmatpush1.msra.mxu0 0.0
        %1740 = vmatprep.subr.mxu0 0.0
        %1741 = vmatpush1.msra.mxu0 0.0
        %1742 = vmatprep.subr.mxu0 0.0
        %1743 = vmatpush1.msra.mxu0 0.0
        %1744 = vmatprep.subr.mxu0 0.0
        %1745 = vmatpush1.msra.mxu0 0.0
        %1746 = vmatprep.subr.mxu0 0.0
        %1747 = vmatpush1.msra.mxu0 0.0
        %1748 = vmatprep.subr.mxu0 0.0
        %1749 = vmatpush1.msra.mxu0 0.0
        %1750 = vmatprep.subr.mxu0 0.0
        %1751 = vmatpush1.msra.mxu0 0.0
        %1752 = vmatprep.subr.mxu0 0.0
        %1753 = vmatpush1.msra.mxu0 0.0
        %1754 = vmatprep.subr.mxu0 0.0
        %1755 = vmatpush1.msra.mxu0 0.0
        %1756 = vmatprep.subr.mxu0 0.0
        %1757 = vmatpush1.msra.mxu0 0.0
        %1758 = vmatprep.subr.mxu0 0.0
        %1759 = vmatpush1.msra.mxu0 0.0
        %1760 = vmatprep.subr.mxu0 0.0
        %1761 = vmatpush1.msra.mxu0 0.0
        %1762 = vmatprep.subr.mxu0 0.0
        %1763 = vmatpush1.msra.mxu0 0.0
        %1764 = vmatprep.subr.mxu0 0.0
        %1765 = vmatpush1.msra.mxu0 0.0
        %1766 = vmatprep.subr.mxu0 0.0
        %1767 = vmatpush1.msra.mxu0 0.0
        %1768 = vmatprep.subr.mxu0 0.0
        %1769 = vmatpush1.msra.mxu0 0.0
        %1770 = vmatprep.subr.mxu0 0.0
        %1771 = vmatpush1.msra.mxu0 0.0
        %1772 = vmatprep.subr.mxu0 0.0
        %1773 = vmatpush1.msra.mxu0 0.0
        %1774 = vmatprep.subr.mxu0 0.0
        %1775 = vmatpush1.msra.mxu0 0.0
        %1776 = vmatprep.subr.mxu0 0.0
        %1777 = vmatpush1.msra.mxu0 0.0
        %1778 = vmatprep.subr.mxu0 0.0
        %1779 = vmatpush1.msra.mxu0 0.0
        %1780 = vmatprep.subr.mxu0 0.0
        %1781 = vmatpush1.msra.mxu0 0.0
        %1782 = vmatprep.subr.mxu0 0.0
        %1783 = vmatpush1.msra.mxu0 0.0
        %1784 = vmatprep.subr.mxu0 0.0
        %1785 = vmatpush1.msra.mxu0 0.0
        %1786 = vmatprep.mubr.f32.mxu0 0.0
        %1787 = vmatmul.mubr.f32.gmra.mrb[0].mxu0 %v762
        %v1788 = vpop.f32.mrb[0].mxu0
        %v1789 = vadd.f32 %v993, %v1788
        %v1790 = vpop.f32.mrb[0].mxu0
        %1791 = vmatprep.mubr.f32.mxu0 0.0
        %1792 = vmatmul.mubr.f32.gmra.mrb[0].mxu0 %v765
        %v1793 = vpop.f32.mrb[0].mxu0
        %v1794 = vadd.f32 %v1097, %v1793
        %v1795 = vpop.f32.mrb[0].mxu0
        %1796 = vmatprep.mubr.f32.mxu0 0.0
        %1797 = vmatmul.mubr.f32.gmra.mrb[0].mxu0 %v768
        %v1798 = vpop.f32.mrb[0].mxu0
        %v1799 = vadd.f32 %v1201, %v1798
        %v1800 = vpop.f32.mrb[0].mxu0
        %1801 = vmatprep.mubr.f32.mxu0 0.0
        %1802 = vmatmul.mubr.f32.gmra.mrb[0].mxu0 %v771
        %v1803 = vpop.f32.mrb[0].mxu0
        %v1804 = vadd.f32 %v1305, %v1803
        %v1805 = vpop.f32.mrb[0].mxu0
        %1806 = vmatprep.mubr.f32.mxu0 0.0
        %1807 = vmatmul.mubr.f32.gmra.mrb[0].mxu0 %v774
        %v1808 = vpop.f32.mrb[0].mxu0
        %v1809 = vadd.f32 %v1409, %v1808
        %v1810 = vpop.f32.mrb[0].mxu0
        %1811 = vmatprep.mubr.f32.mxu0 0.0
        %1812 = vmatmul.mubr.f32.gmra.mrb[0].mxu0 %v777
        %v1813 = vpop.f32.mrb[0].mxu0
        %v1814 = vadd.f32 %v1513, %v1813
        %v1815 = vpop.f32.mrb[0].mxu0
        %1816 = vmatprep.mubr.f32.mxu0 0.0
        %1817 = vmatmul.mubr.f32.gmra.mrb[0].mxu0 %v780
        %v1818 = vpop.f32.mrb[0].mxu0
        %v1819 = vadd.f32 %v1617, %v1818
        %v1820 = vpop.f32.mrb[0].mxu0
        %1821 = vmatprep.mubr.f32.mxu0 0.0
        %1822 = vmatmul.mubr.f32.gmra.mrb[0].mxu0 %v783
        %v1823 = vpop.f32.mrb[0].mxu0
        %v1824 = vadd.f32 %v1721, %v1823
        %v1825 = vpop.f32.mrb[0].mxu0
        %1826 = vdwg.mxu0
        %v1827 = vld [vmem:[%s4] sm:$0xf]
        %v1828 = vld [vmem:[%s4 + $0x4] sm:$0xf]
        %v1829 = vld [vmem:[%s4 + $0x8] sm:$0xf]
        %v1830 = vld [vmem:[%s4 + $0xc] sm:$0xf]
        %v1831 = vld [vmem:[%s4 + $0x10] sm:$0xf]
        %v1832 = vld [vmem:[%s4 + $0x14] sm:$0xf]
        %v1833 = vld [vmem:[%s4 + $0x18] sm:$0xf]
        %v1834 = vld [vmem:[%s4 + $0x1c] sm:$0xf]
        %v1835 = vld [vmem:[%s4 + $0x20] sm:$0xf]
        %v1836 = vld [vmem:[%s4 + $0x24] sm:$0xf]
        %v1837 = vld [vmem:[%s4 + $0x28] sm:$0xf]
        %v1838 = vld [vmem:[%s4 + $0x2c] sm:$0xf]
        %v1839 = vld [vmem:[%s4 + $0x30] sm:$0xf]
        %v1840 = vld [vmem:[%s4 + $0x34] sm:$0xf]
        %v1841 = vld [vmem:[%s4 + $0x38] sm:$0xf]
        %v1842 = vld [vmem:[%s4 + $0x3c] sm:$0xf]
        %v1843 = vld [vmem:[#allocation8] sm:$0x1]
        %v1844 = vpack.c.bf16 %v1794, %v1789
        %v1845 = vpack.c.bf16 %v1804, %v1799
        %v1846 = vpack.c.bf16 %v1814, %v1809
        %v1847 = vpack.c.bf16 %v1824, %v1819
        %v1849 = vlaneseq
        %v1850 = vshrl.u32 %v1849, 7
        %v1851 = vsub.s32 0, %v1850
        %v1852 = vrot.slane %v1843, %v1851
        %v1870 = vunpack.c.l.b16 %v1827
        %v1871 = vunpack.c.l.b16 %v1828
        %v1872 = vunpack.c.l.b16 %v1829
        %v1873 = vunpack.c.l.b16 %v1830
        %v1874 = vunpack.c.l.b16 %v1831
        %v1875 = vunpack.c.l.b16 %v1832
        %v1876 = vunpack.c.l.b16 %v1833
        %v1877 = vunpack.c.l.b16 %v1834
        %v1878 = vunpack.c.l.b16 %v1835
        %v1879 = vunpack.c.l.b16 %v1836
        %v1880 = vunpack.c.l.b16 %v1837
        %v1881 = vunpack.c.l.b16 %v1838
        %v1882 = vunpack.c.l.b16 %v1839
        %v1883 = vunpack.c.l.b16 %v1840
        %v1884 = vunpack.c.l.b16 %v1841
        %v1885 = vunpack.c.l.b16 %v1842
        %v1886 = vpack.c.b16 %v1871, %v1870
        %v1887 = vpack.c.b16 %v1873, %v1872
        %v1888 = vpack.c.b16 %v1875, %v1874
        %v1889 = vpack.c.b16 %v1877, %v1876
        %v1890 = vpack.c.b16 %v1879, %v1878
        %v1891 = vpack.c.b16 %v1881, %v1880
        %v1892 = vpack.c.b16 %v1883, %v1882
        %v1893 = vpack.c.b16 %v1885, %v1884
        %1902 = vmatprep.subr.bf16.mxu0 0
        %1903 = vmatpush1.bf16.msra.mxu0 %v1886
        %1904 = vmatprep.subr.bf16.mxu0 0
        %1905 = vmatpush1.bf16.msra.mxu0 %v1887
        %1906 = vmatprep.subr.bf16.mxu0 0
        %1907 = vmatpush1.bf16.msra.mxu0 %v1888
        %1908 = vmatprep.subr.bf16.mxu0 0
        %1909 = vmatpush1.bf16.msra.mxu0 %v1889
        %1910 = vmatprep.subr.bf16.mxu0 0
        %1911 = vmatpush1.bf16.msra.mxu0 %v1890
        %1912 = vmatprep.subr.bf16.mxu0 0
        %1913 = vmatpush1.bf16.msra.mxu0 %v1891
        %1914 = vmatprep.subr.bf16.mxu0 0
        %1915 = vmatpush1.bf16.msra.mxu0 %v1892
        %1916 = vmatprep.subr.bf16.mxu0 0
        %1917 = vmatpush1.bf16.msra.mxu0 %v1893
        %1918 = vmatprep.subr.bf16.mxu0 0
        %1919 = vmatpush1.bf16.msra.mxu0 0
        %1920 = vmatprep.subr.bf16.mxu0 0
        %1921 = vmatpush1.bf16.msra.mxu0 0
        %1922 = vmatprep.subr.bf16.mxu0 0
        %1923 = vmatpush1.bf16.msra.mxu0 0
        %1924 = vmatprep.subr.bf16.mxu0 0
        %1925 = vmatpush1.bf16.msra.mxu0 0
        %1926 = vmatprep.subr.bf16.mxu0 0
        %1927 = vmatpush1.bf16.msra.mxu0 0
        %1928 = vmatprep.subr.bf16.mxu0 0
        %1929 = vmatpush1.bf16.msra.mxu0 0
        %1930 = vmatprep.subr.bf16.mxu0 0
        %1931 = vmatpush1.bf16.msra.mxu0 0
        %1932 = vmatprep.subr.bf16.mxu0 0
        %1933 = vmatpush1.bf16.msra.mxu0 0
        %1934 = vmatprep.mubr.bf16.mxu0 0
        %1935 = vmatmul.mubr.bf16.gmra.mrb[0].mxu0 %v1844
        %v1936 = vpop.f32.mrb[0].mxu0
        %v1937 = vadd.f32 %v1852, %v1936
        %v1938 = vpop.f32.mrb[0].mxu0
        %v1939 = vpop.f32.mrb[0].mxu0
        %v1940 = vadd.f32 %v1852, %v1939
        %v1941 = vpop.f32.mrb[0].mxu0
        %1942 = vmatprep.mubr.bf16.mxu0 0
        %1943 = vmatmul.mubr.bf16.gmra.mrb[0].mxu0 %v1845
        %v1944 = vpop.f32.mrb[0].mxu0
        %v1945 = vadd.f32 %v1852, %v1944
        %v1946 = vpop.f32.mrb[0].mxu0
        %v1947 = vpop.f32.mrb[0].mxu0
        %v1948 = vadd.f32 %v1852, %v1947
        %v1949 = vpop.f32.mrb[0].mxu0
        %1950 = vmatprep.mubr.bf16.mxu0 0
        %1951 = vmatmul.mubr.bf16.gmra.mrb[0].mxu0 %v1846
        %v1952 = vpop.f32.mrb[0].mxu0
        %v1953 = vadd.f32 %v1852, %v1952
        %v1954 = vpop.f32.mrb[0].mxu0
        %v1955 = vpop.f32.mrb[0].mxu0
        %v1956 = vadd.f32 %v1852, %v1955
        %v1957 = vpop.f32.mrb[0].mxu0
        %1958 = vmatprep.mubr.bf16.mxu0 0
        %1959 = vmatmul.mubr.bf16.gmra.mrb[0].mxu0 %v1847
        %v1960 = vpop.f32.mrb[0].mxu0
        %v1961 = vadd.f32 %v1852, %v1960
        %v1962 = vpop.f32.mrb[0].mxu0
        %v1963 = vpop.f32.mrb[0].mxu0
        %v1964 = vadd.f32 %v1852, %v1963
        %v1965 = vpop.f32.mrb[0].mxu0
        %1966 = vdwg.mxu0
        %v1967 = vld [vmem:[#allocation10] sm:$0x1]
        %v1968 = vld [vmem:[#allocation11] sm:$0x1]
        %1969 = vadd.xlane.f32.xlu0 %v1937
        %v1970 = vpop.xlane.xlu0 %1969
        %1971 = vadd.xlane.f32.xlu0 %v1940
        %v1972 = vpop.xlane.xlu0 %1971
        %1973 = vadd.xlane.f32.xlu0 %v1945
        %v1974 = vpop.xlane.xlu0 %1973
        %1975 = vadd.xlane.f32.xlu0 %v1948
        %v1976 = vpop.xlane.xlu0 %1975
        %1977 = vadd.xlane.f32.xlu0 %v1953
        %v1978 = vpop.xlane.xlu0 %1977
        %1979 = vadd.xlane.f32.xlu0 %v1956
        %v1980 = vpop.xlane.xlu0 %1979
        %1981 = vadd.xlane.f32.xlu0 %v1961
        %v1982 = vpop.xlane.xlu0 %1981
        %1983 = vadd.xlane.f32.xlu0 %v1964
        %v1984 = vpop.xlane.xlu0 %1983
        %v1985 = vmul.f32 %v1937, %v1937
        %v1986 = vmul.f32 %v1940, %v1940
        %v1987 = vmul.f32 %v1945, %v1945
        %v1988 = vmul.f32 %v1948, %v1948
        %v1989 = vmul.f32 %v1953, %v1953
        %v1990 = vmul.f32 %v1956, %v1956
        %v1991 = vmul.f32 %v1961, %v1961
        %v1992 = vmul.f32 %v1964, %v1964
        %1993 = vadd.xlane.f32.xlu0 %v1985
        %v1994 = vpop.xlane.xlu0 %1993
        %1995 = vadd.xlane.f32.xlu0 %v1986
        %v1996 = vpop.xlane.xlu0 %1995
        %1997 = vadd.xlane.f32.xlu0 %v1987
        %v1998 = vpop.xlane.xlu0 %1997
        %1999 = vadd.xlane.f32.xlu0 %v1988
        %v2000 = vpop.xlane.xlu0 %1999
        %2001 = vadd.xlane.f32.xlu0 %v1989
        %v2002 = vpop.xlane.xlu0 %2001
        %2003 = vadd.xlane.f32.xlu0 %v1990
        %v2004 = vpop.xlane.xlu0 %2003
        %2005 = vadd.xlane.f32.xlu0 %v1991
        %v2006 = vpop.xlane.xlu0 %2005
        %2007 = vadd.xlane.f32.xlu0 %v1992
        %v2008 = vpop.xlane.xlu0 %2007
        %v2009 = vmul.f32 %v1970, 0.03125
        %v2010 = vmul.f32 %v1972, 0.03125
        %v2011 = vmul.f32 %v1974, 0.03125
        %v2012 = vmul.f32 %v1976, 0.03125
        %v2013 = vmul.f32 %v1978, 0.03125
        %v2014 = vmul.f32 %v1980, 0.03125
        %v2015 = vmul.f32 %v1982, 0.03125
        %v2016 = vmul.f32 %v1984, 0.03125
        %v2017 = vmul.f32 %v1994, 0.03125
        %v2018 = vmul.f32 %v1996, 0.03125
        %v2019 = vmul.f32 %v1998, 0.03125
        %v2020 = vmul.f32 %v2000, 0.03125
        %v2021 = vmul.f32 %v2002, 0.03125
        %v2022 = vmul.f32 %v2004, 0.03125
        %v2023 = vmul.f32 %v2006, 0.03125
        %v2024 = vmul.f32 %v2008, 0.03125
        %v2025 = vmul.f32 %v2009, %v2009
        %v2026 = vmul.f32 %v2010, %v2010
        %v2027 = vmul.f32 %v2011, %v2011
        %v2028 = vmul.f32 %v2012, %v2012
        %v2029 = vmul.f32 %v2013, %v2013
        %v2030 = vmul.f32 %v2014, %v2014
        %v2031 = vmul.f32 %v2015, %v2015
        %v2032 = vmul.f32 %v2016, %v2016
        %v2033 = vsub.f32 %v2017, %v2025
        %v2034 = vsub.f32 %v2018, %v2026
        %v2035 = vsub.f32 %v2019, %v2027
        %v2036 = vsub.f32 %v2020, %v2028
        %v2037 = vsub.f32 %v2021, %v2029
        %v2038 = vsub.f32 %v2022, %v2030
        %v2039 = vsub.f32 %v2023, %v2031
        %v2040 = vsub.f32 %v2024, %v2032
        %v2041 = vmax.f32 %v2033, 0.0
        %v2042 = vmax.f32 %v2034, 0.0
        %v2043 = vmax.f32 %v2035, 0.0
        %v2044 = vmax.f32 %v2036, 0.0
        %v2045 = vmax.f32 %v2037, 0.0
        %v2046 = vmax.f32 %v2038, 0.0
        %v2047 = vmax.f32 %v2039, 0.0
        %v2048 = vmax.f32 %v2040, 0.0
        %v2049 = vsub.f32 %v1937, %v2009
        %v2050 = vsub.f32 %v1940, %v2010
        %v2051 = vsub.f32 %v1945, %v2011
        %v2052 = vsub.f32 %v1948, %v2012
        %v2053 = vsub.f32 %v1953, %v2013
        %v2054 = vsub.f32 %v1956, %v2014
        %v2055 = vsub.f32 %v1961, %v2015
        %v2056 = vsub.f32 %v1964, %v2016
        %v2057 = vadd.f32 %v2041, 1e-05
        %v2058 = vadd.f32 %v2042, 1e-05
        %v2059 = vadd.f32 %v2043, 1e-05
        %v2060 = vadd.f32 %v2044, 1e-05
        %v2061 = vadd.f32 %v2045, 1e-05
        %v2062 = vadd.f32 %v2046, 1e-05
        %v2063 = vadd.f32 %v2047, 1e-05
        %v2064 = vadd.f32 %v2048, 1e-05
        %v2065 = vrsqrt.pop %v2057
        %v2066 = vrsqrt.pop %v2058
        %v2067 = vrsqrt.pop %v2059
        %v2068 = vrsqrt.pop %v2060
        %v2069 = vrsqrt.pop %v2061
        %v2070 = vrsqrt.pop %v2062
        %v2071 = vrsqrt.pop %v2063
        %v2072 = vrsqrt.pop %v2064
        %v2073 = vmul.f32 %v2049, %v2065
        %v2074 = vmul.f32 %v2050, %v2066
        %v2075 = vmul.f32 %v2051, %v2067
        %v2076 = vmul.f32 %v2052, %v2068
        %v2077 = vmul.f32 %v2053, %v2069
        %v2078 = vmul.f32 %v2054, %v2070
        %v2079 = vmul.f32 %v2055, %v2071
        %v2080 = vmul.f32 %v2056, %v2072
        %v2082 = vlaneseq
        %v2083 = vshrl.u32 %v2082, 7
        %v2084 = vsub.s32 0, %v2083
        %v2085 = vrot.slane %v1967, %v2084
        %v2087 = vmul.f32 %v2073, %v2085
        %v2088 = vmul.f32 %v2074, %v2085
        %v2089 = vmul.f32 %v2075, %v2085
        %v2090 = vmul.f32 %v2076, %v2085
        %v2091 = vmul.f32 %v2077, %v2085
        %v2092 = vmul.f32 %v2078, %v2085
        %v2093 = vmul.f32 %v2079, %v2085
        %v2094 = vmul.f32 %v2080, %v2085
        %v2096 = vlaneseq
        %v2097 = vshrl.u32 %v2096, 7
        %v2098 = vsub.s32 0, %v2097
        %v2099 = vrot.slane %v1968, %v2098
        %v2101 = vadd.f32 %v2087, %v2099
        %v2102 = vadd.f32 %v2088, %v2099
        %v2103 = vadd.f32 %v2089, %v2099
        %v2104 = vadd.f32 %v2090, %v2099
        %v2105 = vadd.f32 %v2091, %v2099
        %v2106 = vadd.f32 %v2092, %v2099
        %v2107 = vadd.f32 %v2093, %v2099
        %v2108 = vadd.f32 %v2094, %v2099
        %v2109 = vmax.f32 %v2101, 0.0
        %v2110 = vmax.f32 %v2102, 0.0
        %v2111 = vmax.f32 %v2103, 0.0
        %v2112 = vmax.f32 %v2104, 0.0
        %v2113 = vmax.f32 %v2105, 0.0
        %v2114 = vmax.f32 %v2106, 0.0
        %v2115 = vmax.f32 %v2107, 0.0
        %v2116 = vmax.f32 %v2108, 0.0
        %v2117 = vld [vmem:[%s8] sm:$0xf]
        %v2118 = vld [vmem:[%s8 + $0x4] sm:$0xf]
        %v2119 = vld [vmem:[%s8 + $0x8] sm:$0xf]
        %v2120 = vld [vmem:[%s8 + $0xc] sm:$0xf]
        %v2121 = vld [vmem:[%s8 + $0x10] sm:$0xf]
        %v2122 = vld [vmem:[%s8 + $0x14] sm:$0xf]
        %v2123 = vld [vmem:[%s8 + $0x18] sm:$0xf]
        %v2124 = vld [vmem:[%s8 + $0x1c] sm:$0xf]
        %v2125 = vld [vmem:[%s8 + $0x20] sm:$0xf]
        %v2126 = vld [vmem:[%s8 + $0x24] sm:$0xf]
        %v2127 = vld [vmem:[%s8 + $0x28] sm:$0xf]
        %v2128 = vld [vmem:[%s8 + $0x2c] sm:$0xf]
        %v2129 = vld [vmem:[%s8 + $0x30] sm:$0xf]
        %v2130 = vld [vmem:[%s8 + $0x34] sm:$0xf]
        %v2131 = vld [vmem:[%s8 + $0x38] sm:$0xf]
        %v2132 = vld [vmem:[%s8 + $0x3c] sm:$0xf]
        %v2133 = vld [vmem:[#allocation13] sm:$0x1]
        %v2134 = vpack.c.bf16 %v2110, %v2109
        %v2135 = vpack.c.bf16 %v2112, %v2111
        %v2136 = vpack.c.bf16 %v2114, %v2113
        %v2137 = vpack.c.bf16 %v2116, %v2115
        %v2139 = vlaneseq
        %v2140 = vshrl.u32 %v2139, 7
        %v2141 = vsub.s32 0, %v2140
        %v2142 = vrot.slane %v2133, %v2141
        %v2160 = vunpack.c.l.b16 %v2117
        %v2161 = vunpack.c.l.b16 %v2118
        %v2162 = vunpack.c.l.b16 %v2119
        %v2163 = vunpack.c.l.b16 %v2120
        %v2164 = vunpack.c.l.b16 %v2121
        %v2165 = vunpack.c.l.b16 %v2122
        %v2166 = vunpack.c.l.b16 %v2123
        %v2167 = vunpack.c.l.b16 %v2124
        %v2168 = vunpack.c.l.b16 %v2125
        %v2169 = vunpack.c.l.b16 %v2126
        %v2170 = vunpack.c.l.b16 %v2127
        %v2171 = vunpack.c.l.b16 %v2128
        %v2172 = vunpack.c.l.b16 %v2129
        %v2173 = vunpack.c.l.b16 %v2130
        %v2174 = vunpack.c.l.b16 %v2131
        %v2175 = vunpack.c.l.b16 %v2132
        %v2176 = vpack.c.b16 %v2161, %v2160
        %v2177 = vpack.c.b16 %v2163, %v2162
        %v2178 = vpack.c.b16 %v2165, %v2164
        %v2179 = vpack.c.b16 %v2167, %v2166
        %v2180 = vpack.c.b16 %v2169, %v2168
        %v2181 = vpack.c.b16 %v2171, %v2170
        %v2182 = vpack.c.b16 %v2173, %v2172
        %v2183 = vpack.c.b16 %v2175, %v2174
        %2192 = vmatprep.subr.bf16.mxu0 0
        %2193 = vmatpush1.bf16.msra.mxu0 %v2176
        %2194 = vmatprep.subr.bf16.mxu0 0
        %2195 = vmatpush1.bf16.msra.mxu0 %v2177
        %2196 = vmatprep.subr.bf16.mxu0 0
        %2197 = vmatpush1.bf16.msra.mxu0 %v2178
        %2198 = vmatprep.subr.bf16.mxu0 0
        %2199 = vmatpush1.bf16.msra.mxu0 %v2179
        %2200 = vmatprep.subr.bf16.mxu0 0
        %2201 = vmatpush1.bf16.msra.mxu0 %v2180
        %2202 = vmatprep.subr.bf16.mxu0 0
        %2203 = vmatpush1.bf16.msra.mxu0 %v2181
        %2204 = vmatprep.subr.bf16.mxu0 0
        %2205 = vmatpush1.bf16.msra.mxu0 %v2182
        %2206 = vmatprep.subr.bf16.mxu0 0
        %2207 = vmatpush1.bf16.msra.mxu0 %v2183
        %2208 = vmatprep.subr.bf16.mxu0 0
        %2209 = vmatpush1.bf16.msra.mxu0 0
        %2210 = vmatprep.subr.bf16.mxu0 0
        %2211 = vmatpush1.bf16.msra.mxu0 0
        %2212 = vmatprep.subr.bf16.mxu0 0
        %2213 = vmatpush1.bf16.msra.mxu0 0
        %2214 = vmatprep.subr.bf16.mxu0 0
        %2215 = vmatpush1.bf16.msra.mxu0 0
        %2216 = vmatprep.subr.bf16.mxu0 0
        %2217 = vmatpush1.bf16.msra.mxu0 0
        %2218 = vmatprep.subr.bf16.mxu0 0
        %2219 = vmatpush1.bf16.msra.mxu0 0
        %2220 = vmatprep.subr.bf16.mxu0 0
        %2221 = vmatpush1.bf16.msra.mxu0 0
        %2222 = vmatprep.subr.bf16.mxu0 0
        %2223 = vmatpush1.bf16.msra.mxu0 0
        %2224 = vmatprep.mubr.bf16.mxu0 0
        %2225 = vmatmul.mubr.bf16.gmra.mrb[0].mxu0 %v2134
        %v2226 = vpop.f32.mrb[0].mxu0
        %v2227 = vadd.f32 %v2142, %v2226
        %v2228 = vpop.f32.mrb[0].mxu0
        %v2229 = vpop.f32.mrb[0].mxu0
        %v2230 = vadd.f32 %v2142, %v2229
        %v2231 = vpop.f32.mrb[0].mxu0
        %2232 = vmatprep.mubr.bf16.mxu0 0
        %2233 = vmatmul.mubr.bf16.gmra.mrb[0].mxu0 %v2135
        %v2234 = vpop.f32.mrb[0].mxu0
        %v2235 = vadd.f32 %v2142, %v2234
        %v2236 = vpop.f32.mrb[0].mxu0
        %v2237 = vpop.f32.mrb[0].mxu0
        %v2238 = vadd.f32 %v2142, %v2237
        %v2239 = vpop.f32.mrb[0].mxu0
        %2240 = vmatprep.mubr.bf16.mxu0 0
        %2241 = vmatmul.mubr.bf16.gmra.mrb[0].mxu0 %v2136
        %v2242 = vpop.f32.mrb[0].mxu0
        %v2243 = vadd.f32 %v2142, %v2242
        %v2244 = vpop.f32.mrb[0].mxu0
        %v2245 = vpop.f32.mrb[0].mxu0
        %v2246 = vadd.f32 %v2142, %v2245
        %v2247 = vpop.f32.mrb[0].mxu0
        %2248 = vmatprep.mubr.bf16.mxu0 0
        %2249 = vmatmul.mubr.bf16.gmra.mrb[0].mxu0 %v2137
        %v2250 = vpop.f32.mrb[0].mxu0
        %v2251 = vadd.f32 %v2142, %v2250
        %v2252 = vpop.f32.mrb[0].mxu0
        %v2253 = vpop.f32.mrb[0].mxu0
        %v2254 = vadd.f32 %v2142, %v2253
        %v2255 = vpop.f32.mrb[0].mxu0
        %2256 = vdwg.mxu0
        %v2257 = vld [vmem:[#allocation14] sm:$0x1]
        %v2258 = vld [vmem:[#allocation16] sm:$0x1]
        %2259 = vadd.xlane.f32.xlu0 %v2227
        %v2260 = vpop.xlane.xlu0 %2259
        %2261 = vadd.xlane.f32.xlu0 %v2230
        %v2262 = vpop.xlane.xlu0 %2261
        %2263 = vadd.xlane.f32.xlu0 %v2235
        %v2264 = vpop.xlane.xlu0 %2263
        %2265 = vadd.xlane.f32.xlu0 %v2238
        %v2266 = vpop.xlane.xlu0 %2265
        %2267 = vadd.xlane.f32.xlu0 %v2243
        %v2268 = vpop.xlane.xlu0 %2267
        %2269 = vadd.xlane.f32.xlu0 %v2246
        %v2270 = vpop.xlane.xlu0 %2269
        %2271 = vadd.xlane.f32.xlu0 %v2251
        %v2272 = vpop.xlane.xlu0 %2271
        %2273 = vadd.xlane.f32.xlu0 %v2254
        %v2274 = vpop.xlane.xlu0 %2273
        %v2275 = vmul.f32 %v2227, %v2227
        %v2276 = vmul.f32 %v2230, %v2230
        %v2277 = vmul.f32 %v2235, %v2235
        %v2278 = vmul.f32 %v2238, %v2238
        %v2279 = vmul.f32 %v2243, %v2243
        %v2280 = vmul.f32 %v2246, %v2246
        %v2281 = vmul.f32 %v2251, %v2251
        %v2282 = vmul.f32 %v2254, %v2254
        %2283 = vadd.xlane.f32.xlu0 %v2275
        %v2284 = vpop.xlane.xlu0 %2283
        %2285 = vadd.xlane.f32.xlu0 %v2276
        %v2286 = vpop.xlane.xlu0 %2285
        %2287 = vadd.xlane.f32.xlu0 %v2277
        %v2288 = vpop.xlane.xlu0 %2287
        %2289 = vadd.xlane.f32.xlu0 %v2278
        %v2290 = vpop.xlane.xlu0 %2289
        %2291 = vadd.xlane.f32.xlu0 %v2279
        %v2292 = vpop.xlane.xlu0 %2291
        %2293 = vadd.xlane.f32.xlu0 %v2280
        %v2294 = vpop.xlane.xlu0 %2293
        %2295 = vadd.xlane.f32.xlu0 %v2281
        %v2296 = vpop.xlane.xlu0 %2295
        %2297 = vadd.xlane.f32.xlu0 %v2282
        %v2298 = vpop.xlane.xlu0 %2297
        %v2299 = vmul.f32 %v2260, 0.03125
        %v2300 = vmul.f32 %v2262, 0.03125
        %v2301 = vmul.f32 %v2264, 0.03125
        %v2302 = vmul.f32 %v2266, 0.03125
        %v2303 = vmul.f32 %v2268, 0.03125
        %v2304 = vmul.f32 %v2270, 0.03125
        %v2305 = vmul.f32 %v2272, 0.03125
        %v2306 = vmul.f32 %v2274, 0.03125
        %v2307 = vmul.f32 %v2284, 0.03125
        %v2308 = vmul.f32 %v2286, 0.03125
        %v2309 = vmul.f32 %v2288, 0.03125
        %v2310 = vmul.f32 %v2290, 0.03125
        %v2311 = vmul.f32 %v2292, 0.03125
        %v2312 = vmul.f32 %v2294, 0.03125
        %v2313 = vmul.f32 %v2296, 0.03125
        %v2314 = vmul.f32 %v2298, 0.03125
        %v2315 = vmul.f32 %v2299, %v2299
        %v2316 = vmul.f32 %v2300, %v2300
        %v2317 = vmul.f32 %v2301, %v2301
        %v2318 = vmul.f32 %v2302, %v2302
        %v2319 = vmul.f32 %v2303, %v2303
        %v2320 = vmul.f32 %v2304, %v2304
        %v2321 = vmul.f32 %v2305, %v2305
        %v2322 = vmul.f32 %v2306, %v2306
        %v2323 = vsub.f32 %v2307, %v2315
        %v2324 = vsub.f32 %v2308, %v2316
        %v2325 = vsub.f32 %v2309, %v2317
        %v2326 = vsub.f32 %v2310, %v2318
        %v2327 = vsub.f32 %v2311, %v2319
        %v2328 = vsub.f32 %v2312, %v2320
        %v2329 = vsub.f32 %v2313, %v2321
        %v2330 = vsub.f32 %v2314, %v2322
        %v2331 = vmax.f32 %v2323, 0.0
        %v2332 = vmax.f32 %v2324, 0.0
        %v2333 = vmax.f32 %v2325, 0.0
        %v2334 = vmax.f32 %v2326, 0.0
        %v2335 = vmax.f32 %v2327, 0.0
        %v2336 = vmax.f32 %v2328, 0.0
        %v2337 = vmax.f32 %v2329, 0.0
        %v2338 = vmax.f32 %v2330, 0.0
        %v2339 = vsub.f32 %v2227, %v2299
        %v2340 = vsub.f32 %v2230, %v2300
        %v2341 = vsub.f32 %v2235, %v2301
        %v2342 = vsub.f32 %v2238, %v2302
        %v2343 = vsub.f32 %v2243, %v2303
        %v2344 = vsub.f32 %v2246, %v2304
        %v2345 = vsub.f32 %v2251, %v2305
        %v2346 = vsub.f32 %v2254, %v2306
        %v2347 = vadd.f32 %v2331, 1e-05
        %v2348 = vadd.f32 %v2332, 1e-05
        %v2349 = vadd.f32 %v2333, 1e-05
        %v2350 = vadd.f32 %v2334, 1e-05
        %v2351 = vadd.f32 %v2335, 1e-05
        %v2352 = vadd.f32 %v2336, 1e-05
        %v2353 = vadd.f32 %v2337, 1e-05
        %v2354 = vadd.f32 %v2338, 1e-05
        %v2355 = vrsqrt.pop %v2347
        %v2356 = vrsqrt.pop %v2348
        %v2357 = vrsqrt.pop %v2349
        %v2358 = vrsqrt.pop %v2350
        %v2359 = vrsqrt.pop %v2351
        %v2360 = vrsqrt.pop %v2352
        %v2361 = vrsqrt.pop %v2353
        %v2362 = vrsqrt.pop %v2354
        %v2363 = vmul.f32 %v2339, %v2355
        %v2364 = vmul.f32 %v2340, %v2356
        %v2365 = vmul.f32 %v2341, %v2357
        %v2366 = vmul.f32 %v2342, %v2358
        %v2367 = vmul.f32 %v2343, %v2359
        %v2368 = vmul.f32 %v2344, %v2360
        %v2369 = vmul.f32 %v2345, %v2361
        %v2370 = vmul.f32 %v2346, %v2362
        %v2372 = vlaneseq
        %v2373 = vshrl.u32 %v2372, 7
        %v2374 = vsub.s32 0, %v2373
        %v2375 = vrot.slane %v2257, %v2374
        %v2377 = vmul.f32 %v2363, %v2375
        %v2378 = vmul.f32 %v2364, %v2375
        %v2379 = vmul.f32 %v2365, %v2375
        %v2380 = vmul.f32 %v2366, %v2375
        %v2381 = vmul.f32 %v2367, %v2375
        %v2382 = vmul.f32 %v2368, %v2375
        %v2383 = vmul.f32 %v2369, %v2375
        %v2384 = vmul.f32 %v2370, %v2375
        %v2386 = vlaneseq
        %v2387 = vshrl.u32 %v2386, 7
        %v2388 = vsub.s32 0, %v2387
        %v2389 = vrot.slane %v2258, %v2388
        %v2391 = vadd.f32 %v2377, %v2389
        %v2392 = vadd.f32 %v2378, %v2389
        %v2393 = vadd.f32 %v2379, %v2389
        %v2394 = vadd.f32 %v2380, %v2389
        %v2395 = vadd.f32 %v2381, %v2389
        %v2396 = vadd.f32 %v2382, %v2389
        %v2397 = vadd.f32 %v2383, %v2389
        %v2398 = vadd.f32 %v2384, %v2389
        %v2399 = vmax.f32 %v2391, 0.0
        %v2400 = vmax.f32 %v2392, 0.0
        %v2401 = vmax.f32 %v2393, 0.0
        %v2402 = vmax.f32 %v2394, 0.0
        %v2403 = vmax.f32 %v2395, 0.0
        %v2404 = vmax.f32 %v2396, 0.0
        %v2405 = vmax.f32 %v2397, 0.0
        %v2406 = vmax.f32 %v2398, 0.0
        %v2407 = vld [vmem:[#allocation17] sm:$0xf]
        %v2408 = vld [vmem:[#allocation17 + $0x4] sm:$0xf]
        %v2409 = vld [vmem:[#allocation17 + $0x8] sm:$0xf]
        %v2410 = vld [vmem:[#allocation17 + $0xc] sm:$0xf]
        %v2411 = vld [vmem:[#allocation17 + $0x10] sm:$0xf]
        %v2412 = vld [vmem:[#allocation17 + $0x14] sm:$0xf]
        %v2413 = vld [vmem:[#allocation17 + $0x18] sm:$0xf]
        %v2414 = vld [vmem:[#allocation17 + $0x1c] sm:$0xf]
        %v2415 = vld [vmem:[#allocation17 + $0x20] sm:$0xf]
        %v2416 = vld [vmem:[#allocation17 + $0x24] sm:$0xf]
        %v2417 = vld [vmem:[#allocation17 + $0x28] sm:$0xf]
        %v2418 = vld [vmem:[#allocation17 + $0x2c] sm:$0xf]
        %v2419 = vld [vmem:[#allocation17 + $0x30] sm:$0xf]
        %v2420 = vld [vmem:[#allocation17 + $0x34] sm:$0xf]
        %v2421 = vld [vmem:[#allocation17 + $0x38] sm:$0xf]
        %v2422 = vld [vmem:[#allocation17 + $0x3c] sm:$0xf]
        %v2423 = vld [vmem:[#allocation19] sm:$0x1]
        %v2424 = vpack.c.bf16 %v2400, %v2399
        %v2425 = vpack.c.bf16 %v2402, %v2401
        %v2426 = vpack.c.bf16 %v2404, %v2403
        %v2427 = vpack.c.bf16 %v2406, %v2405
        %v2429 = vlaneseq
        %v2430 = vshrl.u32 %v2429, 7
        %v2431 = vsub.s32 0, %v2430
        %v2432 = vrot.slane %v2423, %v2431
        %v2450 = vunpack.c.l.b16 %v2407
        %v2451 = vunpack.c.l.b16 %v2408
        %v2452 = vunpack.c.l.b16 %v2409
        %v2453 = vunpack.c.l.b16 %v2410
        %v2454 = vunpack.c.l.b16 %v2411
        %v2455 = vunpack.c.l.b16 %v2412
        %v2456 = vunpack.c.l.b16 %v2413
        %v2457 = vunpack.c.l.b16 %v2414
        %v2458 = vunpack.c.l.b16 %v2415
        %v2459 = vunpack.c.l.b16 %v2416
        %v2460 = vunpack.c.l.b16 %v2417
        %v2461 = vunpack.c.l.b16 %v2418
        %v2462 = vunpack.c.l.b16 %v2419
        %v2463 = vunpack.c.l.b16 %v2420
        %v2464 = vunpack.c.l.b16 %v2421
        %v2465 = vunpack.c.l.b16 %v2422
        %v2466 = vpack.c.b16 %v2451, %v2450
        %v2467 = vpack.c.b16 %v2453, %v2452
        %v2468 = vpack.c.b16 %v2455, %v2454
        %v2469 = vpack.c.b16 %v2457, %v2456
        %v2470 = vpack.c.b16 %v2459, %v2458
        %v2471 = vpack.c.b16 %v2461, %v2460
        %v2472 = vpack.c.b16 %v2463, %v2462
        %v2473 = vpack.c.b16 %v2465, %v2464
        %2482 = vmatprep.subr.bf16.mxu0 0
        %2483 = vmatpush1.bf16.msra.mxu0 %v2466
        %2484 = vmatprep.subr.bf16.mxu0 0
        %2485 = vmatpush1.bf16.msra.mxu0 %v2467
        %2486 = vmatprep.subr.bf16.mxu0 0
        %2487 = vmatpush1.bf16.msra.mxu0 %v2468
        %2488 = vmatprep.subr.bf16.mxu0 0
        %2489 = vmatpush1.bf16.msra.mxu0 %v2469
        %2490 = vmatprep.subr.bf16.mxu0 0
        %2491 = vmatpush1.bf16.msra.mxu0 %v2470
        %2492 = vmatprep.subr.bf16.mxu0 0
        %2493 = vmatpush1.bf16.msra.mxu0 %v2471
        %2494 = vmatprep.subr.bf16.mxu0 0
        %2495 = vmatpush1.bf16.msra.mxu0 %v2472
        %2496 = vmatprep.subr.bf16.mxu0 0
        %2497 = vmatpush1.bf16.msra.mxu0 %v2473
        %2498 = vmatprep.subr.bf16.mxu0 0
        %2499 = vmatpush1.bf16.msra.mxu0 0
        %2500 = vmatprep.subr.bf16.mxu0 0
        %2501 = vmatpush1.bf16.msra.mxu0 0
        %2502 = vmatprep.subr.bf16.mxu0 0
        %2503 = vmatpush1.bf16.msra.mxu0 0
        %2504 = vmatprep.subr.bf16.mxu0 0
        %2505 = vmatpush1.bf16.msra.mxu0 0
        %2506 = vmatprep.subr.bf16.mxu0 0
        %2507 = vmatpush1.bf16.msra.mxu0 0
        %2508 = vmatprep.subr.bf16.mxu0 0
        %2509 = vmatpush1.bf16.msra.mxu0 0
        %2510 = vmatprep.subr.bf16.mxu0 0
        %2511 = vmatpush1.bf16.msra.mxu0 0
        %2512 = vmatprep.subr.bf16.mxu0 0
        %2513 = vmatpush1.bf16.msra.mxu0 0
        %2514 = vmatprep.mubr.bf16.mxu0 0
        %2515 = vmatmul.mubr.bf16.gmra.mrb[0].mxu0 %v2424
        %v2516 = vpop.f32.mrb[0].mxu0
        %v2517 = vadd.f32 %v2432, %v2516
        %v2518 = vpop.f32.mrb[0].mxu0
        %v2519 = vpop.f32.mrb[0].mxu0
        %v2520 = vadd.f32 %v2432, %v2519
        %v2521 = vpop.f32.mrb[0].mxu0
        %2522 = vmatprep.mubr.bf16.mxu0 0
        %2523 = vmatmul.mubr.bf16.gmra.mrb[0].mxu0 %v2425
        %v2524 = vpop.f32.mrb[0].mxu0
        %v2525 = vadd.f32 %v2432, %v2524
        %v2526 = vpop.f32.mrb[0].mxu0
        %v2527 = vpop.f32.mrb[0].mxu0
        %v2528 = vadd.f32 %v2432, %v2527
        %v2529 = vpop.f32.mrb[0].mxu0
        %2530 = vmatprep.mubr.bf16.mxu0 0
        %2531 = vmatmul.mubr.bf16.gmra.mrb[0].mxu0 %v2426
        %v2532 = vpop.f32.mrb[0].mxu0
        %v2533 = vadd.f32 %v2432, %v2532
        %v2534 = vpop.f32.mrb[0].mxu0
        %v2535 = vpop.f32.mrb[0].mxu0
        %v2536 = vadd.f32 %v2432, %v2535
        %v2537 = vpop.f32.mrb[0].mxu0
        %2538 = vmatprep.mubr.bf16.mxu0 0
        %2539 = vmatmul.mubr.bf16.gmra.mrb[0].mxu0 %v2427
        %v2540 = vpop.f32.mrb[0].mxu0
        %v2541 = vadd.f32 %v2432, %v2540
        %v2542 = vpop.f32.mrb[0].mxu0
        %v2543 = vpop.f32.mrb[0].mxu0
        %v2544 = vadd.f32 %v2432, %v2543
        %v2545 = vpop.f32.mrb[0].mxu0
        %2546 = vdwg.mxu0
        %v2547 = vld [vmem:[#allocation20] sm:$0x1]
        %v2548 = vld [vmem:[#allocation22] sm:$0x1]
        %2549 = vadd.xlane.f32.xlu0 %v2517
        %v2550 = vpop.xlane.xlu0 %2549
        %2551 = vadd.xlane.f32.xlu0 %v2520
        %v2552 = vpop.xlane.xlu0 %2551
        %2553 = vadd.xlane.f32.xlu0 %v2525
        %v2554 = vpop.xlane.xlu0 %2553
        %2555 = vadd.xlane.f32.xlu0 %v2528
        %v2556 = vpop.xlane.xlu0 %2555
        %2557 = vadd.xlane.f32.xlu0 %v2533
        %v2558 = vpop.xlane.xlu0 %2557
        %2559 = vadd.xlane.f32.xlu0 %v2536
        %v2560 = vpop.xlane.xlu0 %2559
        %2561 = vadd.xlane.f32.xlu0 %v2541
        %v2562 = vpop.xlane.xlu0 %2561
        %2563 = vadd.xlane.f32.xlu0 %v2544
        %v2564 = vpop.xlane.xlu0 %2563
        %v2565 = vmul.f32 %v2517, %v2517
        %v2566 = vmul.f32 %v2520, %v2520
        %v2567 = vmul.f32 %v2525, %v2525
        %v2568 = vmul.f32 %v2528, %v2528
        %v2569 = vmul.f32 %v2533, %v2533
        %v2570 = vmul.f32 %v2536, %v2536
        %v2571 = vmul.f32 %v2541, %v2541
        %v2572 = vmul.f32 %v2544, %v2544
        %2573 = vadd.xlane.f32.xlu0 %v2565
        %v2574 = vpop.xlane.xlu0 %2573
        %2575 = vadd.xlane.f32.xlu0 %v2566
        %v2576 = vpop.xlane.xlu0 %2575
        %2577 = vadd.xlane.f32.xlu0 %v2567
        %v2578 = vpop.xlane.xlu0 %2577
        %2579 = vadd.xlane.f32.xlu0 %v2568
        %v2580 = vpop.xlane.xlu0 %2579
        %2581 = vadd.xlane.f32.xlu0 %v2569
        %v2582 = vpop.xlane.xlu0 %2581
        %2583 = vadd.xlane.f32.xlu0 %v2570
        %v2584 = vpop.xlane.xlu0 %2583
        %2585 = vadd.xlane.f32.xlu0 %v2571
        %v2586 = vpop.xlane.xlu0 %2585
        %2587 = vadd.xlane.f32.xlu0 %v2572
        %v2588 = vpop.xlane.xlu0 %2587
        %v2589 = vmul.f32 %v2550, 0.03125
        %v2590 = vmul.f32 %v2552, 0.03125
        %v2591 = vmul.f32 %v2554, 0.03125
        %v2592 = vmul.f32 %v2556, 0.03125
        %v2593 = vmul.f32 %v2558, 0.03125
        %v2594 = vmul.f32 %v2560, 0.03125
        %v2595 = vmul.f32 %v2562, 0.03125
        %v2596 = vmul.f32 %v2564, 0.03125
        %v2597 = vmul.f32 %v2574, 0.03125
        %v2598 = vmul.f32 %v2576, 0.03125
        %v2599 = vmul.f32 %v2578, 0.03125
        %v2600 = vmul.f32 %v2580, 0.03125
        %v2601 = vmul.f32 %v2582, 0.03125
        %v2602 = vmul.f32 %v2584, 0.03125
        %v2603 = vmul.f32 %v2586, 0.03125
        %v2604 = vmul.f32 %v2588, 0.03125
        %v2605 = vmul.f32 %v2589, %v2589
        %v2606 = vmul.f32 %v2590, %v2590
        %v2607 = vmul.f32 %v2591, %v2591
        %v2608 = vmul.f32 %v2592, %v2592
        %v2609 = vmul.f32 %v2593, %v2593
        %v2610 = vmul.f32 %v2594, %v2594
        %v2611 = vmul.f32 %v2595, %v2595
        %v2612 = vmul.f32 %v2596, %v2596
        %v2613 = vsub.f32 %v2597, %v2605
        %v2614 = vsub.f32 %v2598, %v2606
        %v2615 = vsub.f32 %v2599, %v2607
        %v2616 = vsub.f32 %v2600, %v2608
        %v2617 = vsub.f32 %v2601, %v2609
        %v2618 = vsub.f32 %v2602, %v2610
        %v2619 = vsub.f32 %v2603, %v2611
        %v2620 = vsub.f32 %v2604, %v2612
        %v2621 = vmax.f32 %v2613, 0.0
        %v2622 = vmax.f32 %v2614, 0.0
        %v2623 = vmax.f32 %v2615, 0.0
        %v2624 = vmax.f32 %v2616, 0.0
        %v2625 = vmax.f32 %v2617, 0.0
        %v2626 = vmax.f32 %v2618, 0.0
        %v2627 = vmax.f32 %v2619, 0.0
        %v2628 = vmax.f32 %v2620, 0.0
        %v2629 = vsub.f32 %v2517, %v2589
        %v2630 = vsub.f32 %v2520, %v2590
        %v2631 = vsub.f32 %v2525, %v2591
        %v2632 = vsub.f32 %v2528, %v2592
        %v2633 = vsub.f32 %v2533, %v2593
        %v2634 = vsub.f32 %v2536, %v2594
        %v2635 = vsub.f32 %v2541, %v2595
        %v2636 = vsub.f32 %v2544, %v2596
        %v2637 = vadd.f32 %v2621, 1e-05
        %v2638 = vadd.f32 %v2622, 1e-05
        %v2639 = vadd.f32 %v2623, 1e-05
        %v2640 = vadd.f32 %v2624, 1e-05
        %v2641 = vadd.f32 %v2625, 1e-05
        %v2642 = vadd.f32 %v2626, 1e-05
        %v2643 = vadd.f32 %v2627, 1e-05
        %v2644 = vadd.f32 %v2628, 1e-05
        %v2645 = vrsqrt.pop %v2637
        %v2646 = vrsqrt.pop %v2638
        %v2647 = vrsqrt.pop %v2639
        %v2648 = vrsqrt.pop %v2640
        %v2649 = vrsqrt.pop %v2641
        %v2650 = vrsqrt.pop %v2642
        %v2651 = vrsqrt.pop %v2643
        %v2652 = vrsqrt.pop %v2644
        %v2653 = vmul.f32 %v2629, %v2645
        %v2654 = vmul.f32 %v2630, %v2646
        %v2655 = vmul.f32 %v2631, %v2647
        %v2656 = vmul.f32 %v2632, %v2648
        %v2657 = vmul.f32 %v2633, %v2649
        %v2658 = vmul.f32 %v2634, %v2650
        %v2659 = vmul.f32 %v2635, %v2651
        %v2660 = vmul.f32 %v2636, %v2652
        %v2662 = vlaneseq
        %v2663 = vshrl.u32 %v2662, 7
        %v2664 = vsub.s32 0, %v2663
        %v2665 = vrot.slane %v2547, %v2664
        %v2667 = vmul.f32 %v2653, %v2665
        %v2668 = vmul.f32 %v2654, %v2665
        %v2669 = vmul.f32 %v2655, %v2665
        %v2670 = vmul.f32 %v2656, %v2665
        %v2671 = vmul.f32 %v2657, %v2665
        %v2672 = vmul.f32 %v2658, %v2665
        %v2673 = vmul.f32 %v2659, %v2665
        %v2674 = vmul.f32 %v2660, %v2665
        %v2676 = vlaneseq
        %v2677 = vshrl.u32 %v2676, 7
        %v2678 = vsub.s32 0, %v2677
        %v2679 = vrot.slane %v2548, %v2678
        %v2681 = vadd.f32 %v2667, %v2679
        %v2682 = vadd.f32 %v2668, %v2679
        %v2683 = vadd.f32 %v2669, %v2679
        %v2684 = vadd.f32 %v2670, %v2679
        %v2685 = vadd.f32 %v2671, %v2679
        %v2686 = vadd.f32 %v2672, %v2679
        %v2687 = vadd.f32 %v2673, %v2679
        %v2688 = vadd.f32 %v2674, %v2679
        %v2689 = vmax.f32 %v2681, 0.0
        %v2690 = vmax.f32 %v2682, 0.0
        %v2691 = vmax.f32 %v2683, 0.0
        %v2692 = vmax.f32 %v2684, 0.0
        %v2693 = vmax.f32 %v2685, 0.0
        %v2694 = vmax.f32 %v2686, 0.0
        %v2695 = vmax.f32 %v2687, 0.0
        %v2696 = vmax.f32 %v2688, 0.0
        %v2697 = vld [vmem:[%s16] sm:$0xf]
        %v2698 = vld [vmem:[%s16 + $0x4] sm:$0xf]
        %v2699 = vld [vmem:[%s16 + $0x8] sm:$0xf]
        %v2700 = vld [vmem:[%s16 + $0xc] sm:$0xf]
        %v2701 = vld [vmem:[%s16 + $0x10] sm:$0xf]
        %v2702 = vld [vmem:[%s16 + $0x14] sm:$0xf]
        %v2703 = vld [vmem:[%s16 + $0x18] sm:$0xf]
        %v2704 = vld [vmem:[%s16 + $0x1c] sm:$0xf]
        %v2705 = vld [vmem:[%s16 + $0x20] sm:$0xf]
        %v2706 = vld [vmem:[%s16 + $0x24] sm:$0xf]
        %v2707 = vld [vmem:[%s16 + $0x28] sm:$0xf]
        %v2708 = vld [vmem:[%s16 + $0x2c] sm:$0xf]
        %v2709 = vld [vmem:[%s16 + $0x30] sm:$0xf]
        %v2710 = vld [vmem:[%s16 + $0x34] sm:$0xf]
        %v2711 = vld [vmem:[%s16 + $0x38] sm:$0xf]
        %v2712 = vld [vmem:[%s16 + $0x3c] sm:$0xf]
        %v2713 = vld [vmem:[%s17] sm:$0x1]
        %v2714 = vpack.c.bf16 %v2690, %v2689
        %v2715 = vpack.c.bf16 %v2692, %v2691
        %v2716 = vpack.c.bf16 %v2694, %v2693
        %v2717 = vpack.c.bf16 %v2696, %v2695
        %v2719 = vlaneseq
        %v2720 = vshrl.u32 %v2719, 7
        %v2721 = vsub.s32 0, %v2720
        %v2722 = vrot.slane %v2713, %v2721
        %v2740 = vunpack.c.l.b16 %v2697
        %v2741 = vunpack.c.l.b16 %v2698
        %v2742 = vunpack.c.l.b16 %v2699
        %v2743 = vunpack.c.l.b16 %v2700
        %v2744 = vunpack.c.l.b16 %v2701
        %v2745 = vunpack.c.l.b16 %v2702
        %v2746 = vunpack.c.l.b16 %v2703
        %v2747 = vunpack.c.l.b16 %v2704
        %v2748 = vunpack.c.l.b16 %v2705
        %v2749 = vunpack.c.l.b16 %v2706
        %v2750 = vunpack.c.l.b16 %v2707
        %v2751 = vunpack.c.l.b16 %v2708
        %v2752 = vunpack.c.l.b16 %v2709
        %v2753 = vunpack.c.l.b16 %v2710
        %v2754 = vunpack.c.l.b16 %v2711
        %v2755 = vunpack.c.l.b16 %v2712
        %v2756 = vpack.c.b16 %v2741, %v2740
        %v2757 = vpack.c.b16 %v2743, %v2742
        %v2758 = vpack.c.b16 %v2745, %v2744
        %v2759 = vpack.c.b16 %v2747, %v2746
        %v2760 = vpack.c.b16 %v2749, %v2748
        %v2761 = vpack.c.b16 %v2751, %v2750
        %v2762 = vpack.c.b16 %v2753, %v2752
        %v2763 = vpack.c.b16 %v2755, %v2754
        %2772 = vmatprep.subr.bf16.mxu0 0
        %2773 = vmatpush1.bf16.msra.mxu0 %v2756
        %2774 = vmatprep.subr.bf16.mxu0 0
        %2775 = vmatpush1.bf16.msra.mxu0 %v2757
        %2776 = vmatprep.subr.bf16.mxu0 0
        %2777 = vmatpush1.bf16.msra.mxu0 %v2758
        %2778 = vmatprep.subr.bf16.mxu0 0
        %2779 = vmatpush1.bf16.msra.mxu0 %v2759
        %2780 = vmatprep.subr.bf16.mxu0 0
        %2781 = vmatpush1.bf16.msra.mxu0 %v2760
        %2782 = vmatprep.subr.bf16.mxu0 0
        %2783 = vmatpush1.bf16.msra.mxu0 %v2761
        %2784 = vmatprep.subr.bf16.mxu0 0
        %2785 = vmatpush1.bf16.msra.mxu0 %v2762
        %2786 = vmatprep.subr.bf16.mxu0 0
        %2787 = vmatpush1.bf16.msra.mxu0 %v2763
        %2788 = vmatprep.subr.bf16.mxu0 0
        %2789 = vmatpush1.bf16.msra.mxu0 0
        %2790 = vmatprep.subr.bf16.mxu0 0
        %2791 = vmatpush1.bf16.msra.mxu0 0
        %2792 = vmatprep.subr.bf16.mxu0 0
        %2793 = vmatpush1.bf16.msra.mxu0 0
        %2794 = vmatprep.subr.bf16.mxu0 0
        %2795 = vmatpush1.bf16.msra.mxu0 0
        %2796 = vmatprep.subr.bf16.mxu0 0
        %2797 = vmatpush1.bf16.msra.mxu0 0
        %2798 = vmatprep.subr.bf16.mxu0 0
        %2799 = vmatpush1.bf16.msra.mxu0 0
        %2800 = vmatprep.subr.bf16.mxu0 0
        %2801 = vmatpush1.bf16.msra.mxu0 0
        %2802 = vmatprep.subr.bf16.mxu0 0
        %2803 = vmatpush1.bf16.msra.mxu0 0
        %2804 = vmatprep.mubr.bf16.mxu0 0
        %2805 = vmatmul.mubr.bf16.gmra.mrb[0].mxu0 %v2714
        %v2806 = vpop.f32.mrb[0].mxu0
        %v2807 = vadd.f32 %v2722, %v2806
        %v2808 = vpop.f32.mrb[0].mxu0
        %v2809 = vpop.f32.mrb[0].mxu0
        %v2810 = vadd.f32 %v2722, %v2809
        %v2811 = vpop.f32.mrb[0].mxu0
        %2812 = vmatprep.mubr.bf16.mxu0 0
        %2813 = vmatmul.mubr.bf16.gmra.mrb[0].mxu0 %v2715
        %v2814 = vpop.f32.mrb[0].mxu0
        %v2815 = vadd.f32 %v2722, %v2814
        %v2816 = vpop.f32.mrb[0].mxu0
        %v2817 = vpop.f32.mrb[0].mxu0
        %v2818 = vadd.f32 %v2722, %v2817
        %v2819 = vpop.f32.mrb[0].mxu0
        %2820 = vmatprep.mubr.bf16.mxu0 0
        %2821 = vmatmul.mubr.bf16.gmra.mrb[0].mxu0 %v2716
        %v2822 = vpop.f32.mrb[0].mxu0
        %v2823 = vadd.f32 %v2722, %v2822
        %v2824 = vpop.f32.mrb[0].mxu0
        %v2825 = vpop.f32.mrb[0].mxu0
        %v2826 = vadd.f32 %v2722, %v2825
        %v2827 = vpop.f32.mrb[0].mxu0
        %2828 = vmatprep.mubr.bf16.mxu0 0
        %2829 = vmatmul.mubr.bf16.gmra.mrb[0].mxu0 %v2717
        %v2830 = vpop.f32.mrb[0].mxu0
        %v2831 = vadd.f32 %v2722, %v2830
        %v2832 = vpop.f32.mrb[0].mxu0
        %v2833 = vpop.f32.mrb[0].mxu0
        %v2834 = vadd.f32 %v2722, %v2833
        %v2835 = vpop.f32.mrb[0].mxu0
        %2836 = vdwg.mxu0
        %2837 = vst [vmem:[%s734] sm:$0xff] %v2807
        %2838 = vst [vmem:[%s734 + $0x8] sm:$0xff] %v2810
        %2839 = vst [vmem:[%s734 + $0x10] sm:$0xff] %v2815
        %2840 = vst [vmem:[%s734 + $0x18] sm:$0xff] %v2818
        %2841 = vst [vmem:[%s734 + $0x20] sm:$0xff] %v2823
        %2842 = vst [vmem:[%s734 + $0x28] sm:$0xff] %v2826
        %2843 = vst [vmem:[%s734 + $0x30] sm:$0xff] %v2831
        %2844 = vst [vmem:[%s734 + $0x38] sm:$0xff] %v2834
        %s2845 = sand.u32 %s430, 1
        %s2846 = scalar_lea.sflag [#allocation4], %s2845
        %s2847 = sand.u32 %s430, 1
        %s2848 = smul.addr %s2847, 64
        %s2849 = scalar_lea.vmem [#allocation23], %s2848
        // Predicated region
        $region145: #{tpu_custom_call.1} parent=91 // pred_check
          %p2850 = pneg %p440
        $region146: #{tpu_custom_call.1} parent=91 // pred_check_branch
          %2852 = sbr.rel (%p2850) target = $region148
        $region147: #{tpu_custom_call.1} parent=91 // pred_region
          %s2853 = smul.u32 8, %s39
          %s2855 = ssub.s32 1024, 1024
          %2856 = vsyncadd %s2846, %s2855
          %s2857 = smul.addr %s2853, 128
          %s2858 = scalar_lea.hbm %s18, %s2857
          %s2859 = sshll.u32 %s2849, 4
          %s2860 = int_to_ptr.vmem [resolvable:$true] %s2859
          %2865 = dma.vmem_to_hbm [thread:$0]  %s2860, 1024, %s2858, %s2846, 128, 128, 8
        $region148: #{tpu_custom_call.1} parent=91 // pred_fallthru
          _
      $region92: #{tpu_custom_call.1} parent=5 // pred_fallthru
        _
      %p2866 = scmp.le.s32.totalorder 2, %s34
      // Predicated region
      $region149: #{tpu_custom_call.1} parent=5 // pred_check
        %p2867 = pneg %p2866
      $region150: #{tpu_custom_call.1} parent=5 // pred_check_branch
        %2869 = sbr.rel (%p2867) target = $region152
      $region151: #{tpu_custom_call.1} parent=5 // pred_region
        %s2870 = ssub.s32 %s34, 2
        // Predicated region
        $region153: #{tpu_custom_call.1} parent=151 // pred_check
          %p2871 = pneg %p446
        $region154: #{tpu_custom_call.1} parent=151 // pred_check_branch
          %2873 = sbr.rel (%p2871) target = $region156
        $region155: #{tpu_custom_call.1} parent=151 // pred_region
          %s2874 = sand.u32 %s431, 1
          %s2875 = scalar_lea.sflag [#allocation4], %s2874
          %s2876 = sand.u32 %s431, 1
          %s2877 = smul.addr %s2876, 64
          %s2878 = scalar_lea.vmem [#allocation23], %s2877
          %2879 = dma.done %s2875, 1024
        $region156: #{tpu_custom_call.1} parent=151 // pred_fallthru
          _
      $region152: #{tpu_custom_call.1} parent=5 // pred_fallthru
        _
    $region6: #{tpu_custom_call.1} parent=1 // loop_footer
      %s38 = sadd.s32 1, %s34
    $region7: #{tpu_custom_call.1} parent=1 // loop_footer_branch
      %33 = sbr.rel target = $region3
    $region8: #{tpu_custom_call.1} parent=1 // loop_exit
      _
    %2880 = vsyncpa [#allocation3], 1
    %s2881 = scalar_lea.sflag [#allocation3], 1
    %2882 = vsyncpa %s2881, 1
    %2883 = vsyncpa [#allocation6], 1
    %2884 = vsyncpa [#allocation9], 1
    %2885 = vsyncpa [#allocation12], 1
    %2886 = vsyncpa [#allocation15], 1
    %2887 = vsyncpa [#allocation18], 1
    %2888 = vsyncpa [#allocation21], 1
    %2889 = vsyncpa [#allocation4], 1
    %s2890 = scalar_lea.sflag [#allocation4], 1
    %2891 = vsyncpa %s2890, 1

</llo_original>
